<compile_context>
chip_gen: v5e
topology: v5e:2x2
jax: 0.10.0
libtpu: 0.0.40
codegen_flags: <defaults>
</compile_context>

<pallas_src>
import numpy as np

import jax
import jax.numpy as jnp
from jax import lax
from jax.experimental import pallas as pl
from jax.experimental.pallas import tpu as pltpu

# ---------------------------------------------------------------------------
# Small, deterministic configuration (stand-ins for 512/256/40 in the original)
# ---------------------------------------------------------------------------
IMG_H, IMG_W = 16, 32        # opt.img_h, opt.img_w
IN_CH = 1                    # opt.rgb = False
NUM_FID = 20                 # num_fiducial
FEAT = 128                   # feature_extraction_output (stand-in for 512; >=128 keeps the
                             # Pallas conv outputs lane-dense)
HIDDEN = 32                  # hidden_size (stand-in for 256) -> 4H = 128 lane-dense gates
NUM_CLASS = 12               # opt.num_class
BATCH_MAX_LENGTH = 6         # stand-in for 40 (keeps the demo small)
NUM_STEPS = BATCH_MAX_LENGTH + 1
BATCH = 2


# ---------------------------------------------------------------------------
# Pallas kernel 1: 3x3 conv for the wide layers (Cout >= 128).
# The padded NHWC slab for one image is VMEM-resident; the 9 taps are formed in-kernel
# with static slices (no im2col in HBM) and accumulated with 9 small MXU dots.
# ---------------------------------------------------------------------------
def _make_conv3x3_kernel(H, W, Cin, Cout, activation):
    def kernel(x_ref, w_ref, b_ref, o_ref):
        acc = jnp.zeros((H * W, Cout), jnp.float32)
        for dy in range(3):
            for dx in range(3):
                patch = x_ref[0, dy:dy + H, dx:dx + W, :].reshape(H * W, Cin)
                acc = acc + jnp.dot(patch, w_ref[dy * 3 + dx],
                                    preferred_element_type=jnp.float32)
        r = acc + b_ref[...]
        if activation == "relu":
            r = jnp.maximum(r, 0.0)
        o_ref[0] = r.reshape(H, W, Cout).astype(o_ref.dtype)
    return kernel


def conv2d_pallas_nhwc(x, w, b, activation):
    """x: (B, H, W, Cin) NHWC; w: (Cout, Cin, 3, 3) PyTorch layout; pad=1, stride=1."""
    B, H, W, Cin = x.shape
    Cout = w.shape[0]
    # Pad by 1 in H/W only (a few extra rows/cols; NOT the 9x im2col inflation), bf16 operands.
    xp = jnp.pad(x, ((0, 0), (1, 1), (1, 1), (0, 0))).astype(jnp.bfloat16)
    # (Cout, Cin, 3, 3) -> (dy, dx, Cin, Cout) -> (9, Cin, Cout); tap order matches kernel loop.
    wt = jnp.transpose(w, (2, 3, 1, 0)).reshape(9, Cin, Cout).astype(jnp.bfloat16)
    bias2d = b.reshape(1, Cout).astype(jnp.float32)
    return pl.pallas_call(
        _make_conv3x3_kernel(H, W, Cin, Cout, activation),
        out_shape=jax.ShapeDtypeStruct((B, H, W, Cout), jnp.bfloat16),   # bf16 out: consumer is bf16
        grid_spec=pltpu.PrefetchScalarGridSpec(
            num_scalar_prefetch=0,
            grid=(B,),
            in_specs=[
                pl.BlockSpec((1, H + 2, W + 2, Cin), lambda bb: (bb, 0, 0, 0)),  # per-image slab
                pl.BlockSpec((9, Cin, Cout), lambda bb: (0, 0, 0)),              # weights, resident
                pl.BlockSpec((1, Cout), lambda bb: (0, 0)),                      # bias, resident
            ],
            out_specs=pl.BlockSpec((1, H, W, Cout), lambda bb: (bb, 0, 0, 0)),
        ),
        # Batch axis can shard across the 2 TCs on v7x.
        compiler_params=pltpu.CompilerParams(dimension_semantics=("parallel",)),
    )(xp, wt, bias2d)


def conv2d_xla_nhwc(x, w, b, activation):
    out = lax.conv_general_dilated(
        x.astype(jnp.float32), jnp.transpose(w, (2, 3, 1, 0)),  # OIHW -> HWIO
        window_strides=(1, 1), padding=((1, 1), (1, 1)),
        dimension_numbers=("NHWC", "HWIO", "NHWC"))
    out = out + b[None, None, None, :]
    if activation == "relu":
        out = jnp.maximum(out, 0.0)
    return out


def conv2d_nhwc(x, w, b, activation="relu"):
    Cout, Cin = w.shape[0], w.shape[1]
    # Route to Pallas only when the output is lane-dense (N >= 128) and K is MXU-worthy.
    if Cout >= 128 and Cin * 9 >= 128:
        return conv2d_pallas_nhwc(x, w, b, activation)
    return conv2d_xla_nhwc(x, w, b, activation)


def max_pool_nhwc(x, kh, kw):
    B, H, W, C = x.shape
    return jnp.max(x.reshape(B, H // kh, kh, W // kw, kw, C), axis=(2, 4))


def res_block_nhwc(x, p1, p2):
    y = conv2d_nhwc(x, p1[0], p1[1], activation="relu")
    y = conv2d_nhwc(y, p2[0], p2[1], activation="none")
    return jnp.maximum(x + y, 0.0)


# ---------------------------------------------------------------------------
# Pallas kernel 2: fused bidirectional LSTM. One no-grid pallas_call per BiLSTM; both
# directions run in one in-kernel fori_loop via a block-diagonal recurrent weight, with
# everything VMEM-resident and (h, c) carried as loop values.
# ---------------------------------------------------------------------------
def _bilstm_kernel(xproj_ref, whh_ref, o_ref):
    T, B, G2 = xproj_ref.shape          # G2 = 8H: [forward 4H | backward 4H]
    H = G2 // 8
    whh = whh_ref[...]                  # (2H, 8H), block-diagonal (no cross-direction terms)

    def cell(g4, c_prev):               # PyTorch gate order: i, f, g, o
        i = jax.nn.sigmoid(g4[:, 0:H])
        f = jax.nn.sigmoid(g4[:, H:2 * H])
        g = jnp.tanh(g4[:, 2 * H:3 * H])
        o = jax.nn.sigmoid(g4[:, 3 * H:4 * H])
        c_new = f * c_prev + i * g
        return o * jnp.tanh(c_new), c_new

    def step(t, carry):
        h, c = carry                    # (B, 2H): [h_fwd | h_bwd]
        gates = xproj_ref[t] + jnp.dot(h, whh, preferred_element_type=jnp.float32)  # (B, 8H)
        h_f, c_f = cell(gates[:, :4 * H], c[:, :H])
        h_b, c_b = cell(gates[:, 4 * H:], c[:, H:])
        h_new = jnp.concatenate([h_f, h_b], axis=-1)
        c_new = jnp.concatenate([c_f, c_b], axis=-1)
        o_ref[t] = h_new
        return h_new, c_new

    h0 = jnp.zeros((B, 2 * H), jnp.float32)
    c0 = jnp.zeros((B, 2 * H), jnp.float32)
    lax.fori_loop(0, T, step, (h0, c0))


def bidir_lstm(x, p_f, p_b, lin):
    """x: (B, T, I). Returns (B, T, HIDDEN) like BidirectionalLSTM (LSTM + Linear)."""
    B, T, I = x.shape
    H = HIDDEN

    def xproj(params, reverse):
        xs = jnp.flip(x, axis=1) if reverse else x
        pr = (jnp.dot(xs.reshape(B * T, I), params['w_ih'].T)
              + (params['b_ih'] + params['b_hh'])[None, :])
        return jnp.transpose(pr.reshape(B, T, 4 * H), (1, 0, 2))   # (T, B, 4H)

    xp_f = xproj(p_f, reverse=False)
    xp_b = xproj(p_b, reverse=True)
    xproj_comb = jnp.concatenate([xp_f, xp_b], axis=-1)            # (T, B, 8H)

    zf = jnp.zeros((H, 4 * H), jnp.float32)
    whh_comb = jnp.concatenate([
        jnp.concatenate([p_f['w_hh'].T, zf], axis=1),
        jnp.concatenate([zf, p_b['w_hh'].T], axis=1)], axis=0)     # (2H, 8H) block-diagonal

    hs = pl.pallas_call(
        _bilstm_kernel,
        out_shape=jax.ShapeDtypeStruct((T, B, 2 * H), jnp.float32),
    )(xproj_comb, whh_comb)                                        # whole arrays VMEM-resident

    hs_f = jnp.transpose(hs[:, :, :H], (1, 0, 2))                  # (B, T, H)
    hs_b = jnp.transpose(jnp.flip(hs[:, :, H:], axis=0), (1, 0, 2))
    rec = jnp.concatenate([hs_f, hs_b], axis=-1)                   # (B, T, 2H)
    w, b = lin
    out = jnp.dot(rec.reshape(B * T, 2 * H), w.T) + b
    return out.reshape(B, T, H)


# ---------------------------------------------------------------------------
# Pallas kernel 3: fused attention decoder (teacher forcing, is_train=True).
# One no-grid pallas_call; in-kernel fori_loop over decode steps. The one-hot input
# projection (+ rnn bias) is precomputed for all steps; ctx/hidden projections are folded
# into a single dot via a pre-concatenated (I+H, 4H) weight.
# ---------------------------------------------------------------------------
def _attn_decoder_kernel(ohproj_ref, hproj_ref, bH_ref, h2h_w_ref, h2h_b_ref,
                         score_ref, wcomb_ref, o_ref):
    S, B, G = ohproj_ref.shape
    H = G // 4

    hproj = hproj_ref[...]              # (B, T, H) i2h(batch_H), hoisted out of the loop
    bH = bH_ref[...]                    # (B, T, I)
    score = score_ref[...]              # (1, H)
    h2h_w = h2h_w_ref[...]
    h2h_b = h2h_b_ref[...]
    wcomb = wcomb_ref[...]              # (I + H, 4H)

    def step(s, carry):
        h, c = carry
        # e = score(tanh(i2h(batch_H) + h2h(h))); alpha = softmax(e, dim=T)
        hid = jnp.dot(h, h2h_w, preferred_element_type=jnp.float32) + h2h_b       # (B, H)
        e = jnp.tanh(hproj + hid[:, None, :])                                     # (B, T, H)
        scores = jnp.sum(e * score[None, :, :], axis=-1)                          # (B, T)
        scores = scores - jnp.max(scores, axis=-1, keepdims=True)
        p = jnp.exp(scores)
        alpha = p * pl.reciprocal(jnp.sum(p, axis=-1, keepdims=True), approx=True)
        ctx = jnp.sum(alpha[:, :, None] * bH, axis=1)                             # (B, I)
        # Single gates dot: [ctx, h] @ [W_ih_ctx; W_hh], plus precomputed one-hot proj + bias.
        gates = (jnp.dot(jnp.concatenate([ctx, h], axis=-1), wcomb,
                         preferred_element_type=jnp.float32) + ohproj_ref[s])     # (B, 4H)
        i = jax.nn.sigmoid(gates[:, 0:H])
        f = jax.nn.sigmoid(gates[:, H:2 * H])
        g = jnp.tanh(gates[:, 2 * H:3 * H])
        o = jax.nn.sigmoid(gates[:, 3 * H:4 * H])
        c_new = f * c + i * g
        h_new = o * jnp.tanh(c_new)
        o_ref[s] = h_new
        return h_new, c_new

    h0 = jnp.zeros((B, H), jnp.float32)
    c0 = jnp.zeros((B, H), jnp.float32)
    lax.fori_loop(0, S, step, (h0, c0))


def attention_decode(params, batch_H, text):
    B, T, I = batch_H.shape
    H = HIDDEN
    C = NUM_CLASS
    S = text.shape[1]

    i2h_w, _ = params['att_i2h']          # Linear(..., bias=False)
    h2h_w, h2h_b = params['att_h2h']
    score_w, _ = params['att_score']      # Linear(H, 1, bias=False)
    rnn = params['att_rnn']
    gen_w, gen_b = params['att_gen']

    # Encoder-side projection once for the whole sequence (small -> XLA).
    Hproj = jnp.dot(batch_H.reshape(B * T, I), i2h_w.T).reshape(B, T, H)
    onehots = jax.nn.one_hot(text, C, dtype=jnp.float32)                  # (B, S, C)

    w_ih = rnn['w_ih']                                                    # (4H, I + C)
    rnn_b = rnn['b_ih'] + rnn['b_hh']
    # Precompute the one-hot half of the input projection for all steps, fold in the bias.
    ohproj = jnp.dot(onehots.reshape(B * S, C), w_ih[:, I:].T) + rnn_b[None, :]
    ohproj = jnp.transpose(ohproj.reshape(B, S, 4 * H), (1, 0, 2))        # (S, B, 4H)
    # Fold ctx/hidden projections into one weight: gates = [ctx, h] @ wcomb + ohproj[s].
    wcomb = jnp.concatenate([w_ih[:, :I].T, rnn['w_hh'].T], axis=0)       # (I + H, 4H)

    # TODO(synk): at production scale (B~192, T~26, I=512), block the batch over a
    # ('parallel','arbitrary') grid and keep Hproj/batch_H in bf16 so the resident operands
    # fit v7x's 64 MiB VMEM; at this demo scale everything is a few KB so no grid is needed.
    hs = pl.pallas_call(
        _attn_decoder_kernel,
        out_shape=jax.ShapeDtypeStruct((S, B, H), jnp.float32),
    )(ohproj, Hproj, batch_H, h2h_w.T, h2h_b.reshape(1, H),
      score_w.reshape(1, H), wcomb)

    output_hiddens = jnp.transpose(hs, (1, 0, 2))                         # (B, S, H)
    probs = jnp.dot(output_hiddens.reshape(B * S, H), gen_w.T) + gen_b
    return probs.reshape(B, S, C)


# ---------------------------------------------------------------------------
# TPS spatial transformer (localization CNN + grid generator + bilinear sample)
# ---------------------------------------------------------------------------
def build_tps_constants(F, H, W):
    eps = 1e-6
    ctrl_x = np.linspace(-1.0, 1.0, F // 2)
    C = np.concatenate([np.stack([ctrl_x, -np.ones(F // 2)], axis=1),
                        np.stack([ctrl_x, np.ones(F // 2)], axis=1)], axis=0)  # (F, 2)
    d = np.linalg.norm(C[:, None, :] - C[None, :, :], axis=2)
    hat_C = (d ** 2) * np.log(d ** 2 + eps)
    delta_C = np.concatenate([
        np.concatenate([np.ones((F, 1)), C, hat_C], axis=1),
        np.concatenate([np.zeros((2, 3)), C.T], axis=1),
        np.concatenate([np.zeros((1, 2)), np.ones((1, 1)), np.zeros((1, F))], axis=1),
    ], axis=0)
    inv_delta_C = np.linalg.inv(delta_C)                 # (F+3, F+3)
    gx = (np.arange(-W, W, 2) + 1.0) / W
    gy = (np.arange(-H, H, 2) + 1.0) / H
    P = np.stack(np.meshgrid(gx, gy), axis=2).reshape(-1, 2)  # (H*W, 2)
    dP = np.linalg.norm(P[:, None, :] - C[None, :, :], axis=2)
    rbf = (dP ** 2) * np.log(dP ** 2 + eps)
    P_hat = np.concatenate([np.ones((P.shape[0], 1)), P, rbf], axis=1)  # (n, F+3)
    return (jnp.asarray(C, jnp.float32),
            jnp.asarray(inv_delta_C, jnp.float32),
            jnp.asarray(P_hat, jnp.float32))


def grid_sample_bilinear(img, grid):
    # TODO(synk): data-dependent gather; kept in plain JAX (would need manual DMA gather in
    # Pallas). Also clamps to border instead of PyTorch's padding_mode='zeros'.
    B, C, H, W = img.shape
    gx = (grid[..., 0] + 1.0) * W / 2.0 - 0.5
    gy = (grid[..., 1] + 1.0) * H / 2.0 - 0.5
    x0 = jnp.floor(gx)
    y0 = jnp.floor(gy)
    wx = (gx - x0)[:, None]
    wy = (gy - y0)[:, None]
    x0i = x0.astype(jnp.int32)
    y0i = y0.astype(jnp.int32)

    def gather(yi, xi):
        yi = jnp.clip(yi, 0, H - 1)
        xi = jnp.clip(xi, 0, W - 1)
        return jax.vmap(lambda im, yy, xx: im[:, yy, xx])(img, yi, xi)  # (B, C, Ho, Wo)

    v00 = gather(y0i, x0i)
    v01 = gather(y0i, x0i + 1)
    v10 = gather(y0i + 1, x0i)
    v11 = gather(y0i + 1, x0i + 1)
    return (v00 * (1 - wx) * (1 - wy) + v01 * wx * (1 - wy)
            + v10 * (1 - wx) * wy + v11 * wx * wy)


def tps_transform(x, params):
    B, C, H, W = x.shape
    # Localization network (small channels -> XLA convs; NHWC internally).
    # TODO(synk): BatchNorm running statistics not modeled.
    xh = jnp.transpose(x, (0, 2, 3, 1))
    f = conv2d_nhwc(xh, *params['loc_c1'])
    f = max_pool_nhwc(f, 2, 2)
    f = conv2d_nhwc(f, *params['loc_c2'])
    f = max_pool_nhwc(f, 2, 2)
    f = conv2d_nhwc(f, *params['loc_c3'])
    f = max_pool_nhwc(f, 2, 2)
    f = jnp.mean(f, axis=(1, 2))                                     # global avg pool -> (B, 16)
    w1, b1 = params['loc_fc1']
    f = jnp.maximum(jnp.dot(f, w1.T) + b1, 0.0)
    w2, b2 = params['loc_fc2']
    cprime = (jnp.dot(f, w2.T) + b2).reshape(B, NUM_FID, 2)
    # Grid generator: TPS solve with the shared inverse system (tiny -> XLA batched matmuls).
    Cz = jnp.concatenate([cprime, jnp.zeros((B, 3, 2), jnp.float32)], axis=1)  # (B, F+3, 2)
    T = jnp.einsum('ij,bjk->bik', params['inv_delta_C'], Cz)         # (B, F+3, 2)
    P_prime = jnp.einsum('nj,bjk->bnk', params['P_hat'], T)          # (B, H*W, 2)
    grid = P_prime.reshape(B, H, W, 2)
    return grid_sample_bilinear(x, grid)


# ---------------------------------------------------------------------------
# Feature extractor (simplified ResNet-style CNN, NHWC end-to-end)
# ---------------------------------------------------------------------------
def feature_extract(x_nchw, p):
    x = jnp.transpose(x_nchw, (0, 2, 3, 1))   # one layout change at the module boundary
    f = conv2d_nhwc(x, *p['fe_c01'])
    f = conv2d_nhwc(f, *p['fe_c02'])
    f = max_pool_nhwc(f, 2, 2)                # 16x32 -> 8x16
    f = res_block_nhwc(f, p['fe_b1a'], p['fe_b1b'])
    f = conv2d_nhwc(f, *p['fe_c1'])
    f = max_pool_nhwc(f, 2, 2)                # 8x16 -> 4x8
    f = res_block_nhwc(f, p['fe_b2a'], p['fe_b2b'])
    f = conv2d_nhwc(f, *p['fe_c2'])           # Pallas conv (Cout = 128), bf16 out
    f = max_pool_nhwc(f, 2, 1)                # 4x8 -> 2x8
    f = conv2d_nhwc(f, *p['fe_c3'])           # Pallas conv (Cout = 128), bf16 out
    return f                                  # (B, 2, 8, FEAT) bf16


def adaptive_avg_pool_h(f_nhwc):
    # permute(0,3,1,2) + AdaptiveAvgPool2d((None,1)) + squeeze(3) == mean over H in NHWC,
    # output already (B, W, C) and lane-dense in C.
    return jnp.mean(f_nhwc.astype(jnp.float32), axis=1)


# ---------------------------------------------------------------------------
# Full forward (mirrors Model.forward)
# ---------------------------------------------------------------------------
def model_forward(params, x, text):
    inp = tps_transform(x, params)                    # self.transformation
    vf = feature_extract(inp, params)                 # self.feature_extraction
    seq = adaptive_avg_pool_h(vf)                     # adaptive_avg_pool + permute + squeeze
    ctx = bidir_lstm(seq, params['lstm1_f'], params['lstm1_b'], params['lstm1_lin'])
    ctx = bidir_lstm(ctx, params['lstm2_f'], params['lstm2_b'], params['lstm2_lin'])
    return attention_decode(params, ctx, text)        # self.prediction


# ---------------------------------------------------------------------------
# Deterministic parameter init
# ---------------------------------------------------------------------------
def init_params(key):
    keys = iter(jax.random.split(key, 64))

    def conv_p(cin, cout):
        w = jax.random.normal(next(keys), (cout, cin, 3, 3), jnp.float32) / np.sqrt(cin * 9)
        return w, jnp.zeros((cout,), jnp.float32)

    def lin_p(cin, cout):
        w = jax.random.normal(next(keys), (cout, cin), jnp.float32) / np.sqrt(cin)
        return w, jnp.zeros((cout,), jnp.float32)

    def lstm_p(cin, h):
        s = 1.0 / np.sqrt(h)
        return dict(w_ih=jax.random.normal(next(keys), (4 * h, cin), jnp.float32) * s,
                    w_hh=jax.random.normal(next(keys), (4 * h, h), jnp.float32) * s,
                    b_ih=jnp.zeros((4 * h,), jnp.float32),
                    b_hh=jnp.zeros((4 * h,), jnp.float32))

    p = {}
    # TPS
    p['loc_c1'] = conv_p(IN_CH, 8)
    p['loc_c2'] = conv_p(8, 16)
    p['loc_c3'] = conv_p(16, 16)
    p['loc_fc1'] = lin_p(16, 32)
    C, inv_delta_C, P_hat = build_tps_constants(NUM_FID, IMG_H, IMG_W)
    # fc2: zero weights + fiducial-point bias (identity transform init, like the original)
    p['loc_fc2'] = (jnp.zeros((2 * NUM_FID, 32), jnp.float32), C.reshape(-1))
    p['inv_delta_C'] = inv_delta_C
    p['P_hat'] = P_hat
    # Feature extractor
    p['fe_c01'] = conv_p(IN_CH, 8)
    p['fe_c02'] = conv_p(8, 16)
    p['fe_b1a'] = conv_p(16, 16)
    p['fe_b1b'] = conv_p(16, 16)
    p['fe_c1'] = conv_p(16, 32)
    p['fe_b2a'] = conv_p(32, 32)
    p['fe_b2b'] = conv_p(32, 32)
    p['fe_c2'] = conv_p(32, FEAT)
    p['fe_c3'] = conv_p(FEAT, FEAT)
    # Sequence modeling
    p['lstm1_f'] = lstm_p(FEAT, HIDDEN)
    p['lstm1_b'] = lstm_p(FEAT, HIDDEN)
    p['lstm1_lin'] = lin_p(2 * HIDDEN, HIDDEN)
    p['lstm2_f'] = lstm_p(HIDDEN, HIDDEN)
    p['lstm2_b'] = lstm_p(HIDDEN, HIDDEN)
    p['lstm2_lin'] = lin_p(2 * HIDDEN, HIDDEN)
    # Attention
    p['att_i2h'] = lin_p(HIDDEN, HIDDEN)       # bias unused (Linear(..., bias=False))
    p['att_h2h'] = lin_p(HIDDEN, HIDDEN)
    p['att_score'] = lin_p(HIDDEN, 1)          # bias unused
    p['att_rnn'] = lstm_p(HIDDEN + NUM_CLASS, HIDDEN)
    p['att_gen'] = lin_p(HIDDEN, NUM_CLASS)
    return p


if __name__ == "__main__":
    key = jax.random.PRNGKey(0)
    kx, kt = jax.random.split(key)
    x = jax.random.normal(kx, (BATCH, IN_CH, IMG_H, IMG_W), dtype=jnp.float32)
    text = jnp.concatenate(
        [jnp.zeros((BATCH, 1), jnp.int32),                              # [GO] token
         jax.random.randint(kt, (BATCH, NUM_STEPS - 1), 1, NUM_CLASS, dtype=jnp.int32)],
        axis=1)
    params = init_params(jax.random.PRNGKey(42))

    fwd = jax.jit(model_forward)
    out = fwd(params, x, text)
    jax.block_until_ready(out)
    assert out.shape == (BATCH, NUM_STEPS, NUM_CLASS), out.shape
    assert bool(jnp.all(jnp.isfinite(out)))
    print("KERNEL_OK")
</pallas_src>

<mosaic_0001>
module attributes {stable_mosaic.version = 11 : i64} {
  func.func @kernel(%arg0: i32, %arg1: memref<1x6x10x32xbf16, #tpu.memory_space<vmem>>, %arg2: memref<9x32x128xbf16, #tpu.memory_space<vmem>>, %arg3: memref<1x128xf32, #tpu.memory_space<vmem>>, %arg4: memref<1x4x8x128xbf16, #tpu.memory_space<vmem>>) attributes {dimension_semantics = [#tpu.dimension_semantics<parallel>], iteration_bounds = array<i64: 2>, scalar_prefetch = 0 : i64, scratch_operands = 0 : i64, tpu.core_type = #tpu.core_type<tc>, window_params = [{transform_indices = @transform_0, window_bounds = array<i64: 1, 6, 10, 32>}, {pipeline_mode = #tpu.pipeline_mode<synchronous>, transform_indices = @transform_1, window_bounds = array<i64: 9, 32, 128>}, {pipeline_mode = #tpu.pipeline_mode<synchronous>, transform_indices = @transform_2, window_bounds = array<i64: 1, 128>}, {transform_indices = @transform_3, window_bounds = array<i64: 1, 4, 8, 128>}]} {
    %cst = arith.constant 0.000000e+00 : f32
    %0 = vector.broadcast %cst : f32 to vector<32x128xf32>
    %c0 = arith.constant 0 : index
    %c0_0 = arith.constant 0 : index
    %c0_1 = arith.constant 0 : index
    %c0_2 = arith.constant 0 : index
    %1 = vector.load %arg1[%c0, %c0_0, %c0_1, %c0_2] : memref<1x6x10x32xbf16, #tpu.memory_space<vmem>>, vector<1x4x8x32xbf16>
    %2 = vector.shape_cast %1 : vector<1x4x8x32xbf16> to vector<4x8x32xbf16>
    %3 = vector.shape_cast %2 : vector<4x8x32xbf16> to vector<32x32xbf16>
    %c0_3 = arith.constant 0 : index
    %c0_4 = arith.constant 0 : index
    %c0_5 = arith.constant 0 : index
    %4 = vector.load %arg2[%c0_3, %c0_4, %c0_5] : memref<9x32x128xbf16, #tpu.memory_space<vmem>>, vector<1x32x128xbf16>
    %5 = vector.shape_cast %4 : vector<1x32x128xbf16> to vector<32x128xbf16>
    %cst_6 = arith.constant dense<0.000000e+00> : vector<32x128xf32>
    %6 = tpu.matmul %3, %5, %cst_6 {dimension_numbers = #tpu.dot_dimension_numbers<[1], [0], [0], [1], [0, 0, 1, 1], [], []>} : vector<32x32xbf16>, vector<32x128xbf16>, vector<32x128xf32> -> vector<32x128xf32>
    %7 = arith.addf %0, %6 : vector<32x128xf32>
    %c0_7 = arith.constant 0 : index
    %c0_8 = arith.constant 0 : index
    %c1 = arith.constant 1 : index
    %c0_9 = arith.constant 0 : index
    %8 = vector.load %arg1[%c0_7, %c0_8, %c1, %c0_9] : memref<1x6x10x32xbf16, #tpu.memory_space<vmem>>, vector<1x4x8x32xbf16>
    %9 = vector.shape_cast %8 : vector<1x4x8x32xbf16> to vector<4x8x32xbf16>
    %10 = vector.shape_cast %9 : vector<4x8x32xbf16> to vector<32x32xbf16>
    %c1_10 = arith.constant 1 : index
    %c0_11 = arith.constant 0 : index
    %c0_12 = arith.constant 0 : index
    %11 = vector.load %arg2[%c1_10, %c0_11, %c0_12] : memref<9x32x128xbf16, #tpu.memory_space<vmem>>, vector<1x32x128xbf16>
    %12 = vector.shape_cast %11 : vector<1x32x128xbf16> to vector<32x128xbf16>
    %cst_13 = arith.constant dense<0.000000e+00> : vector<32x128xf32>
    %13 = tpu.matmul %10, %12, %cst_13 {dimension_numbers = #tpu.dot_dimension_numbers<[1], [0], [0], [1], [0, 0, 1, 1], [], []>} : vector<32x32xbf16>, vector<32x128xbf16>, vector<32x128xf32> -> vector<32x128xf32>
    %14 = arith.addf %7, %13 : vector<32x128xf32>
    %c0_14 = arith.constant 0 : index
    %c0_15 = arith.constant 0 : index
    %c2 = arith.constant 2 : index
    %c0_16 = arith.constant 0 : index
    %15 = vector.load %arg1[%c0_14, %c0_15, %c2, %c0_16] : memref<1x6x10x32xbf16, #tpu.memory_space<vmem>>, vector<1x4x8x32xbf16>
    %16 = vector.shape_cast %15 : vector<1x4x8x32xbf16> to vector<4x8x32xbf16>
    %17 = vector.shape_cast %16 : vector<4x8x32xbf16> to vector<32x32xbf16>
    %c2_17 = arith.constant 2 : index
    %c0_18 = arith.constant 0 : index
    %c0_19 = arith.constant 0 : index
    %18 = vector.load %arg2[%c2_17, %c0_18, %c0_19] : memref<9x32x128xbf16, #tpu.memory_space<vmem>>, vector<1x32x128xbf16>
    %19 = vector.shape_cast %18 : vector<1x32x128xbf16> to vector<32x128xbf16>
    %cst_20 = arith.constant dense<0.000000e+00> : vector<32x128xf32>
    %20 = tpu.matmul %17, %19, %cst_20 {dimension_numbers = #tpu.dot_dimension_numbers<[1], [0], [0], [1], [0, 0, 1, 1], [], []>} : vector<32x32xbf16>, vector<32x128xbf16>, vector<32x128xf32> -> vector<32x128xf32>
    %21 = arith.addf %14, %20 : vector<32x128xf32>
    %c0_21 = arith.constant 0 : index
    %c1_22 = arith.constant 1 : index
    %c0_23 = arith.constant 0 : index
    %c0_24 = arith.constant 0 : index
    %22 = vector.load %arg1[%c0_21, %c1_22, %c0_23, %c0_24] : memref<1x6x10x32xbf16, #tpu.memory_space<vmem>>, vector<1x4x8x32xbf16>
    %23 = vector.shape_cast %22 : vector<1x4x8x32xbf16> to vector<4x8x32xbf16>
    %24 = vector.shape_cast %23 : vector<4x8x32xbf16> to vector<32x32xbf16>
    %c3 = arith.constant 3 : index
    %c0_25 = arith.constant 0 : index
    %c0_26 = arith.constant 0 : index
    %25 = vector.load %arg2[%c3, %c0_25, %c0_26] : memref<9x32x128xbf16, #tpu.memory_space<vmem>>, vector<1x32x128xbf16>
    %26 = vector.shape_cast %25 : vector<1x32x128xbf16> to vector<32x128xbf16>
    %cst_27 = arith.constant dense<0.000000e+00> : vector<32x128xf32>
    %27 = tpu.matmul %24, %26, %cst_27 {dimension_numbers = #tpu.dot_dimension_numbers<[1], [0], [0], [1], [0, 0, 1, 1], [], []>} : vector<32x32xbf16>, vector<32x128xbf16>, vector<32x128xf32> -> vector<32x128xf32>
    %28 = arith.addf %21, %27 : vector<32x128xf32>
    %c0_28 = arith.constant 0 : index
    %c1_29 = arith.constant 1 : index
    %c1_30 = arith.constant 1 : index
    %c0_31 = arith.constant 0 : index
    %29 = vector.load %arg1[%c0_28, %c1_29, %c1_30, %c0_31] : memref<1x6x10x32xbf16, #tpu.memory_space<vmem>>, vector<1x4x8x32xbf16>
    %30 = vector.shape_cast %29 : vector<1x4x8x32xbf16> to vector<4x8x32xbf16>
    %31 = vector.shape_cast %30 : vector<4x8x32xbf16> to vector<32x32xbf16>
    %c4 = arith.constant 4 : index
    %c0_32 = arith.constant 0 : index
    %c0_33 = arith.constant 0 : index
    %32 = vector.load %arg2[%c4, %c0_32, %c0_33] : memref<9x32x128xbf16, #tpu.memory_space<vmem>>, vector<1x32x128xbf16>
    %33 = vector.shape_cast %32 : vector<1x32x128xbf16> to vector<32x128xbf16>
    %cst_34 = arith.constant dense<0.000000e+00> : vector<32x128xf32>
    %34 = tpu.matmul %31, %33, %cst_34 {dimension_numbers = #tpu.dot_dimension_numbers<[1], [0], [0], [1], [0, 0, 1, 1], [], []>} : vector<32x32xbf16>, vector<32x128xbf16>, vector<32x128xf32> -> vector<32x128xf32>
    %35 = arith.addf %28, %34 : vector<32x128xf32>
    %c0_35 = arith.constant 0 : index
    %c1_36 = arith.constant 1 : index
    %c2_37 = arith.constant 2 : index
    %c0_38 = arith.constant 0 : index
    %36 = vector.load %arg1[%c0_35, %c1_36, %c2_37, %c0_38] : memref<1x6x10x32xbf16, #tpu.memory_space<vmem>>, vector<1x4x8x32xbf16>
    %37 = vector.shape_cast %36 : vector<1x4x8x32xbf16> to vector<4x8x32xbf16>
    %38 = vector.shape_cast %37 : vector<4x8x32xbf16> to vector<32x32xbf16>
    %c5 = arith.constant 5 : index
    %c0_39 = arith.constant 0 : index
    %c0_40 = arith.constant 0 : index
    %39 = vector.load %arg2[%c5, %c0_39, %c0_40] : memref<9x32x128xbf16, #tpu.memory_space<vmem>>, vector<1x32x128xbf16>
    %40 = vector.shape_cast %39 : vector<1x32x128xbf16> to vector<32x128xbf16>
    %cst_41 = arith.constant dense<0.000000e+00> : vector<32x128xf32>
    %41 = tpu.matmul %38, %40, %cst_41 {dimension_numbers = #tpu.dot_dimension_numbers<[1], [0], [0], [1], [0, 0, 1, 1], [], []>} : vector<32x32xbf16>, vector<32x128xbf16>, vector<32x128xf32> -> vector<32x128xf32>
    %42 = arith.addf %35, %41 : vector<32x128xf32>
    %c0_42 = arith.constant 0 : index
    %c2_43 = arith.constant 2 : index
    %c0_44 = arith.constant 0 : index
    %c0_45 = arith.constant 0 : index
    %43 = vector.load %arg1[%c0_42, %c2_43, %c0_44, %c0_45] : memref<1x6x10x32xbf16, #tpu.memory_space<vmem>>, vector<1x4x8x32xbf16>
    %44 = vector.shape_cast %43 : vector<1x4x8x32xbf16> to vector<4x8x32xbf16>
    %45 = vector.shape_cast %44 : vector<4x8x32xbf16> to vector<32x32xbf16>
    %c6 = arith.constant 6 : index
    %c0_46 = arith.constant 0 : index
    %c0_47 = arith.constant 0 : index
    %46 = vector.load %arg2[%c6, %c0_46, %c0_47] : memref<9x32x128xbf16, #tpu.memory_space<vmem>>, vector<1x32x128xbf16>
    %47 = vector.shape_cast %46 : vector<1x32x128xbf16> to vector<32x128xbf16>
    %cst_48 = arith.constant dense<0.000000e+00> : vector<32x128xf32>
    %48 = tpu.matmul %45, %47, %cst_48 {dimension_numbers = #tpu.dot_dimension_numbers<[1], [0], [0], [1], [0, 0, 1, 1], [], []>} : vector<32x32xbf16>, vector<32x128xbf16>, vector<32x128xf32> -> vector<32x128xf32>
    %49 = arith.addf %42, %48 : vector<32x128xf32>
    %c0_49 = arith.constant 0 : index
    %c2_50 = arith.constant 2 : index
    %c1_51 = arith.constant 1 : index
    %c0_52 = arith.constant 0 : index
    %50 = vector.load %arg1[%c0_49, %c2_50, %c1_51, %c0_52] : memref<1x6x10x32xbf16, #tpu.memory_space<vmem>>, vector<1x4x8x32xbf16>
    %51 = vector.shape_cast %50 : vector<1x4x8x32xbf16> to vector<4x8x32xbf16>
    %52 = vector.shape_cast %51 : vector<4x8x32xbf16> to vector<32x32xbf16>
    %c7 = arith.constant 7 : index
    %c0_53 = arith.constant 0 : index
    %c0_54 = arith.constant 0 : index
    %53 = vector.load %arg2[%c7, %c0_53, %c0_54] : memref<9x32x128xbf16, #tpu.memory_space<vmem>>, vector<1x32x128xbf16>
    %54 = vector.shape_cast %53 : vector<1x32x128xbf16> to vector<32x128xbf16>
    %cst_55 = arith.constant dense<0.000000e+00> : vector<32x128xf32>
    %55 = tpu.matmul %52, %54, %cst_55 {dimension_numbers = #tpu.dot_dimension_numbers<[1], [0], [0], [1], [0, 0, 1, 1], [], []>} : vector<32x32xbf16>, vector<32x128xbf16>, vector<32x128xf32> -> vector<32x128xf32>
    %56 = arith.addf %49, %55 : vector<32x128xf32>
    %c0_56 = arith.constant 0 : index
    %c2_57 = arith.constant 2 : index
    %c2_58 = arith.constant 2 : index
    %c0_59 = arith.constant 0 : index
    %57 = vector.load %arg1[%c0_56, %c2_57, %c2_58, %c0_59] : memref<1x6x10x32xbf16, #tpu.memory_space<vmem>>, vector<1x4x8x32xbf16>
    %58 = vector.shape_cast %57 : vector<1x4x8x32xbf16> to vector<4x8x32xbf16>
    %59 = vector.shape_cast %58 : vector<4x8x32xbf16> to vector<32x32xbf16>
    %c8 = arith.constant 8 : index
    %c0_60 = arith.constant 0 : index
    %c0_61 = arith.constant 0 : index
    %60 = vector.load %arg2[%c8, %c0_60, %c0_61] : memref<9x32x128xbf16, #tpu.memory_space<vmem>>, vector<1x32x128xbf16>
    %61 = vector.shape_cast %60 : vector<1x32x128xbf16> to vector<32x128xbf16>
    %cst_62 = arith.constant dense<0.000000e+00> : vector<32x128xf32>
    %62 = tpu.matmul %59, %61, %cst_62 {dimension_numbers = #tpu.dot_dimension_numbers<[1], [0], [0], [1], [0, 0, 1, 1], [], []>} : vector<32x32xbf16>, vector<32x128xbf16>, vector<32x128xf32> -> vector<32x128xf32>
    %63 = arith.addf %56, %62 : vector<32x128xf32>
    %c0_63 = arith.constant 0 : index
    %c0_64 = arith.constant 0 : index
    %64 = vector.load %arg3[%c0_63, %c0_64] : memref<1x128xf32, #tpu.memory_space<vmem>>, vector<1x128xf32>
    %65 = vector.broadcast %64 : vector<1x128xf32> to vector<32x128xf32>
    %66 = arith.addf %63, %65 : vector<32x128xf32>
    %cst_65 = arith.constant 0.000000e+00 : f32
    %67 = vector.broadcast %cst_65 : f32 to vector<32x128xf32>
    %68 = arith.maximumf %66, %67 : vector<32x128xf32>
    %69 = vector.shape_cast %68 : vector<32x128xf32> to vector<4x8x128xf32>
    %70 = arith.truncf %69 : vector<4x8x128xf32> to vector<4x8x128xbf16>
    %c0_66 = arith.constant 0 : index
    %c0_67 = arith.constant 0 : index
    %c0_68 = arith.constant 0 : index
    %c0_69 = arith.constant 0 : index
    %71 = vector.load %arg4[%c0_66, %c0_67, %c0_68, %c0_69] : memref<1x4x8x128xbf16, #tpu.memory_space<vmem>>, vector<1x4x8x128xbf16>
    %72 = vector.shape_cast %71 : vector<1x4x8x128xbf16> to vector<4x8x128xbf16>
    %73 = vector.shape_cast %70 : vector<4x8x128xbf16> to vector<1x4x8x128xbf16>
    tpu.vector_store %arg4[%c0_66, %c0_67, %c0_68, %c0_69], %73 {strides = array<i32>} : memref<1x4x8x128xbf16, #tpu.memory_space<vmem>>, vector<1x4x8x128xbf16>,
    return
  }
  func.func @transform_0(%arg0: i32) -> (i32, i32, i32, i32) {
    %c0_i32 = arith.constant 0 : i32
    %c0_i32_0 = arith.constant 0 : i32
    %c0_i32_1 = arith.constant 0 : i32
    %c0_i32_2 = arith.constant 0 : i32
    return %arg0, %c0_i32, %c0_i32_0, %c0_i32_1 : i32, i32, i32, i32
  }
  func.func @transform_1(%arg0: i32) -> (i32, i32, i32) {
    %c0_i32 = arith.constant 0 : i32
    %c0_i32_0 = arith.constant 0 : i32
    %c0_i32_1 = arith.constant 0 : i32
    %c0_i32_2 = arith.constant 0 : i32
    return %c0_i32, %c0_i32_0, %c0_i32_1 : i32, i32, i32
  }
  func.func @transform_2(%arg0: i32) -> (i32, i32) {
    %c0_i32 = arith.constant 0 : i32
    %c0_i32_0 = arith.constant 0 : i32
    %c0_i32_1 = arith.constant 0 : i32
    return %c0_i32, %c0_i32_0 : i32, i32
  }
  func.func @transform_3(%arg0: i32) -> (i32, i32, i32, i32) {
    %c0_i32 = arith.constant 0 : i32
    %c0_i32_0 = arith.constant 0 : i32
    %c0_i32_1 = arith.constant 0 : i32
    %c0_i32_2 = arith.constant 0 : i32
    return %arg0, %c0_i32, %c0_i32_0, %c0_i32_1 : i32, i32, i32, i32
  }
}

module attributes {stable_mosaic.version = 11 : i64} {
  func.func @kernel(%arg0: i32, %arg1: memref<1x4x10x128xbf16, #tpu.memory_space<vmem>>, %arg2: memref<9x128x128xbf16, #tpu.memory_space<vmem>>, %arg3: memref<1x128xf32, #tpu.memory_space<vmem>>, %arg4: memref<1x2x8x128xbf16, #tpu.memory_space<vmem>>) attributes {dimension_semantics = [#tpu.dimension_semantics<parallel>], iteration_bounds = array<i64: 2>, scalar_prefetch = 0 : i64, scratch_operands = 0 : i64, tpu.core_type = #tpu.core_type<tc>, window_params = [{transform_indices = @transform_0, window_bounds = array<i64: 1, 4, 10, 128>}, {pipeline_mode = #tpu.pipeline_mode<synchronous>, transform_indices = @transform_1, window_bounds = array<i64: 9, 128, 128>}, {pipeline_mode = #tpu.pipeline_mode<synchronous>, transform_indices = @transform_2, window_bounds = array<i64: 1, 128>}, {transform_indices = @transform_3, window_bounds = array<i64: 1, 2, 8, 128>}]} {
    %cst = arith.constant 0.000000e+00 : f32
    %0 = vector.broadcast %cst : f32 to vector<16x128xf32>
    %c0 = arith.constant 0 : index
    %c0_0 = arith.constant 0 : index
    %c0_1 = arith.constant 0 : index
    %c0_2 = arith.constant 0 : index
    %1 = vector.load %arg1[%c0, %c0_0, %c0_1, %c0_2] : memref<1x4x10x128xbf16, #tpu.memory_space<vmem>>, vector<1x2x8x128xbf16>
    %2 = vector.shape_cast %1 : vector<1x2x8x128xbf16> to vector<2x8x128xbf16>
    %3 = vector.shape_cast %2 : vector<2x8x128xbf16> to vector<16x128xbf16>
    %c0_3 = arith.constant 0 : index
    %c0_4 = arith.constant 0 : index
    %c0_5 = arith.constant 0 : index
    %4 = vector.load %arg2[%c0_3, %c0_4, %c0_5] : memref<9x128x128xbf16, #tpu.memory_space<vmem>>, vector<1x128x128xbf16>
    %5 = vector.shape_cast %4 : vector<1x128x128xbf16> to vector<128x128xbf16>
    %cst_6 = arith.constant dense<0.000000e+00> : vector<16x128xf32>
    %6 = tpu.matmul %3, %5, %cst_6 {dimension_numbers = #tpu.dot_dimension_numbers<[1], [0], [0], [1], [0, 0, 1, 1], [], []>} : vector<16x128xbf16>, vector<128x128xbf16>, vector<16x128xf32> -> vector<16x128xf32>
    %7 = arith.addf %0, %6 : vector<16x128xf32>
    %c0_7 = arith.constant 0 : index
    %c0_8 = arith.constant 0 : index
    %c1 = arith.constant 1 : index
    %c0_9 = arith.constant 0 : index
    %8 = vector.load %arg1[%c0_7, %c0_8, %c1, %c0_9] : memref<1x4x10x128xbf16, #tpu.memory_space<vmem>>, vector<1x2x8x128xbf16>
    %9 = vector.shape_cast %8 : vector<1x2x8x128xbf16> to vector<2x8x128xbf16>
    %10 = vector.shape_cast %9 : vector<2x8x128xbf16> to vector<16x128xbf16>
    %c1_10 = arith.constant 1 : index
    %c0_11 = arith.constant 0 : index
    %c0_12 = arith.constant 0 : index
    %11 = vector.load %arg2[%c1_10, %c0_11, %c0_12] : memref<9x128x128xbf16, #tpu.memory_space<vmem>>, vector<1x128x128xbf16>
    %12 = vector.shape_cast %11 : vector<1x128x128xbf16> to vector<128x128xbf16>
    %cst_13 = arith.constant dense<0.000000e+00> : vector<16x128xf32>
    %13 = tpu.matmul %10, %12, %cst_13 {dimension_numbers = #tpu.dot_dimension_numbers<[1], [0], [0], [1], [0, 0, 1, 1], [], []>} : vector<16x128xbf16>, vector<128x128xbf16>, vector<16x128xf32> -> vector<16x128xf32>
    %14 = arith.addf %7, %13 : vector<16x128xf32>
    %c0_14 = arith.constant 0 : index
    %c0_15 = arith.constant 0 : index
    %c2 = arith.constant 2 : index
    %c0_16 = arith.constant 0 : index
    %15 = vector.load %arg1[%c0_14, %c0_15, %c2, %c0_16] : memref<1x4x10x128xbf16, #tpu.memory_space<vmem>>, vector<1x2x8x128xbf16>
    %16 = vector.shape_cast %15 : vector<1x2x8x128xbf16> to vector<2x8x128xbf16>
    %17 = vector.shape_cast %16 : vector<2x8x128xbf16> to vector<16x128xbf16>
    %c2_17 = arith.constant 2 : index
    %c0_18 = arith.constant 0 : index
    %c0_19 = arith.constant 0 : index
    %18 = vector.load %arg2[%c2_17, %c0_18, %c0_19] : memref<9x128x128xbf16, #tpu.memory_space<vmem>>, vector<1x128x128xbf16>
    %19 = vector.shape_cast %18 : vector<1x128x128xbf16> to vector<128x128xbf16>
    %cst_20 = arith.constant dense<0.000000e+00> : vector<16x128xf32>
    %20 = tpu.matmul %17, %19, %cst_20 {dimension_numbers = #tpu.dot_dimension_numbers<[1], [0], [0], [1], [0, 0, 1, 1], [], []>} : vector<16x128xbf16>, vector<128x128xbf16>, vector<16x128xf32> -> vector<16x128xf32>
    %21 = arith.addf %14, %20 : vector<16x128xf32>
    %c0_21 = arith.constant 0 : index
    %c1_22 = arith.constant 1 : index
    %c0_23 = arith.constant 0 : index
    %c0_24 = arith.constant 0 : index
    %22 = vector.load %arg1[%c0_21, %c1_22, %c0_23, %c0_24] : memref<1x4x10x128xbf16, #tpu.memory_space<vmem>>, vector<1x2x8x128xbf16>
    %23 = vector.shape_cast %22 : vector<1x2x8x128xbf16> to vector<2x8x128xbf16>
    %24 = vector.shape_cast %23 : vector<2x8x128xbf16> to vector<16x128xbf16>
    %c3 = arith.constant 3 : index
    %c0_25 = arith.constant 0 : index
    %c0_26 = arith.constant 0 : index
    %25 = vector.load %arg2[%c3, %c0_25, %c0_26] : memref<9x128x128xbf16, #tpu.memory_space<vmem>>, vector<1x128x128xbf16>
    %26 = vector.shape_cast %25 : vector<1x128x128xbf16> to vector<128x128xbf16>
    %cst_27 = arith.constant dense<0.000000e+00> : vector<16x128xf32>
    %27 = tpu.matmul %24, %26, %cst_27 {dimension_numbers = #tpu.dot_dimension_numbers<[1], [0], [0], [1], [0, 0, 1, 1], [], []>} : vector<16x128xbf16>, vector<128x128xbf16>, vector<16x128xf32> -> vector<16x128xf32>
    %28 = arith.addf %21, %27 : vector<16x128xf32>
    %c0_28 = arith.constant 0 : index
    %c1_29 = arith.constant 1 : index
    %c1_30 = arith.constant 1 : index
    %c0_31 = arith.constant 0 : index
    %29 = vector.load %arg1[%c0_28, %c1_29, %c1_30, %c0_31] : memref<1x4x10x128xbf16, #tpu.memory_space<vmem>>, vector<1x2x8x128xbf16>
    %30 = vector.shape_cast %29 : vector<1x2x8x128xbf16> to vector<2x8x128xbf16>
    %31 = vector.shape_cast %30 : vector<2x8x128xbf16> to vector<16x128xbf16>
    %c4 = arith.constant 4 : index
    %c0_32 = arith.constant 0 : index
    %c0_33 = arith.constant 0 : index
    %32 = vector.load %arg2[%c4, %c0_32, %c0_33] : memref<9x128x128xbf16, #tpu.memory_space<vmem>>, vector<1x128x128xbf16>
    %33 = vector.shape_cast %32 : vector<1x128x128xbf16> to vector<128x128xbf16>
    %cst_34 = arith.constant dense<0.000000e+00> : vector<16x128xf32>
    %34 = tpu.matmul %31, %33, %cst_34 {dimension_numbers = #tpu.dot_dimension_numbers<[1], [0], [0], [1], [0, 0, 1, 1], [], []>} : vector<16x128xbf16>, vector<128x128xbf16>, vector<16x128xf32> -> vector<16x128xf32>
    %35 = arith.addf %28, %34 : vector<16x128xf32>
    %c0_35 = arith.constant 0 : index
    %c1_36 = arith.constant 1 : index
    %c2_37 = arith.constant 2 : index
    %c0_38 = arith.constant 0 : index
    %36 = vector.load %arg1[%c0_35, %c1_36, %c2_37, %c0_38] : memref<1x4x10x128xbf16, #tpu.memory_space<vmem>>, vector<1x2x8x128xbf16>
    %37 = vector.shape_cast %36 : vector<1x2x8x128xbf16> to vector<2x8x128xbf16>
    %38 = vector.shape_cast %37 : vector<2x8x128xbf16> to vector<16x128xbf16>
    %c5 = arith.constant 5 : index
    %c0_39 = arith.constant 0 : index
    %c0_40 = arith.constant 0 : index
    %39 = vector.load %arg2[%c5, %c0_39, %c0_40] : memref<9x128x128xbf16, #tpu.memory_space<vmem>>, vector<1x128x128xbf16>
    %40 = vector.shape_cast %39 : vector<1x128x128xbf16> to vector<128x128xbf16>
    %cst_41 = arith.constant dense<0.000000e+00> : vector<16x128xf32>
    %41 = tpu.matmul %38, %40, %cst_41 {dimension_numbers = #tpu.dot_dimension_numbers<[1], [0], [0], [1], [0, 0, 1, 1], [], []>} : vector<16x128xbf16>, vector<128x128xbf16>, vector<16x128xf32> -> vector<16x128xf32>
    %42 = arith.addf %35, %41 : vector<16x128xf32>
    %c0_42 = arith.constant 0 : index
    %c2_43 = arith.constant 2 : index
    %c0_44 = arith.constant 0 : index
    %c0_45 = arith.constant 0 : index
    %43 = vector.load %arg1[%c0_42, %c2_43, %c0_44, %c0_45] : memref<1x4x10x128xbf16, #tpu.memory_space<vmem>>, vector<1x2x8x128xbf16>
    %44 = vector.shape_cast %43 : vector<1x2x8x128xbf16> to vector<2x8x128xbf16>
    %45 = vector.shape_cast %44 : vector<2x8x128xbf16> to vector<16x128xbf16>
    %c6 = arith.constant 6 : index
    %c0_46 = arith.constant 0 : index
    %c0_47 = arith.constant 0 : index
    %46 = vector.load %arg2[%c6, %c0_46, %c0_47] : memref<9x128x128xbf16, #tpu.memory_space<vmem>>, vector<1x128x128xbf16>
    %47 = vector.shape_cast %46 : vector<1x128x128xbf16> to vector<128x128xbf16>
    %cst_48 = arith.constant dense<0.000000e+00> : vector<16x128xf32>
    %48 = tpu.matmul %45, %47, %cst_48 {dimension_numbers = #tpu.dot_dimension_numbers<[1], [0], [0], [1], [0, 0, 1, 1], [], []>} : vector<16x128xbf16>, vector<128x128xbf16>, vector<16x128xf32> -> vector<16x128xf32>
    %49 = arith.addf %42, %48 : vector<16x128xf32>
    %c0_49 = arith.constant 0 : index
    %c2_50 = arith.constant 2 : index
    %c1_51 = arith.constant 1 : index
    %c0_52 = arith.constant 0 : index
    %50 = vector.load %arg1[%c0_49, %c2_50, %c1_51, %c0_52] : memref<1x4x10x128xbf16, #tpu.memory_space<vmem>>, vector<1x2x8x128xbf16>
    %51 = vector.shape_cast %50 : vector<1x2x8x128xbf16> to vector<2x8x128xbf16>
    %52 = vector.shape_cast %51 : vector<2x8x128xbf16> to vector<16x128xbf16>
    %c7 = arith.constant 7 : index
    %c0_53 = arith.constant 0 : index
    %c0_54 = arith.constant 0 : index
    %53 = vector.load %arg2[%c7, %c0_53, %c0_54] : memref<9x128x128xbf16, #tpu.memory_space<vmem>>, vector<1x128x128xbf16>
    %54 = vector.shape_cast %53 : vector<1x128x128xbf16> to vector<128x128xbf16>
    %cst_55 = arith.constant dense<0.000000e+00> : vector<16x128xf32>
    %55 = tpu.matmul %52, %54, %cst_55 {dimension_numbers = #tpu.dot_dimension_numbers<[1], [0], [0], [1], [0, 0, 1, 1], [], []>} : vector<16x128xbf16>, vector<128x128xbf16>, vector<16x128xf32> -> vector<16x128xf32>
    %56 = arith.addf %49, %55 : vector<16x128xf32>
    %c0_56 = arith.constant 0 : index
    %c2_57 = arith.constant 2 : index
    %c2_58 = arith.constant 2 : index
    %c0_59 = arith.constant 0 : index
    %57 = vector.load %arg1[%c0_56, %c2_57, %c2_58, %c0_59] : memref<1x4x10x128xbf16, #tpu.memory_space<vmem>>, vector<1x2x8x128xbf16>
    %58 = vector.shape_cast %57 : vector<1x2x8x128xbf16> to vector<2x8x128xbf16>
    %59 = vector.shape_cast %58 : vector<2x8x128xbf16> to vector<16x128xbf16>
    %c8 = arith.constant 8 : index
    %c0_60 = arith.constant 0 : index
    %c0_61 = arith.constant 0 : index
    %60 = vector.load %arg2[%c8, %c0_60, %c0_61] : memref<9x128x128xbf16, #tpu.memory_space<vmem>>, vector<1x128x128xbf16>
    %61 = vector.shape_cast %60 : vector<1x128x128xbf16> to vector<128x128xbf16>
    %cst_62 = arith.constant dense<0.000000e+00> : vector<16x128xf32>
    %62 = tpu.matmul %59, %61, %cst_62 {dimension_numbers = #tpu.dot_dimension_numbers<[1], [0], [0], [1], [0, 0, 1, 1], [], []>} : vector<16x128xbf16>, vector<128x128xbf16>, vector<16x128xf32> -> vector<16x128xf32>
    %63 = arith.addf %56, %62 : vector<16x128xf32>
    %c0_63 = arith.constant 0 : index
    %c0_64 = arith.constant 0 : index
    %64 = vector.load %arg3[%c0_63, %c0_64] : memref<1x128xf32, #tpu.memory_space<vmem>>, vector<1x128xf32>
    %65 = vector.broadcast %64 : vector<1x128xf32> to vector<16x128xf32>
    %66 = arith.addf %63, %65 : vector<16x128xf32>
    %cst_65 = arith.constant 0.000000e+00 : f32
    %67 = vector.broadcast %cst_65 : f32 to vector<16x128xf32>
    %68 = arith.maximumf %66, %67 : vector<16x128xf32>
    %69 = vector.shape_cast %68 : vector<16x128xf32> to vector<2x8x128xf32>
    %70 = arith.truncf %69 : vector<2x8x128xf32> to vector<2x8x128xbf16>
    %c0_66 = arith.constant 0 : index
    %c0_67 = arith.constant 0 : index
    %c0_68 = arith.constant 0 : index
    %c0_69 = arith.constant 0 : index
    %71 = vector.load %arg4[%c0_66, %c0_67, %c0_68, %c0_69] : memref<1x2x8x128xbf16, #tpu.memory_space<vmem>>, vector<1x2x8x128xbf16>
    %72 = vector.shape_cast %71 : vector<1x2x8x128xbf16> to vector<2x8x128xbf16>
    %73 = vector.shape_cast %70 : vector<2x8x128xbf16> to vector<1x2x8x128xbf16>
    tpu.vector_store %arg4[%c0_66, %c0_67, %c0_68, %c0_69], %73 {strides = array<i32>} : memref<1x2x8x128xbf16, #tpu.memory_space<vmem>>, vector<1x2x8x128xbf16>,
    return
  }
  func.func @transform_0(%arg0: i32) -> (i32, i32, i32, i32) {
    %c0_i32 = arith.constant 0 : i32
    %c0_i32_0 = arith.constant 0 : i32
    %c0_i32_1 = arith.constant 0 : i32
    %c0_i32_2 = arith.constant 0 : i32
    return %arg0, %c0_i32, %c0_i32_0, %c0_i32_1 : i32, i32, i32, i32
  }
  func.func @transform_1(%arg0: i32) -> (i32, i32, i32) {
    %c0_i32 = arith.constant 0 : i32
    %c0_i32_0 = arith.constant 0 : i32
    %c0_i32_1 = arith.constant 0 : i32
    %c0_i32_2 = arith.constant 0 : i32
    return %c0_i32, %c0_i32_0, %c0_i32_1 : i32, i32, i32
  }
  func.func @transform_2(%arg0: i32) -> (i32, i32) {
    %c0_i32 = arith.constant 0 : i32
    %c0_i32_0 = arith.constant 0 : i32
    %c0_i32_1 = arith.constant 0 : i32
    return %c0_i32, %c0_i32_0 : i32, i32
  }
  func.func @transform_3(%arg0: i32) -> (i32, i32, i32, i32) {
    %c0_i32 = arith.constant 0 : i32
    %c0_i32_0 = arith.constant 0 : i32
    %c0_i32_1 = arith.constant 0 : i32
    %c0_i32_2 = arith.constant 0 : i32
    return %arg0, %c0_i32, %c0_i32_0, %c0_i32_1 : i32, i32, i32, i32
  }
}

module attributes {stable_mosaic.version = 11 : i64} {
  func.func @_bilstm_kernel(%arg0: memref<8x2x256xf32, #tpu.memory_space<vmem>>, %arg1: memref<64x256xf32, #tpu.memory_space<vmem>>, %arg2: memref<8x2x64xf32, #tpu.memory_space<vmem>>) attributes {dimension_semantics = [], scalar_prefetch = 0 : i64, scratch_operands = 0 : i64, tpu.core_type = #tpu.core_type<tc>} {
    %c0 = arith.constant 0 : index
    %c0_0 = arith.constant 0 : index
    %0 = vector.load %arg1[%c0, %c0_0] : memref<64x256xf32, #tpu.memory_space<vmem>>, vector<64x256xf32>
    %cst = arith.constant 0.000000e+00 : f32
    %1 = vector.broadcast %cst : f32 to vector<2x64xf32>
    %cst_1 = arith.constant 0.000000e+00 : f32
    %2 = vector.broadcast %cst_1 : f32 to vector<2x64xf32>
    %c0_i32 = arith.constant 0 : i32
    %c8_i32 = arith.constant 8 : i32
    %3 = arith.addi %c0_i32, %c8_i32 : i32
    %c1_i32 = arith.constant 1 : i32
    %4:2 = scf.for %arg3 = %c0_i32 to %3 step %c1_i32 iter_args(%arg4 = %1, %arg5 = %2) -> (vector<2x64xf32>, vector<2x64xf32>)  : i32 {
      %5 = arith.index_cast %arg3 : i32 to index
      %c0_3 = arith.constant 0 : index
      %c0_4 = arith.constant 0 : index
      %6 = vector.load %arg0[%5, %c0_3, %c0_4] : memref<8x2x256xf32, #tpu.memory_space<vmem>>, vector<1x2x256xf32>
      %7 = vector.shape_cast %6 : vector<1x2x256xf32> to vector<2x256xf32>
      %cst_5 = arith.constant dense<0.000000e+00> : vector<2x256xf32>
      %8 = tpu.matmul %arg4, %0, %cst_5 {dimension_numbers = #tpu.dot_dimension_numbers<[1], [0], [0], [1], [0, 0, 1, 1], [], []>} : vector<2x64xf32>, vector<64x256xf32>, vector<2x256xf32> -> vector<2x256xf32>
      %9 = arith.addf %7, %8 : vector<2x256xf32>
      %10 = vector.extract_strided_slice %9 {offsets = [0, 0], sizes = [2, 128], strides = [1, 1]} : vector<2x256xf32> to vector<2x128xf32>
      %11 = vector.extract_strided_slice %arg5 {offsets = [0, 0], sizes = [2, 32], strides = [1, 1]} : vector<2x64xf32> to vector<2x32xf32>
      %12 = vector.extract_strided_slice %10 {offsets = [0, 0], sizes = [2, 32], strides = [1, 1]} : vector<2x128xf32> to vector<2x32xf32>
      %13 = arith.negf %12 : vector<2x32xf32>
      %14 = math.exp %13 : vector<2x32xf32>
      %cst_6 = arith.constant 1.000000e+00 : f32
      %15 = vector.broadcast %cst_6 : f32 to vector<2x32xf32>
      %16 = arith.addf %15, %14 : vector<2x32xf32>
      %17 = arith.divf %15, %16 : vector<2x32xf32>
      %18 = vector.extract_strided_slice %10 {offsets = [0, 32], sizes = [2, 32], strides = [1, 1]} : vector<2x128xf32> to vector<2x32xf32>
      %19 = arith.negf %18 : vector<2x32xf32>
      %20 = math.exp %19 : vector<2x32xf32>
      %cst_7 = arith.constant 1.000000e+00 : f32
      %21 = vector.broadcast %cst_7 : f32 to vector<2x32xf32>
      %22 = arith.addf %21, %20 : vector<2x32xf32>
      %23 = arith.divf %21, %22 : vector<2x32xf32>
      %24 = vector.extract_strided_slice %10 {offsets = [0, 64], sizes = [2, 32], strides = [1, 1]} : vector<2x128xf32> to vector<2x32xf32>
      %25 = math.tanh %24 : vector<2x32xf32>
      %26 = vector.extract_strided_slice %10 {offsets = [0, 96], sizes = [2, 32], strides = [1, 1]} : vector<2x128xf32> to vector<2x32xf32>
      %27 = arith.negf %26 : vector<2x32xf32>
      %28 = math.exp %27 : vector<2x32xf32>
      %cst_8 = arith.constant 1.000000e+00 : f32
      %29 = vector.broadcast %cst_8 : f32 to vector<2x32xf32>
      %30 = arith.addf %29, %28 : vector<2x32xf32>
      %31 = arith.divf %29, %30 : vector<2x32xf32>
      %32 = arith.mulf %23, %11 : vector<2x32xf32>
      %33 = arith.mulf %17, %25 : vector<2x32xf32>
      %34 = arith.addf %32, %33 : vector<2x32xf32>
      %35 = math.tanh %34 : vector<2x32xf32>
      %36 = arith.mulf %31, %35 : vector<2x32xf32>
      %37 = vector.extract_strided_slice %9 {offsets = [0, 128], sizes = [2, 128], strides = [1, 1]} : vector<2x256xf32> to vector<2x128xf32>
      %38 = vector.extract_strided_slice %arg5 {offsets = [0, 32], sizes = [2, 32], strides = [1, 1]} : vector<2x64xf32> to vector<2x32xf32>
      %39 = vector.extract_strided_slice %37 {offsets = [0, 0], sizes = [2, 32], strides = [1, 1]} : vector<2x128xf32> to vector<2x32xf32>
      %40 = arith.negf %39 : vector<2x32xf32>
      %41 = math.exp %40 : vector<2x32xf32>
      %cst_9 = arith.constant 1.000000e+00 : f32
      %42 = vector.broadcast %cst_9 : f32 to vector<2x32xf32>
      %43 = arith.addf %42, %41 : vector<2x32xf32>
      %44 = arith.divf %42, %43 : vector<2x32xf32>
      %45 = vector.extract_strided_slice %37 {offsets = [0, 32], sizes = [2, 32], strides = [1, 1]} : vector<2x128xf32> to vector<2x32xf32>
      %46 = arith.negf %45 : vector<2x32xf32>
      %47 = math.exp %46 : vector<2x32xf32>
      %cst_10 = arith.constant 1.000000e+00 : f32
      %48 = vector.broadcast %cst_10 : f32 to vector<2x32xf32>
      %49 = arith.addf %48, %47 : vector<2x32xf32>
      %50 = arith.divf %48, %49 : vector<2x32xf32>
      %51 = vector.extract_strided_slice %37 {offsets = [0, 64], sizes = [2, 32], strides = [1, 1]} : vector<2x128xf32> to vector<2x32xf32>
      %52 = math.tanh %51 : vector<2x32xf32>
      %53 = vector.extract_strided_slice %37 {offsets = [0, 96], sizes = [2, 32], strides = [1, 1]} : vector<2x128xf32> to vector<2x32xf32>
      %54 = arith.negf %53 : vector<2x32xf32>
      %55 = math.exp %54 : vector<2x32xf32>
      %cst_11 = arith.constant 1.000000e+00 : f32
      %56 = vector.broadcast %cst_11 : f32 to vector<2x32xf32>
      %57 = arith.addf %56, %55 : vector<2x32xf32>
      %58 = arith.divf %56, %57 : vector<2x32xf32>
      %59 = arith.mulf %50, %38 : vector<2x32xf32>
      %60 = arith.mulf %44, %52 : vector<2x32xf32>
      %61 = arith.addf %59, %60 : vector<2x32xf32>
      %62 = math.tanh %61 : vector<2x32xf32>
      %63 = arith.mulf %58, %62 : vector<2x32xf32>
      %64 = tpu.concatenate %36, %63 in 1 : vector<2x32xf32>, vector<2x32xf32> -> vector<2x64xf32>
      %65 = tpu.concatenate %34, %61 in 1 : vector<2x32xf32>, vector<2x32xf32> -> vector<2x64xf32>
      %66 = arith.index_cast %arg3 : i32 to index
      %c0_12 = arith.constant 0 : index
      %c0_13 = arith.constant 0 : index
      %67 = vector.load %arg2[%66, %c0_12, %c0_13] : memref<8x2x64xf32, #tpu.memory_space<vmem>>, vector<1x2x64xf32>
      %68 = vector.shape_cast %67 : vector<1x2x64xf32> to vector<2x64xf32>
      %69 = vector.shape_cast %64 : vector<2x64xf32> to vector<1x2x64xf32>
      tpu.vector_store %arg2[%66, %c0_12, %c0_13], %69 {strides = array<i32>} : memref<8x2x64xf32, #tpu.memory_space<vmem>>, vector<1x2x64xf32>,
      scf.yield %64, %65 : vector<2x64xf32>, vector<2x64xf32>
    }
    %c8_i32_2 = arith.constant 8 : i32
    return
  }
}

module attributes {stable_mosaic.version = 11 : i64} {
  func.func @_attn_decoder_kernel(%arg0: memref<7x2x128xf32, #tpu.memory_space<vmem>>, %arg1: memref<2x8x32xf32, #tpu.memory_space<vmem>>, %arg2: memref<2x8x32xf32, #tpu.memory_space<vmem>>, %arg3: memref<32x32xf32, #tpu.memory_space<vmem>>, %arg4: memref<1x32xf32, #tpu.memory_space<vmem>>, %arg5: memref<1x32xf32, #tpu.memory_space<vmem>>, %arg6: memref<64x128xf32, #tpu.memory_space<vmem>>, %arg7: memref<7x2x32xf32, #tpu.memory_space<vmem>>) attributes {dimension_semantics = [], scalar_prefetch = 0 : i64, scratch_operands = 0 : i64, tpu.core_type = #tpu.core_type<tc>} {
    %c0 = arith.constant 0 : index
    %c0_0 = arith.constant 0 : index
    %c0_1 = arith.constant 0 : index
    %0 = vector.load %arg1[%c0, %c0_0, %c0_1] : memref<2x8x32xf32, #tpu.memory_space<vmem>>, vector<2x8x32xf32>
    %c0_2 = arith.constant 0 : index
    %c0_3 = arith.constant 0 : index
    %c0_4 = arith.constant 0 : index
    %1 = vector.load %arg2[%c0_2, %c0_3, %c0_4] : memref<2x8x32xf32, #tpu.memory_space<vmem>>, vector<2x8x32xf32>
    %c0_5 = arith.constant 0 : index
    %c0_6 = arith.constant 0 : index
    %2 = vector.load %arg5[%c0_5, %c0_6] : memref<1x32xf32, #tpu.memory_space<vmem>>, vector<1x32xf32>
    %c0_7 = arith.constant 0 : index
    %c0_8 = arith.constant 0 : index
    %3 = vector.load %arg3[%c0_7, %c0_8] : memref<32x32xf32, #tpu.memory_space<vmem>>, vector<32x32xf32>
    %c0_9 = arith.constant 0 : index
    %c0_10 = arith.constant 0 : index
    %4 = vector.load %arg4[%c0_9, %c0_10] : memref<1x32xf32, #tpu.memory_space<vmem>>, vector<1x32xf32>
    %c0_11 = arith.constant 0 : index
    %c0_12 = arith.constant 0 : index
    %5 = vector.load %arg6[%c0_11, %c0_12] : memref<64x128xf32, #tpu.memory_space<vmem>>, vector<64x128xf32>
    %cst = arith.constant 0.000000e+00 : f32
    %6 = vector.broadcast %cst : f32 to vector<2x32xf32>
    %cst_13 = arith.constant 0.000000e+00 : f32
    %7 = vector.broadcast %cst_13 : f32 to vector<2x32xf32>
    %c0_i32 = arith.constant 0 : i32
    %c7_i32 = arith.constant 7 : i32
    %8 = arith.addi %c0_i32, %c7_i32 : i32
    %c1_i32 = arith.constant 1 : i32
    %9:2 = scf.for %arg8 = %c0_i32 to %8 step %c1_i32 iter_args(%arg9 = %6, %arg10 = %7) -> (vector<2x32xf32>, vector<2x32xf32>)  : i32 {
      %cst_15 = arith.constant dense<0.000000e+00> : vector<2x32xf32>
      %10 = tpu.matmul %arg9, %3, %cst_15 {dimension_numbers = #tpu.dot_dimension_numbers<[1], [0], [0], [1], [0, 0, 1, 1], [], []>} : vector<2x32xf32>, vector<32x32xf32>, vector<2x32xf32> -> vector<2x32xf32>
      %11 = vector.broadcast %4 : vector<1x32xf32> to vector<2x32xf32>
      %12 = arith.addf %10, %11 : vector<2x32xf32>
      %13 = vector.shape_cast %12 : vector<2x32xf32> to vector<2x1x32xf32>
      %14 = vector.broadcast %13 : vector<2x1x32xf32> to vector<2x8x32xf32>
      %15 = arith.addf %0, %14 : vector<2x8x32xf32>
      %16 = math.tanh %15 : vector<2x8x32xf32>
      %17 = vector.shape_cast %2 : vector<1x32xf32> to vector<1x1x32xf32>
      %18 = vector.broadcast %17 : vector<1x1x32xf32> to vector<2x8x32xf32>
      %19 = arith.mulf %16, %18 : vector<2x8x32xf32>
      %cst_16 = arith.constant dense<0.000000e+00> : vector<2x8xf32>
      %20 = vector.multi_reduction <add>, %19, %cst_16 [2] : vector<2x8x32xf32> to vector<2x8xf32>
      %cst_17 = arith.constant dense<0xFF800000> : vector<2xf32>
      %21 = vector.multi_reduction <maximumf>, %20, %cst_17 [1] : vector<2x8xf32> to vector<2xf32>
      %22 = vector.shape_cast %21 : vector<2xf32> to vector<2x1xf32>
      %23 = vector.broadcast %22 : vector<2x1xf32> to vector<2x8xf32>
      %24 = arith.subf %20, %23 : vector<2x8xf32>
      %25 = math.exp %24 : vector<2x8xf32>
      %cst_18 = arith.constant dense<0.000000e+00> : vector<2xf32>
      %26 = vector.multi_reduction <add>, %25, %cst_18 [1] : vector<2x8xf32> to vector<2xf32>
      %27 = vector.shape_cast %26 : vector<2xf32> to vector<2x1xf32>
      %28 = tpu.reciprocal %27 {approx = true} : vector<2x1xf32> -> vector<2x1xf32>
      %29 = vector.broadcast %28 : vector<2x1xf32> to vector<2x8xf32>
      %30 = arith.mulf %25, %29 : vector<2x8xf32>
      %31 = vector.shape_cast %30 : vector<2x8xf32> to vector<2x8x1xf32>
      %32 = vector.broadcast %31 : vector<2x8x1xf32> to vector<2x8x32xf32>
      %33 = arith.mulf %32, %1 : vector<2x8x32xf32>
      %cst_19 = arith.constant dense<0.000000e+00> : vector<2x32xf32>
      %34 = vector.multi_reduction <add>, %33, %cst_19 [1] : vector<2x8x32xf32> to vector<2x32xf32>
      %35 = tpu.concatenate %34, %arg9 in 1 : vector<2x32xf32>, vector<2x32xf32> -> vector<2x64xf32>
      %cst_20 = arith.constant dense<0.000000e+00> : vector<2x128xf32>
      %36 = tpu.matmul %35, %5, %cst_20 {dimension_numbers = #tpu.dot_dimension_numbers<[1], [0], [0], [1], [0, 0, 1, 1], [], []>} : vector<2x64xf32>, vector<64x128xf32>, vector<2x128xf32> -> vector<2x128xf32>
      %37 = arith.index_cast %arg8 : i32 to index
      %c0_21 = arith.constant 0 : index
      %c0_22 = arith.constant 0 : index
      %38 = vector.load %arg0[%37, %c0_21, %c0_22] : memref<7x2x128xf32, #tpu.memory_space<vmem>>, vector<1x2x128xf32>
      %39 = vector.shape_cast %38 : vector<1x2x128xf32> to vector<2x128xf32>
      %40 = arith.addf %36, %39 : vector<2x128xf32>
      %41 = vector.extract_strided_slice %40 {offsets = [0, 0], sizes = [2, 32], strides = [1, 1]} : vector<2x128xf32> to vector<2x32xf32>
      %42 = arith.negf %41 : vector<2x32xf32>
      %43 = math.exp %42 : vector<2x32xf32>
      %cst_23 = arith.constant 1.000000e+00 : f32
      %44 = vector.broadcast %cst_23 : f32 to vector<2x32xf32>
      %45 = arith.addf %44, %43 : vector<2x32xf32>
      %46 = arith.divf %44, %45 : vector<2x32xf32>
      %47 = vector.extract_strided_slice %40 {offsets = [0, 32], sizes = [2, 32], strides = [1, 1]} : vector<2x128xf32> to vector<2x32xf32>
      %48 = arith.negf %47 : vector<2x32xf32>
      %49 = math.exp %48 : vector<2x32xf32>
      %cst_24 = arith.constant 1.000000e+00 : f32
      %50 = vector.broadcast %cst_24 : f32 to vector<2x32xf32>
      %51 = arith.addf %50, %49 : vector<2x32xf32>
      %52 = arith.divf %50, %51 : vector<2x32xf32>
      %53 = vector.extract_strided_slice %40 {offsets = [0, 64], sizes = [2, 32], strides = [1, 1]} : vector<2x128xf32> to vector<2x32xf32>
      %54 = math.tanh %53 : vector<2x32xf32>
      %55 = vector.extract_strided_slice %40 {offsets = [0, 96], sizes = [2, 32], strides = [1, 1]} : vector<2x128xf32> to vector<2x32xf32>
      %56 = arith.negf %55 : vector<2x32xf32>
      %57 = math.exp %56 : vector<2x32xf32>
      %cst_25 = arith.constant 1.000000e+00 : f32
      %58 = vector.broadcast %cst_25 : f32 to vector<2x32xf32>
      %59 = arith.addf %58, %57 : vector<2x32xf32>
      %60 = arith.divf %58, %59 : vector<2x32xf32>
      %61 = arith.mulf %52, %arg10 : vector<2x32xf32>
      %62 = arith.mulf %46, %54 : vector<2x32xf32>
      %63 = arith.addf %61, %62 : vector<2x32xf32>
      %64 = math.tanh %63 : vector<2x32xf32>
      %65 = arith.mulf %60, %64 : vector<2x32xf32>
      %66 = arith.index_cast %arg8 : i32 to index
      %c0_26 = arith.constant 0 : index
      %c0_27 = arith.constant 0 : index
      %67 = vector.load %arg7[%66, %c0_26, %c0_27] : memref<7x2x32xf32, #tpu.memory_space<vmem>>, vector<1x2x32xf32>
      %68 = vector.shape_cast %67 : vector<1x2x32xf32> to vector<2x32xf32>
      %69 = vector.shape_cast %65 : vector<2x32xf32> to vector<1x2x32xf32>
      tpu.vector_store %arg7[%66, %c0_26, %c0_27], %69 {strides = array<i32>} : memref<7x2x32xf32, #tpu.memory_space<vmem>>, vector<1x2x32xf32>,
      scf.yield %65, %63 : vector<2x32xf32>, vector<2x32xf32>
    }
    %c7_i32_14 = arith.constant 7 : i32
    return
  }
}

</mosaic_0001>

<llo_original>
// kernel: model_forward.5
$region0: #{model_forward.5}
  #allocation0 [shape = 'u32[]', space=smem, size = 0x4, offset = 0x4, fixed_abs, tag = 'smem constant byte address 0x4 - core index']
  #allocation1 [shape = 'u32[72,128]{1,0:T(1,128)}', space=vmem, size = 0x9000, scoped, tag = 'internal scratch']
  %s0 = inlined_call_operand.vmem [shape: bf16[2,6,10,32], index: 0, kind: input, shape index: {}]
  %s1 = inlined_call_operand.vmem [shape: bf16[9,32,128], index: 1, kind: input, shape index: {}]
  %s2 = inlined_call_operand.vmem [shape: f32[1,128], index: 2, kind: input, shape index: {}]
  %s3 = inlined_call_operand.vmem [shape: bf16[2,4,8,128], index: 3, kind: output, shape index: {}]
  %s4 = sld [smem:[#allocation0]]
  $region45: #{model_forward.5} parent=0
    _
  %s6 = ssub.s32 1, %s4
  %s7 = scalar_select 0, %s6, %s4
  loop: start=0, step=1, limit=4
  $region2: #{model_forward.5} parent=0 // loop_pre_header
    _
  $region3: #{model_forward.5} parent=0 // loop_header
    %s9 = sphi 0, %s13
    %p10 = scmp.ge.s32.totalorder %s9, 4
    %s19 = sphi 0, %s21
    %s22 = sphi 0, %s19
    %s23 = sphi 0, %s22
    %s39 = sphi 0, %s23
    %s43 = sphi 0, %s43
    %s45 = sphi 0, %s43
    %s46 = sphi 0, %s45
    %s60 = sphi 0, %s46
    %s64 = sphi 0, %s64
    %s66 = sphi 0, %s64
    %s67 = sphi 0, %s66
    %s81 = sphi 0, %s67
    %s87 = sphi 0, %s89
    %s90 = sphi 0, %s87
    %s91 = sphi 0, %s90
    %s107 = sphi 0, %s91
  $region4: #{model_forward.5} parent=0 // loop_header_branch
    %12 = sbr.rel (%p10) target = $region8
  $region5: #{model_forward.5} parent=0 // loop_body
    %s14 = ssub.s32 %s9, 1
    %s15 = ssub.s32 %s9, 2
    %s16 = sadd.s32 %s9, 1
    %s17 = ssub.s32 %s9, %s16
    %p18 = scmp.eq.s32.totalorder %s17, 0
    %s20 = sadd.s32 %s19, 1
    %s21 = scalar_select %p18, %s19, %s20
    %p24 = pneg %p18
    %p25 = scmp.eq.s32.totalorder %s9, 1
    %p26 = por %p24, %p25
    %p27 = scmp.ne.s32.totalorder %s19, %s22
    %p28 = scmp.eq.s32.totalorder %s9, 0
    %p29 = por %p27, %p28
    %p30 = scmp.ne.s32.totalorder %s19, %s22
    %p31 = scmp.eq.s32.totalorder %s14, 1
    %p32 = por %p30, %p31
    %p33 = scmp.ne.s32.totalorder %s22, %s23
    %p34 = scmp.eq.s32.totalorder %s14, 0
    %p35 = por %p33, %p34
    %p36 = scmp.ne.s32.totalorder %s22, %s23
    %p37 = scmp.eq.s32.totalorder %s15, 1
    %p38 = por %p36, %p37
    %p40 = scmp.ne.s32.totalorder %s23, %s39
    %p41 = scmp.eq.s32.totalorder %s15, 0
    %p42 = por %p40, %p41
    %s44 = sadd.s32 %s43, 1
    %p47 = scmp.eq.s32.totalorder %s9, 1
    %p48 = scmp.ne.s32.totalorder %s43, %s45
    %p49 = scmp.eq.s32.totalorder %s9, 0
    %p50 = por %p48, %p49
    %p51 = scmp.ne.s32.totalorder %s43, %s45
    %p52 = scmp.eq.s32.totalorder %s14, 1
    %p53 = por %p51, %p52
    %p54 = scmp.ne.s32.totalorder %s45, %s46
    %p55 = scmp.eq.s32.totalorder %s14, 0
    %p56 = por %p54, %p55
    %p57 = scmp.ne.s32.totalorder %s45, %s46
    %p58 = scmp.eq.s32.totalorder %s15, 1
    %p59 = por %p57, %p58
    %p61 = scmp.ne.s32.totalorder %s46, %s60
    %p62 = scmp.eq.s32.totalorder %s15, 0
    %p63 = por %p61, %p62
    %s65 = sadd.s32 %s64, 1
    %p68 = scmp.eq.s32.totalorder %s9, 1
    %p69 = scmp.ne.s32.totalorder %s64, %s66
    %p70 = scmp.eq.s32.totalorder %s9, 0
    %p71 = por %p69, %p70
    %p72 = scmp.ne.s32.totalorder %s64, %s66
    %p73 = scmp.eq.s32.totalorder %s14, 1
    %p74 = por %p72, %p73
    %p75 = scmp.ne.s32.totalorder %s66, %s67
    %p76 = scmp.eq.s32.totalorder %s14, 0
    %p77 = por %p75, %p76
    %p78 = scmp.ne.s32.totalorder %s66, %s67
    %p79 = scmp.eq.s32.totalorder %s15, 1
    %p80 = por %p78, %p79
    %p82 = scmp.ne.s32.totalorder %s67, %s81
    %p83 = scmp.eq.s32.totalorder %s15, 0
    %p84 = por %p82, %p83
    %s85 = ssub.s32 %s9, %s16
    %p86 = scmp.eq.s32.totalorder %s85, 0
    %s88 = sadd.s32 %s87, 1
    %s89 = scalar_select %p86, %s87, %s88
    %p92 = pneg %p86
    %p93 = scmp.eq.s32.totalorder %s9, 1
    %p94 = por %p92, %p93
    %p95 = scmp.ne.s32.totalorder %s87, %s90
    %p96 = scmp.eq.s32.totalorder %s9, 0
    %p97 = por %p95, %p96
    %p98 = scmp.ne.s32.totalorder %s87, %s90
    %p99 = scmp.eq.s32.totalorder %s14, 1
    %p100 = por %p98, %p99
    %p101 = scmp.ne.s32.totalorder %s90, %s91
    %p102 = scmp.eq.s32.totalorder %s14, 0
    %p103 = por %p101, %p102
    %p104 = scmp.ne.s32.totalorder %s90, %s91
    %p105 = scmp.eq.s32.totalorder %s15, 1
    %p106 = por %p104, %p105
    %p108 = scmp.ne.s32.totalorder %s91, %s107
    %p109 = scmp.eq.s32.totalorder %s15, 0
    %p110 = por %p108, %p109
    %p111 = scmp.le.s32.totalorder 1, %s9
    %p112 = scmp.lt.s32.totalorder %s9, 3
    %p113 = pnand %p111, %p112
    %p114 = pneg %p113
    // Predicated region
    $region9: #{model_forward.5} parent=5 // pred_check
      _
    $region10: #{model_forward.5} parent=5 // pred_check_branch
      %116 = sbr.rel (%p113) target = $region12
    $region11: #{model_forward.5} parent=5 // pred_region
      %s117 = ssub.s32 %s9, 1
      // Predicated region
      $region13: #{model_forward.5} parent=11 // pred_check
        %p118 = pneg %p56
      $region14: #{model_forward.5} parent=11 // pred_check_branch
        %120 = sbr.rel (%p118) target = $region16
      $region15: #{model_forward.5} parent=11 // pred_region
        _
      $region16: #{model_forward.5} parent=11 // pred_fallthru
        _
      // Predicated region
      $region17: #{model_forward.5} parent=11 // pred_check
        %p121 = pneg %p77
      $region18: #{model_forward.5} parent=11 // pred_check_branch
        %123 = sbr.rel (%p121) target = $region20
      $region19: #{model_forward.5} parent=11 // pred_region
        _
      $region20: #{model_forward.5} parent=11 // pred_fallthru
        _
    $region12: #{model_forward.5} parent=5 // pred_fallthru
      _
    %p124 = scmp.lt.s32.totalorder %s9, 2
    // Predicated region
    $region21: #{model_forward.5} parent=5 // pred_check
      %p125 = pneg %p124
    $region22: #{model_forward.5} parent=5 // pred_check_branch
      %127 = sbr.rel (%p125) target = $region24
    $region23: #{model_forward.5} parent=5 // pred_region
      // Predicated region
      $region25: #{model_forward.5} parent=23 // pred_check
        %p128 = pneg %p29
      $region26: #{model_forward.5} parent=23 // pred_check_branch
        %130 = sbr.rel (%p128) target = $region28
      $region27: #{model_forward.5} parent=23 // pred_region
        %p131 = scmp.lt.s32.totalorder %s9, 1
        %s132 = scalar_select %p131, %s9, 1
        %s133 = smul.addr %s132, 12
        %s134 = smul.addr %s133, 4
        %s135 = scalar_lea.vmem %s0, %s134
      $region28: #{model_forward.5} parent=23 // pred_fallthru
        _
    $region24: #{model_forward.5} parent=5 // pred_fallthru
      _
    %p136 = scmp.le.s32.totalorder 1, %s9
    %p137 = scmp.lt.s32.totalorder %s9, 3
    %p138 = pnand %p136, %p137
    %p139 = pneg %p138
    // Predicated region
    $region29: #{model_forward.5} parent=5 // pred_check
      _
    $region30: #{model_forward.5} parent=5 // pred_check_branch
      %141 = sbr.rel (%p138) target = $region32
    $region31: #{model_forward.5} parent=5 // pred_region
      %s142 = ssub.s32 %s9, 1
      %p143 = scmp.lt.s32.totalorder %s14, 1
      %s144 = scalar_select %p143, %s14, 1
      %s145 = smul.addr %s144, 12
      %s146 = smul.addr %s145, 4
      %s147 = scalar_lea.vmem %s0, %s146
      %p148 = pneg %p35
      %p149 = pneg %p32
      %p150 = pneg %p56
      %p151 = pneg %p53
      %p152 = pneg %p77
      %p153 = pneg %p74
      %p154 = pneg %p103
      %p155 = pneg %p100
      %p156 = scmp.lt.s32.totalorder %s14, 1
      %s157 = scalar_select %p156, %s14, 1
      %s158 = smul.addr %s157, 4
      %s159 = smul.addr %s158, 4
      %s160 = scalar_lea.vmem %s3, %s159
      %p161 = scmp.lt.s32.totalorder %s14, 1
      %s162 = scalar_select %p161, %s14, 1
      %s163 = smul.addr %s162, 12
      %s164 = smul.addr %s163, 4
      %s165 = scalar_lea.vmem %s0, %s164
      %p166 = scmp.lt.s32.totalorder %s14, 1
      %s167 = scalar_select %p166, %s14, 1
      %s168 = smul.addr %s167, 4
      %s169 = smul.addr %s168, 4
      %s170 = scalar_lea.vmem %s3, %s169
      %v172 = vld [vmem:[%s165] sm:$0xf]
      %v173 = vld [vmem:[%s165 + $0x8] sm:$0xf]
      %v174 = vld [vmem:[%s165 + $0x10] sm:$0xf]
      %v175 = vld [vmem:[%s165 + $0x18] sm:$0xf]
      %v176 = vld [vmem:[%s1] sm:$0xf]
      %v177 = vld [vmem:[%s1 + $0x4] sm:$0xf]
      %v178 = vld [vmem:[%s1 + $0x8] sm:$0xf]
      %v179 = vld [vmem:[%s1 + $0xc] sm:$0xf]
      %v180 = vld [vmem:[%s165 + $0x4] sm:$0x1]
      %v181 = vld [vmem:[%s165 + $0xc] sm:$0x1]
      %v182 = vld [vmem:[%s165 + $0x14] sm:$0x1]
      %v183 = vld [vmem:[%s165 + $0x1c] sm:$0x1]
      %vm184 = vsmask.f32 3328
      %vm185 = vsmask.f32 7440
      %vm186 = vmor %vm184, %vm185
      %v188 = vshrl.u32 %v172, 16
      %v190 = vrot.slane %v188, 4
      %v191 = vshll.u32 %v172, 16
      %v193 = vrot.slane %v191, 5
      %v194 = vor.u32 %v190, %v193
      %v195 = vrot.slane %v194, 4
      %v197 = vshll.u32 %v180, 16
      %v199 = vrot.slane %v197, 5
      %v200 = vsel %vm186, %v195, %v199
      %v202 = vshrl.u32 %v173, 16
      %v204 = vrot.slane %v202, 4
      %v205 = vshll.u32 %v173, 16
      %v207 = vrot.slane %v205, 5
      %v208 = vor.u32 %v204, %v207
      %v209 = vrot.slane %v208, 4
      %v211 = vshll.u32 %v181, 16
      %v213 = vrot.slane %v211, 5
      %v214 = vsel %vm186, %v209, %v213
      %v216 = vshrl.u32 %v174, 16
      %v218 = vrot.slane %v216, 4
      %v219 = vshll.u32 %v174, 16
      %v221 = vrot.slane %v219, 5
      %v222 = vor.u32 %v218, %v221
      %v223 = vrot.slane %v222, 4
      %v225 = vshll.u32 %v182, 16
      %v227 = vrot.slane %v225, 5
      %v228 = vsel %vm186, %v223, %v227
      %v230 = vshrl.u32 %v175, 16
      %v232 = vrot.slane %v230, 4
      %v233 = vshll.u32 %v175, 16
      %v235 = vrot.slane %v233, 5
      %v236 = vor.u32 %v232, %v235
      %v237 = vrot.slane %v236, 4
      %v239 = vshll.u32 %v183, 16
      %v241 = vrot.slane %v239, 5
      %v242 = vsel %vm186, %v237, %v241
      %s243 = scalar_lea.vmem %s1, 16
      %v244 = vld [vmem:[%s243] sm:$0xf]
      %v245 = vld [vmem:[%s243 + $0x4] sm:$0xf]
      %v246 = vld [vmem:[%s243 + $0x8] sm:$0xf]
      %v247 = vld [vmem:[%s243 + $0xc] sm:$0xf]
      %v248 = vunpack.c.l.b16 %v200
      %v249 = vunpack.c.l.b16 %v214
      %v250 = vunpack.c.l.b16 %v228
      %v251 = vunpack.c.l.b16 %v242
      %v252 = vpack.c.b16 %v249, %v248
      %v253 = vpack.c.b16 %v251, %v250
      %v258 = vunpack.c.l.b16 %v244
      %v259 = vunpack.c.l.b16 %v245
      %v260 = vunpack.c.l.b16 %v246
      %v261 = vunpack.c.l.b16 %v247
      %v262 = vpack.c.b16 %v259, %v258
      %v263 = vpack.c.b16 %v261, %v260
      %vm266 = vcmask 261120
      %v268 = vsel %vm266, %v252, 0
      %v271 = vsel %vm266, %v253, 0
      %273 = vmatpush.bf16.msra.mxu0 0
      %274 = vmatpush.bf16.msra.mxu0 0
      %275 = vmatpush.bf16.msra.mxu0 0
      %276 = vmatpush.bf16.msra.mxu0 0
      %277 = vmatpush.bf16.msra.mxu0 0
      %278 = vmatpush.bf16.msra.mxu0 0
      %279 = vmatpush.bf16.msra.mxu0 %v263
      %280 = vmatpush.bf16.msra.mxu0 %v262
      %281 = vmatmul.bf16.gmra.mxu0 %v268
      %v282 = vpop.f32.mrf.mxu0
      %v283 = vadd.f32 0.0, %v282
      %v284 = vpop.f32.mrf.mxu0
      %v285 = vadd.f32 0.0, %v284
      %286 = vmatmul.bf16.gmra.mxu0 %v271
      %v287 = vpop.f32.mrf.mxu0
      %v288 = vadd.f32 0.0, %v287
      %v289 = vpop.f32.mrf.mxu0
      %v290 = vadd.f32 0.0, %v289
      %291 = vdwg.mxu0
      %v296 = vunpack.c.l.b16 %v172
      %v297 = vunpack.c.l.b16 %v173
      %v298 = vunpack.c.l.b16 %v174
      %v299 = vunpack.c.l.b16 %v175
      %v300 = vpack.c.b16 %v297, %v296
      %v301 = vpack.c.b16 %v299, %v298
      %v306 = vunpack.c.l.b16 %v176
      %v307 = vunpack.c.l.b16 %v177
      %v308 = vunpack.c.l.b16 %v178
      %v309 = vunpack.c.l.b16 %v179
      %v310 = vpack.c.b16 %v307, %v306
      %v311 = vpack.c.b16 %v309, %v308
      %v315 = vsel %vm266, %v300, 0
      %v318 = vsel %vm266, %v301, 0
      %320 = vmatpush.bf16.msra.mxu0 0
      %321 = vmatpush.bf16.msra.mxu0 0
      %322 = vmatpush.bf16.msra.mxu0 0
      %323 = vmatpush.bf16.msra.mxu0 0
      %324 = vmatpush.bf16.msra.mxu0 0
      %325 = vmatpush.bf16.msra.mxu0 0
      %326 = vmatpush.bf16.msra.mxu0 %v311
      %327 = vmatpush.bf16.msra.mxu0 %v310
      %328 = vmatmul.bf16.gmra.mxu0 %v315
      %v329 = vpop.f32.mrf.mxu0
      %v330 = vadd.f32 %v283, %v329
      %v331 = vpop.f32.mrf.mxu0
      %v332 = vadd.f32 %v285, %v331
      %333 = vmatmul.bf16.gmra.mxu0 %v318
      %v334 = vpop.f32.mrf.mxu0
      %v335 = vadd.f32 %v288, %v334
      %v336 = vpop.f32.mrf.mxu0
      %v337 = vadd.f32 %v290, %v336
      %338 = vdwg.mxu0
      %v339 = vld [vmem:[%s165] sm:$0xe]
      %v340 = vld [vmem:[%s165 + $0x8] sm:$0xe]
      %v341 = vld [vmem:[%s165 + $0x10] sm:$0xe]
      %v342 = vld [vmem:[%s165 + $0x18] sm:$0xe]
      %vm351 = vcmask 1042432
      %vm352 = vcmask 1046532
      %vm353 = vmor %vm351, %vm352
      %v354 = vrot.slane %v339, 5
      %v355 = vrot.slane %v354, 4
      %v356 = vrot.slane %v180, 5
      %v357 = vsel %vm353, %v355, %v356
      %v358 = vrot.slane %v340, 5
      %v359 = vrot.slane %v358, 4
      %v360 = vrot.slane %v181, 5
      %v361 = vsel %vm353, %v359, %v360
      %v362 = vrot.slane %v341, 5
      %v363 = vrot.slane %v362, 4
      %v364 = vrot.slane %v182, 5
      %v365 = vsel %vm353, %v363, %v364
      %v366 = vrot.slane %v342, 5
      %v367 = vrot.slane %v366, 4
      %v368 = vrot.slane %v183, 5
      %v369 = vsel %vm353, %v367, %v368
      %s370 = scalar_lea.vmem %s1, 32
      %v371 = vld [vmem:[%s370] sm:$0xf]
      %v372 = vld [vmem:[%s370 + $0x4] sm:$0xf]
      %v373 = vld [vmem:[%s370 + $0x8] sm:$0xf]
      %v374 = vld [vmem:[%s370 + $0xc] sm:$0xf]
      %v375 = vunpack.c.l.b16 %v357
      %v376 = vunpack.c.l.b16 %v361
      %v377 = vunpack.c.l.b16 %v365
      %v378 = vunpack.c.l.b16 %v369
      %v379 = vpack.c.b16 %v376, %v375
      %v380 = vpack.c.b16 %v378, %v377
      %v385 = vunpack.c.l.b16 %v371
      %v386 = vunpack.c.l.b16 %v372
      %v387 = vunpack.c.l.b16 %v373
      %v388 = vunpack.c.l.b16 %v374
      %v389 = vpack.c.b16 %v386, %v385
      %v390 = vpack.c.b16 %v388, %v387
      %v394 = vsel %vm266, %v379, 0
      %v397 = vsel %vm266, %v380, 0
      %399 = vmatpush.bf16.msra.mxu0 0
      %400 = vmatpush.bf16.msra.mxu0 0
      %401 = vmatpush.bf16.msra.mxu0 0
      %402 = vmatpush.bf16.msra.mxu0 0
      %403 = vmatpush.bf16.msra.mxu0 0
      %404 = vmatpush.bf16.msra.mxu0 0
      %405 = vmatpush.bf16.msra.mxu0 %v390
      %406 = vmatpush.bf16.msra.mxu0 %v389
      %407 = vmatmul.bf16.gmra.mxu0 %v394
      %v408 = vpop.f32.mrf.mxu0
      %v409 = vadd.f32 0.0, %v408
      %v410 = vpop.f32.mrf.mxu0
      %v411 = vadd.f32 0.0, %v410
      %412 = vmatmul.bf16.gmra.mxu0 %v397
      %v413 = vpop.f32.mrf.mxu0
      %v414 = vadd.f32 0.0, %v413
      %v415 = vpop.f32.mrf.mxu0
      %v416 = vadd.f32 0.0, %v415
      %417 = vdwg.mxu0
      %v418 = vadd.f32 %v330, %v409
      %v419 = vadd.f32 %v332, %v411
      %v420 = vadd.f32 %v335, %v414
      %v421 = vadd.f32 %v337, %v416
      %s422 = scalar_lea.vmem %s165, 8
      %v423 = vld [vmem:[%s422] sm:$0xf]
      %v424 = vld [vmem:[%s422 + $0x8] sm:$0xf]
      %v425 = vld [vmem:[%s422 + $0x10] sm:$0xf]
      %v426 = vld [vmem:[%s422 + $0x18] sm:$0xf]
      %s427 = scalar_lea.vmem %s1, 48
      %v428 = vld [vmem:[%s427] sm:$0xf]
      %v429 = vld [vmem:[%s427 + $0x4] sm:$0xf]
      %v430 = vld [vmem:[%s427 + $0x8] sm:$0xf]
      %v431 = vld [vmem:[%s427 + $0xc] sm:$0xf]
      %v436 = vunpack.c.l.b16 %v423
      %v437 = vunpack.c.l.b16 %v424
      %v438 = vunpack.c.l.b16 %v425
      %v439 = vunpack.c.l.b16 %v426
      %v440 = vpack.c.b16 %v437, %v436
      %v441 = vpack.c.b16 %v439, %v438
      %v446 = vunpack.c.l.b16 %v428
      %v447 = vunpack.c.l.b16 %v429
      %v448 = vunpack.c.l.b16 %v430
      %v449 = vunpack.c.l.b16 %v431
      %v450 = vpack.c.b16 %v447, %v446
      %v451 = vpack.c.b16 %v449, %v448
      %v455 = vsel %vm266, %v440, 0
      %v458 = vsel %vm266, %v441, 0
      %460 = vmatpush.bf16.msra.mxu0 0
      %461 = vmatpush.bf16.msra.mxu0 0
      %462 = vmatpush.bf16.msra.mxu0 0
      %463 = vmatpush.bf16.msra.mxu0 0
      %464 = vmatpush.bf16.msra.mxu0 0
      %465 = vmatpush.bf16.msra.mxu0 0
      %466 = vmatpush.bf16.msra.mxu0 %v451
      %467 = vmatpush.bf16.msra.mxu0 %v450
      %468 = vmatmul.bf16.gmra.mxu0 %v455
      %v469 = vpop.f32.mrf.mxu0
      %v470 = vadd.f32 0.0, %v469
      %v471 = vpop.f32.mrf.mxu0
      %v472 = vadd.f32 0.0, %v471
      %473 = vmatmul.bf16.gmra.mxu0 %v458
      %v474 = vpop.f32.mrf.mxu0
      %v475 = vadd.f32 0.0, %v474
      %v476 = vpop.f32.mrf.mxu0
      %v477 = vadd.f32 0.0, %v476
      %478 = vdwg.mxu0
      %v479 = vadd.f32 %v418, %v470
      %v480 = vadd.f32 %v419, %v472
      %v481 = vadd.f32 %v420, %v475
      %v482 = vadd.f32 %v421, %v477
      %v483 = vld [vmem:[%s422] sm:$0xf]
      %v484 = vld [vmem:[%s422 + $0x4] sm:$0x1]
      %v485 = vld [vmem:[%s422 + $0x8] sm:$0xf]
      %v486 = vld [vmem:[%s422 + $0xc] sm:$0x1]
      %v487 = vld [vmem:[%s422 + $0x10] sm:$0xf]
      %v488 = vld [vmem:[%s422 + $0x14] sm:$0x1]
      %v489 = vld [vmem:[%s422 + $0x18] sm:$0xf]
      %v490 = vld [vmem:[%s422 + $0x1c] sm:$0x1]
      %v492 = vshrl.u32 %v483, 16
      %v494 = vrot.slane %v492, 4
      %v495 = vshll.u32 %v483, 16
      %v497 = vrot.slane %v495, 5
      %v498 = vor.u32 %v494, %v497
      %v499 = vrot.slane %v498, 4
      %v501 = vshll.u32 %v484, 16
      %v503 = vrot.slane %v501, 5
      %v504 = vsel %vm186, %v499, %v503
      %v506 = vshrl.u32 %v485, 16
      %v508 = vrot.slane %v506, 4
      %v509 = vshll.u32 %v485, 16
      %v511 = vrot.slane %v509, 5
      %v512 = vor.u32 %v508, %v511
      %v513 = vrot.slane %v512, 4
      %v515 = vshll.u32 %v486, 16
      %v517 = vrot.slane %v515, 5
      %v518 = vsel %vm186, %v513, %v517
      %v520 = vshrl.u32 %v487, 16
      %v522 = vrot.slane %v520, 4
      %v523 = vshll.u32 %v487, 16
      %v525 = vrot.slane %v523, 5
      %v526 = vor.u32 %v522, %v525
      %v527 = vrot.slane %v526, 4
      %v529 = vshll.u32 %v488, 16
      %v531 = vrot.slane %v529, 5
      %v532 = vsel %vm186, %v527, %v531
      %v534 = vshrl.u32 %v489, 16
      %v536 = vrot.slane %v534, 4
      %v537 = vshll.u32 %v489, 16
      %v539 = vrot.slane %v537, 5
      %v540 = vor.u32 %v536, %v539
      %v541 = vrot.slane %v540, 4
      %v543 = vshll.u32 %v490, 16
      %v545 = vrot.slane %v543, 5
      %v546 = vsel %vm186, %v541, %v545
      %s547 = scalar_lea.vmem %s1, 64
      %v548 = vld [vmem:[%s547] sm:$0xf]
      %v549 = vld [vmem:[%s547 + $0x4] sm:$0xf]
      %v550 = vld [vmem:[%s547 + $0x8] sm:$0xf]
      %v551 = vld [vmem:[%s547 + $0xc] sm:$0xf]
      %v552 = vunpack.c.l.b16 %v504
      %v553 = vunpack.c.l.b16 %v518
      %v554 = vunpack.c.l.b16 %v532
      %v555 = vunpack.c.l.b16 %v546
      %v556 = vpack.c.b16 %v553, %v552
      %v557 = vpack.c.b16 %v555, %v554
      %v562 = vunpack.c.l.b16 %v548
      %v563 = vunpack.c.l.b16 %v549
      %v564 = vunpack.c.l.b16 %v550
      %v565 = vunpack.c.l.b16 %v551
      %v566 = vpack.c.b16 %v563, %v562
      %v567 = vpack.c.b16 %v565, %v564
      %v571 = vsel %vm266, %v556, 0
      %v574 = vsel %vm266, %v557, 0
      %576 = vmatpush.bf16.msra.mxu0 0
      %577 = vmatpush.bf16.msra.mxu0 0
      %578 = vmatpush.bf16.msra.mxu0 0
      %579 = vmatpush.bf16.msra.mxu0 0
      %580 = vmatpush.bf16.msra.mxu0 0
      %581 = vmatpush.bf16.msra.mxu0 0
      %582 = vmatpush.bf16.msra.mxu0 %v567
      %583 = vmatpush.bf16.msra.mxu0 %v566
      %584 = vmatmul.bf16.gmra.mxu0 %v571
      %v585 = vpop.f32.mrf.mxu0
      %v586 = vadd.f32 0.0, %v585
      %v587 = vpop.f32.mrf.mxu0
      %v588 = vadd.f32 0.0, %v587
      %589 = vmatmul.bf16.gmra.mxu0 %v574
      %v590 = vpop.f32.mrf.mxu0
      %v591 = vadd.f32 0.0, %v590
      %v592 = vpop.f32.mrf.mxu0
      %v593 = vadd.f32 0.0, %v592
      %594 = vdwg.mxu0
      %v595 = vadd.f32 %v479, %v586
      %v596 = vadd.f32 %v480, %v588
      %v597 = vadd.f32 %v481, %v591
      %v598 = vadd.f32 %v482, %v593
      %v599 = vld [vmem:[%s422] sm:$0xe]
      %v600 = vld [vmem:[%s422 + $0x8] sm:$0xe]
      %v601 = vld [vmem:[%s422 + $0x10] sm:$0xe]
      %v602 = vld [vmem:[%s422 + $0x18] sm:$0xe]
      %v611 = vrot.slane %v599, 5
      %v612 = vrot.slane %v611, 4
      %v613 = vrot.slane %v484, 5
      %v614 = vsel %vm353, %v612, %v613
      %v615 = vrot.slane %v600, 5
      %v616 = vrot.slane %v615, 4
      %v617 = vrot.slane %v486, 5
      %v618 = vsel %vm353, %v616, %v617
      %v619 = vrot.slane %v601, 5
      %v620 = vrot.slane %v619, 4
      %v621 = vrot.slane %v488, 5
      %v622 = vsel %vm353, %v620, %v621
      %v623 = vrot.slane %v602, 5
      %v624 = vrot.slane %v623, 4
      %v625 = vrot.slane %v490, 5
      %v626 = vsel %vm353, %v624, %v625
      %s627 = scalar_lea.vmem %s1, 80
      %v628 = vld [vmem:[%s627] sm:$0xf]
      %v629 = vld [vmem:[%s627 + $0x4] sm:$0xf]
      %v630 = vld [vmem:[%s627 + $0x8] sm:$0xf]
      %v631 = vld [vmem:[%s627 + $0xc] sm:$0xf]
      %v632 = vunpack.c.l.b16 %v614
      %v633 = vunpack.c.l.b16 %v618
      %v634 = vunpack.c.l.b16 %v622
      %v635 = vunpack.c.l.b16 %v626
      %v636 = vpack.c.b16 %v633, %v632
      %v637 = vpack.c.b16 %v635, %v634
      %v642 = vunpack.c.l.b16 %v628
      %v643 = vunpack.c.l.b16 %v629
      %v644 = vunpack.c.l.b16 %v630
      %v645 = vunpack.c.l.b16 %v631
      %v646 = vpack.c.b16 %v643, %v642
      %v647 = vpack.c.b16 %v645, %v644
      %v651 = vsel %vm266, %v636, 0
      %v654 = vsel %vm266, %v637, 0
      %656 = vmatpush.bf16.msra.mxu0 0
      %657 = vmatpush.bf16.msra.mxu0 0
      %658 = vmatpush.bf16.msra.mxu0 0
      %659 = vmatpush.bf16.msra.mxu0 0
      %660 = vmatpush.bf16.msra.mxu0 0
      %661 = vmatpush.bf16.msra.mxu0 0
      %662 = vmatpush.bf16.msra.mxu0 %v647
      %663 = vmatpush.bf16.msra.mxu0 %v646
      %664 = vmatmul.bf16.gmra.mxu0 %v651
      %v665 = vpop.f32.mrf.mxu0
      %v666 = vadd.f32 0.0, %v665
      %v667 = vpop.f32.mrf.mxu0
      %v668 = vadd.f32 0.0, %v667
      %669 = vmatmul.bf16.gmra.mxu0 %v654
      %v670 = vpop.f32.mrf.mxu0
      %v671 = vadd.f32 0.0, %v670
      %v672 = vpop.f32.mrf.mxu0
      %v673 = vadd.f32 0.0, %v672
      %674 = vdwg.mxu0
      %v675 = vadd.f32 %v595, %v666
      %v676 = vadd.f32 %v596, %v668
      %v677 = vadd.f32 %v597, %v671
      %v678 = vadd.f32 %v598, %v673
      %s679 = scalar_lea.vmem %s165, 16
      %v680 = vld [vmem:[%s679] sm:$0xf]
      %v681 = vld [vmem:[%s679 + $0x8] sm:$0xf]
      %v682 = vld [vmem:[%s679 + $0x10] sm:$0xf]
      %v683 = vld [vmem:[%s679 + $0x18] sm:$0xf]
      %s684 = scalar_lea.vmem %s1, 96
      %v685 = vld [vmem:[%s684] sm:$0xf]
      %v686 = vld [vmem:[%s684 + $0x4] sm:$0xf]
      %v687 = vld [vmem:[%s684 + $0x8] sm:$0xf]
      %v688 = vld [vmem:[%s684 + $0xc] sm:$0xf]
      %v693 = vunpack.c.l.b16 %v680
      %v694 = vunpack.c.l.b16 %v681
      %v695 = vunpack.c.l.b16 %v682
      %v696 = vunpack.c.l.b16 %v683
      %v697 = vpack.c.b16 %v694, %v693
      %v698 = vpack.c.b16 %v696, %v695
      %v703 = vunpack.c.l.b16 %v685
      %v704 = vunpack.c.l.b16 %v686
      %v705 = vunpack.c.l.b16 %v687
      %v706 = vunpack.c.l.b16 %v688
      %v707 = vpack.c.b16 %v704, %v703
      %v708 = vpack.c.b16 %v706, %v705
      %v712 = vsel %vm266, %v697, 0
      %v715 = vsel %vm266, %v698, 0
      %717 = vmatpush.bf16.msra.mxu0 0
      %718 = vmatpush.bf16.msra.mxu0 0
      %719 = vmatpush.bf16.msra.mxu0 0
      %720 = vmatpush.bf16.msra.mxu0 0
      %721 = vmatpush.bf16.msra.mxu0 0
      %722 = vmatpush.bf16.msra.mxu0 0
      %723 = vmatpush.bf16.msra.mxu0 %v708
      %724 = vmatpush.bf16.msra.mxu0 %v707
      %725 = vmatmul.bf16.gmra.mxu0 %v712
      %v726 = vpop.f32.mrf.mxu0
      %v727 = vadd.f32 0.0, %v726
      %v728 = vpop.f32.mrf.mxu0
      %v729 = vadd.f32 0.0, %v728
      %730 = vmatmul.bf16.gmra.mxu0 %v715
      %v731 = vpop.f32.mrf.mxu0
      %v732 = vadd.f32 0.0, %v731
      %v733 = vpop.f32.mrf.mxu0
      %v734 = vadd.f32 0.0, %v733
      %735 = vdwg.mxu0
      %v736 = vadd.f32 %v675, %v727
      %v737 = vadd.f32 %v676, %v729
      %v738 = vadd.f32 %v677, %v732
      %v739 = vadd.f32 %v678, %v734
      %v740 = vld [vmem:[%s679] sm:$0xf]
      %v741 = vld [vmem:[%s679 + $0x4] sm:$0x1]
      %v742 = vld [vmem:[%s679 + $0x8] sm:$0xf]
      %v743 = vld [vmem:[%s679 + $0xc] sm:$0x1]
      %v744 = vld [vmem:[%s679 + $0x10] sm:$0xf]
      %v745 = vld [vmem:[%s679 + $0x14] sm:$0x1]
      %v746 = vld [vmem:[%s679 + $0x18] sm:$0xf]
      %v747 = vld [vmem:[%s679 + $0x1c] sm:$0x1]
      %v749 = vshrl.u32 %v740, 16
      %v751 = vrot.slane %v749, 4
      %v752 = vshll.u32 %v740, 16
      %v754 = vrot.slane %v752, 5
      %v755 = vor.u32 %v751, %v754
      %v756 = vrot.slane %v755, 4
      %v758 = vshll.u32 %v741, 16
      %v760 = vrot.slane %v758, 5
      %v761 = vsel %vm186, %v756, %v760
      %v763 = vshrl.u32 %v742, 16
      %v765 = vrot.slane %v763, 4
      %v766 = vshll.u32 %v742, 16
      %v768 = vrot.slane %v766, 5
      %v769 = vor.u32 %v765, %v768
      %v770 = vrot.slane %v769, 4
      %v772 = vshll.u32 %v743, 16
      %v774 = vrot.slane %v772, 5
      %v775 = vsel %vm186, %v770, %v774
      %v777 = vshrl.u32 %v744, 16
      %v779 = vrot.slane %v777, 4
      %v780 = vshll.u32 %v744, 16
      %v782 = vrot.slane %v780, 5
      %v783 = vor.u32 %v779, %v782
      %v784 = vrot.slane %v783, 4
      %v786 = vshll.u32 %v745, 16
      %v788 = vrot.slane %v786, 5
      %v789 = vsel %vm186, %v784, %v788
      %v791 = vshrl.u32 %v746, 16
      %v793 = vrot.slane %v791, 4
      %v794 = vshll.u32 %v746, 16
      %v796 = vrot.slane %v794, 5
      %v797 = vor.u32 %v793, %v796
      %v798 = vrot.slane %v797, 4
      %v800 = vshll.u32 %v747, 16
      %v802 = vrot.slane %v800, 5
      %v803 = vsel %vm186, %v798, %v802
      %s804 = scalar_lea.vmem %s1, 112
      %v805 = vld [vmem:[%s804] sm:$0xf]
      %v806 = vld [vmem:[%s804 + $0x4] sm:$0xf]
      %v807 = vld [vmem:[%s804 + $0x8] sm:$0xf]
      %v808 = vld [vmem:[%s804 + $0xc] sm:$0xf]
      %v809 = vunpack.c.l.b16 %v761
      %v810 = vunpack.c.l.b16 %v775
      %v811 = vunpack.c.l.b16 %v789
      %v812 = vunpack.c.l.b16 %v803
      %v813 = vpack.c.b16 %v810, %v809
      %v814 = vpack.c.b16 %v812, %v811
      %v819 = vunpack.c.l.b16 %v805
      %v820 = vunpack.c.l.b16 %v806
      %v821 = vunpack.c.l.b16 %v807
      %v822 = vunpack.c.l.b16 %v808
      %v823 = vpack.c.b16 %v820, %v819
      %v824 = vpack.c.b16 %v822, %v821
      %v828 = vsel %vm266, %v813, 0
      %v831 = vsel %vm266, %v814, 0
      %833 = vmatpush.bf16.msra.mxu0 0
      %834 = vmatpush.bf16.msra.mxu0 0
      %835 = vmatpush.bf16.msra.mxu0 0
      %836 = vmatpush.bf16.msra.mxu0 0
      %837 = vmatpush.bf16.msra.mxu0 0
      %838 = vmatpush.bf16.msra.mxu0 0
      %839 = vmatpush.bf16.msra.mxu0 %v824
      %840 = vmatpush.bf16.msra.mxu0 %v823
      %841 = vmatmul.bf16.gmra.mxu0 %v828
      %v842 = vpop.f32.mrf.mxu0
      %v843 = vadd.f32 0.0, %v842
      %v844 = vpop.f32.mrf.mxu0
      %v845 = vadd.f32 0.0, %v844
      %846 = vmatmul.bf16.gmra.mxu0 %v831
      %v847 = vpop.f32.mrf.mxu0
      %v848 = vadd.f32 0.0, %v847
      %v849 = vpop.f32.mrf.mxu0
      %v850 = vadd.f32 0.0, %v849
      %851 = vdwg.mxu0
      %v852 = vadd.f32 %v736, %v843
      %v853 = vadd.f32 %v737, %v845
      %v854 = vadd.f32 %v738, %v848
      %v855 = vadd.f32 %v739, %v850
      %v856 = vld [vmem:[%s679] sm:$0xe]
      %v857 = vld [vmem:[%s679 + $0x8] sm:$0xe]
      %v858 = vld [vmem:[%s679 + $0x10] sm:$0xe]
      %v859 = vld [vmem:[%s679 + $0x18] sm:$0xe]
      %v868 = vrot.slane %v856, 5
      %v869 = vrot.slane %v868, 4
      %v870 = vrot.slane %v741, 5
      %v871 = vsel %vm353, %v869, %v870
      %v872 = vrot.slane %v857, 5
      %v873 = vrot.slane %v872, 4
      %v874 = vrot.slane %v743, 5
      %v875 = vsel %vm353, %v873, %v874
      %v876 = vrot.slane %v858, 5
      %v877 = vrot.slane %v876, 4
      %v878 = vrot.slane %v745, 5
      %v879 = vsel %vm353, %v877, %v878
      %v880 = vrot.slane %v859, 5
      %v881 = vrot.slane %v880, 4
      %v882 = vrot.slane %v747, 5
      %v883 = vsel %vm353, %v881, %v882
      %s884 = scalar_lea.vmem %s1, 128
      %v885 = vld [vmem:[%s884] sm:$0xf]
      %v886 = vld [vmem:[%s884 + $0x4] sm:$0xf]
      %v887 = vld [vmem:[%s884 + $0x8] sm:$0xf]
      %v888 = vld [vmem:[%s884 + $0xc] sm:$0xf]
      %v889 = vunpack.c.l.b16 %v871
      %v890 = vunpack.c.l.b16 %v875
      %v891 = vunpack.c.l.b16 %v879
      %v892 = vunpack.c.l.b16 %v883
      %v893 = vpack.c.b16 %v890, %v889
      %v894 = vpack.c.b16 %v892, %v891
      %v899 = vunpack.c.l.b16 %v885
      %v900 = vunpack.c.l.b16 %v886
      %v901 = vunpack.c.l.b16 %v887
      %v902 = vunpack.c.l.b16 %v888
      %v903 = vpack.c.b16 %v900, %v899
      %v904 = vpack.c.b16 %v902, %v901
      %v908 = vsel %vm266, %v893, 0
      %v911 = vsel %vm266, %v894, 0
      %913 = vmatpush.bf16.msra.mxu0 0
      %914 = vmatpush.bf16.msra.mxu0 0
      %915 = vmatpush.bf16.msra.mxu0 0
      %916 = vmatpush.bf16.msra.mxu0 0
      %917 = vmatpush.bf16.msra.mxu0 0
      %918 = vmatpush.bf16.msra.mxu0 0
      %919 = vmatpush.bf16.msra.mxu0 %v904
      %920 = vmatpush.bf16.msra.mxu0 %v903
      %921 = vmatmul.bf16.gmra.mxu0 %v908
      %v922 = vpop.f32.mrf.mxu0
      %v923 = vadd.f32 0.0, %v922
      %v924 = vpop.f32.mrf.mxu0
      %v925 = vadd.f32 0.0, %v924
      %926 = vmatmul.bf16.gmra.mxu0 %v911
      %v927 = vpop.f32.mrf.mxu0
      %v928 = vadd.f32 0.0, %v927
      %v929 = vpop.f32.mrf.mxu0
      %v930 = vadd.f32 0.0, %v929
      %931 = vdwg.mxu0
      %v932 = vadd.f32 %v852, %v923
      %v933 = vadd.f32 %v853, %v925
      %v934 = vadd.f32 %v854, %v928
      %v935 = vadd.f32 %v855, %v930
      %v936 = vld [vmem:[%s2] sm:$0x1]
      %v938 = vperm.slane %v936, 0
      %v940 = vadd.f32 %v932, %v938
      %v941 = vadd.f32 %v933, %v938
      %v942 = vadd.f32 %v934, %v938
      %v943 = vadd.f32 %v935, %v938
      %v944 = vmax.f32 %v940, 0.0
      %v945 = vmax.f32 %v941, 0.0
      %v946 = vmax.f32 %v942, 0.0
      %v947 = vmax.f32 %v943, 0.0
      %v948 = vpack.c.bf16 %v944, %v944
      %v949 = vpack.c.bf16 %v945, %v945
      %v950 = vpack.c.bf16 %v946, %v946
      %v951 = vpack.c.bf16 %v947, %v947
      %952 = vst [vmem:[%s170] sm:$0xf] %v948
      %953 = vst [vmem:[%s170 + $0x4] sm:$0xf] %v949
      %954 = vst [vmem:[%s170 + $0x8] sm:$0xf] %v950
      %955 = vst [vmem:[%s170 + $0xc] sm:$0xf] %v951
      %p956 = scmp.lt.s32.totalorder %s14, 1
      %s957 = scalar_select %p956, %s14, 1
      %s958 = smul.addr %s957, 4
      %s959 = smul.addr %s958, 4
      %s960 = scalar_lea.vmem %s3, %s959
      // Predicated region
      $region33: #{model_forward.5} parent=31 // pred_check
        %p961 = pneg %p100
      $region34: #{model_forward.5} parent=31 // pred_check_branch
        %963 = sbr.rel (%p961) target = $region36
      $region35: #{model_forward.5} parent=31 // pred_region
        _
      $region36: #{model_forward.5} parent=31 // pred_fallthru
        _
    $region32: #{model_forward.5} parent=5 // pred_fallthru
      _
    %p964 = scmp.le.s32.totalorder 2, %s9
    // Predicated region
    $region37: #{model_forward.5} parent=5 // pred_check
      %p965 = pneg %p964
    $region38: #{model_forward.5} parent=5 // pred_check_branch
      %967 = sbr.rel (%p965) target = $region40
    $region39: #{model_forward.5} parent=5 // pred_region
      %s968 = ssub.s32 %s9, 2
      // Predicated region
      $region41: #{model_forward.5} parent=39 // pred_check
        %p969 = pneg %p106
      $region42: #{model_forward.5} parent=39 // pred_check_branch
        %971 = sbr.rel (%p969) target = $region44
      $region43: #{model_forward.5} parent=39 // pred_region
        %p972 = scmp.lt.s32.totalorder %s15, 1
        %s973 = scalar_select %p972, %s15, 1
        %s974 = smul.addr %s973, 4
        %s975 = smul.addr %s974, 4
        %s976 = scalar_lea.vmem %s3, %s975
      $region44: #{model_forward.5} parent=39 // pred_fallthru
        _
    $region40: #{model_forward.5} parent=5 // pred_fallthru
      _
  $region6: #{model_forward.5} parent=0 // loop_footer
    %s13 = sadd.s32 1, %s9
  $region7: #{model_forward.5} parent=0 // loop_footer_branch
    %8 = sbr.rel target = $region3
  $region8: #{model_forward.5} parent=0 // loop_exit
    _

// kernel: reverse
$region0: #{reverse}
  %s0 = inlined_call_operand.vmem [shape: f32[2,8,128], index: 0, kind: input, shape index: {}]
  %s1 = inlined_call_operand.vmem [shape: f32[2,8,128], index: 1, kind: output, shape index: {}]
  $region1: #{reverse} parent=0
    #allocation0 [shape = 'u8[8192]{0}', space=vmem, size = 0x2000, scoped, tag = 'operand span for operand 0']
    #allocation1 [shape = 'u8[8192]{0}', space=vmem, size = 0x2000, scoped, tag = 'operand span for operand 1']
    // Predicated region
    $region2: #{reverse} parent=1 // pred_check
      _
    $region3: #{reverse} parent=1 // pred_check_branch
      %3 = sbr.rel (0) target = $region5
    $region4: #{reverse} parent=1 // pred_region
      // Predicated region
      $region6: #{reverse} parent=4 // pred_check
        _
      $region7: #{reverse} parent=4 // pred_check_branch
        %5 = sbr.rel (0) target = $region9
      $region8: #{reverse} parent=4 // pred_region
        // Predicated region
        $region21: #{reverse} parent=8 // pred_check
          _
        $region22: #{reverse} parent=8 // pred_check_branch
          %23 = sbr.rel (0) target = $region24
        $region23: #{reverse} parent=8 // pred_region
          loop: start=0, step=1, limit=1
          $region25: #{reverse} parent=23 // loop_pre_header
            _
          $region26: #{reverse} parent=23 // loop_header
            %s25 = sphi 0, %s29
            %p26 = scmp.ge.s32.totalorder %s25, 1
            %s30 = sphi %s0, %s0
            %s31 = sphi [#allocation0], [#allocation0]
          $region27: #{reverse} parent=23 // loop_header_branch
            %28 = sbr.rel (%p26) target = $region31
          $region28: #{reverse} parent=23 // loop_body
            %v32 = vld [vmem:[%s30] sm:$0xff]
            %33 = vst [vmem:[%s31] sm:$0xff] %v32
            %v34 = vld [vmem:[%s30 + $0x8] sm:$0xff]
            %35 = vst [vmem:[%s31 + $0x8] sm:$0xff] %v34
          $region29: #{reverse} parent=23 // loop_footer
            %s29 = sadd.s32 1, %s25
          $region30: #{reverse} parent=23 // loop_footer_branch
            %24 = sbr.rel target = $region26
          $region31: #{reverse} parent=23 // loop_exit
            _
        $region24: #{reverse} parent=8 // pred_fallthru
          _
        // Predicated region
        $region32: #{reverse} parent=8 // pred_check
          _
        $region33: #{reverse} parent=8 // pred_check_branch
          %37 = sbr.rel target = $region35
        $region34: #{reverse} parent=8 // pred_region
          _
        $region35: #{reverse} parent=8 // pred_fallthru
          _
      $region9: #{reverse} parent=4 // pred_fallthru
        _
      // Predicated region
      $region10: #{reverse} parent=4 // pred_check
        _
      $region11: #{reverse} parent=4 // pred_check_branch
        %7 = sbr.rel target = $region13
      $region12: #{reverse} parent=4 // pred_region
        %s9 = ssub.s32 256, 1
        loop: start=0, step=1, limit=1
        $region14: #{reverse} parent=12 // loop_pre_header
          _
        $region15: #{reverse} parent=12 // loop_header
          %s11 = sphi 0, %s15
          %p12 = scmp.ge.s32.totalorder %s11, 1
          %s16 = sphi %s0, %s0
          %s17 = sphi [#allocation0], [#allocation0]
        $region16: #{reverse} parent=12 // loop_header_branch
          %14 = sbr.rel (%p12) target = $region20
        $region17: #{reverse} parent=12 // loop_body
          %v18 = vld [vmem:[%s16] sm:%s9]
          %19 = vst [vmem:[%s17] sm:%s9] %v18
          %v20 = vld [vmem:[%s16 + $0x8] sm:%s9]
          %21 = vst [vmem:[%s17 + $0x8] sm:%s9] %v20
        $region18: #{reverse} parent=12 // loop_footer
          %s15 = sadd.s32 1, %s11
        $region19: #{reverse} parent=12 // loop_footer_branch
          %10 = sbr.rel target = $region15
        $region20: #{reverse} parent=12 // loop_exit
          _
      $region13: #{reverse} parent=4 // pred_fallthru
        _
    $region5: #{reverse} parent=1 // pred_fallthru
      _
    %38 = vnop
    %s39 = scalar_lea.vmem [#allocation0], 7
    %v40 = vld [vmem:[%s39] ss:$-1 sm:$0xff]
    %41 = vst [vmem:[#allocation1] sm:$0xff] %v40
    %s42 = scalar_lea.vmem [#allocation1], 8
    %s43 = scalar_lea.vmem [#allocation0], 8
    %s44 = scalar_lea.vmem %s43, 7 [#allocation0]
    %v45 = vld [vmem:[%s44] ss:$-1 sm:$0xff]
    %46 = vst [vmem:[%s42] sm:$0xff] %v45
    // Predicated region
    $region36: #{reverse} parent=1 // pred_check
      _
    $region37: #{reverse} parent=1 // pred_check_branch
      %48 = sbr.rel (0) target = $region39
    $region38: #{reverse} parent=1 // pred_region
      // Predicated region
      $region40: #{reverse} parent=38 // pred_check
        _
      $region41: #{reverse} parent=38 // pred_check_branch
        %50 = sbr.rel (0) target = $region43
      $region42: #{reverse} parent=38 // pred_region
        // Predicated region
        $region55: #{reverse} parent=42 // pred_check
          _
        $region56: #{reverse} parent=42 // pred_check_branch
          %68 = sbr.rel (0) target = $region58
        $region57: #{reverse} parent=42 // pred_region
          loop: start=0, step=1, limit=1
          $region59: #{reverse} parent=57 // loop_pre_header
            _
          $region60: #{reverse} parent=57 // loop_header
            %s70 = sphi 0, %s74
            %p71 = scmp.ge.s32.totalorder %s70, 1
            %s75 = sphi [#allocation1], [#allocation1]
            %s76 = sphi %s1, %s1
          $region61: #{reverse} parent=57 // loop_header_branch
            %73 = sbr.rel (%p71) target = $region65
          $region62: #{reverse} parent=57 // loop_body
            %v77 = vld [vmem:[%s75] sm:$0xff]
            %78 = vst [vmem:[%s76] sm:$0xff] %v77
            %v79 = vld [vmem:[%s75 + $0x8] sm:$0xff]
            %80 = vst [vmem:[%s76 + $0x8] sm:$0xff] %v79
          $region63: #{reverse} parent=57 // loop_footer
            %s74 = sadd.s32 1, %s70
          $region64: #{reverse} parent=57 // loop_footer_branch
            %69 = sbr.rel target = $region60
          $region65: #{reverse} parent=57 // loop_exit
            _
        $region58: #{reverse} parent=42 // pred_fallthru
          _
        // Predicated region
        $region66: #{reverse} parent=42 // pred_check
          _
        $region67: #{reverse} parent=42 // pred_check_branch
          %82 = sbr.rel target = $region69
        $region68: #{reverse} parent=42 // pred_region
          _
        $region69: #{reverse} parent=42 // pred_fallthru
          _
      $region43: #{reverse} parent=38 // pred_fallthru
        _
      // Predicated region
      $region44: #{reverse} parent=38 // pred_check
        _
      $region45: #{reverse} parent=38 // pred_check_branch
        %52 = sbr.rel target = $region47
      $region46: #{reverse} parent=38 // pred_region
        %s54 = ssub.s32 256, 1
        loop: start=0, step=1, limit=1
        $region48: #{reverse} parent=46 // loop_pre_header
          _
        $region49: #{reverse} parent=46 // loop_header
          %s56 = sphi 0, %s60
          %p57 = scmp.ge.s32.totalorder %s56, 1
          %s61 = sphi [#allocation1], [#allocation1]
          %s62 = sphi %s1, %s1
        $region50: #{reverse} parent=46 // loop_header_branch
          %59 = sbr.rel (%p57) target = $region54
        $region51: #{reverse} parent=46 // loop_body
          %v63 = vld [vmem:[%s61] sm:%s54]
          %64 = vst [vmem:[%s62] sm:%s54] %v63
          %v65 = vld [vmem:[%s61 + $0x8] sm:%s54]
          %66 = vst [vmem:[%s62 + $0x8] sm:%s54] %v65
        $region52: #{reverse} parent=46 // loop_footer
          %s60 = sadd.s32 1, %s56
        $region53: #{reverse} parent=46 // loop_footer_branch
          %55 = sbr.rel target = $region49
        $region54: #{reverse} parent=46 // loop_exit
          _
      $region47: #{reverse} parent=38 // pred_fallthru
        _
    $region39: #{reverse} parent=1 // pred_fallthru
      _
    %83 = vnop

// kernel: model_forward.6
$region0: #{model_forward.6}
  #allocation0 [shape = 'u32[]', space=smem, size = 0x4, offset = 0x4, fixed_abs, tag = 'smem constant byte address 0x4 - core index']
  #allocation1 [shape = 'u32[72,128]{1,0:T(1,128)}', space=vmem, size = 0x9000, scoped, tag = 'internal scratch']
  %s0 = inlined_call_operand.vmem [shape: bf16[2,4,10,128], index: 0, kind: input, shape index: {}]
  %s1 = inlined_call_operand.vmem [shape: bf16[9,128,128], index: 1, kind: input, shape index: {}]
  %s2 = inlined_call_operand.vmem [shape: f32[1,128], index: 2, kind: input, shape index: {}]
  %s3 = inlined_call_operand.vmem [shape: bf16[2,2,8,128], index: 3, kind: output, shape index: {}]
  %s4 = sld [smem:[#allocation0]]
  $region45: #{model_forward.6} parent=0
    _
  %s6 = ssub.s32 1, %s4
  %s7 = scalar_select 0, %s6, %s4
  loop: start=0, step=1, limit=4
  $region2: #{model_forward.6} parent=0 // loop_pre_header
    _
  $region3: #{model_forward.6} parent=0 // loop_header
    %s9 = sphi 0, %s13
    %p10 = scmp.ge.s32.totalorder %s9, 4
    %s19 = sphi 0, %s21
    %s22 = sphi 0, %s19
    %s23 = sphi 0, %s22
    %s39 = sphi 0, %s23
    %s43 = sphi 0, %s43
    %s45 = sphi 0, %s43
    %s46 = sphi 0, %s45
    %s60 = sphi 0, %s46
    %s64 = sphi 0, %s64
    %s66 = sphi 0, %s64
    %s67 = sphi 0, %s66
    %s81 = sphi 0, %s67
    %s87 = sphi 0, %s89
    %s90 = sphi 0, %s87
    %s91 = sphi 0, %s90
    %s107 = sphi 0, %s91
  $region4: #{model_forward.6} parent=0 // loop_header_branch
    %12 = sbr.rel (%p10) target = $region8
  $region5: #{model_forward.6} parent=0 // loop_body
    %s14 = ssub.s32 %s9, 1
    %s15 = ssub.s32 %s9, 2
    %s16 = sadd.s32 %s9, 1
    %s17 = ssub.s32 %s9, %s16
    %p18 = scmp.eq.s32.totalorder %s17, 0
    %s20 = sadd.s32 %s19, 1
    %s21 = scalar_select %p18, %s19, %s20
    %p24 = pneg %p18
    %p25 = scmp.eq.s32.totalorder %s9, 1
    %p26 = por %p24, %p25
    %p27 = scmp.ne.s32.totalorder %s19, %s22
    %p28 = scmp.eq.s32.totalorder %s9, 0
    %p29 = por %p27, %p28
    %p30 = scmp.ne.s32.totalorder %s19, %s22
    %p31 = scmp.eq.s32.totalorder %s14, 1
    %p32 = por %p30, %p31
    %p33 = scmp.ne.s32.totalorder %s22, %s23
    %p34 = scmp.eq.s32.totalorder %s14, 0
    %p35 = por %p33, %p34
    %p36 = scmp.ne.s32.totalorder %s22, %s23
    %p37 = scmp.eq.s32.totalorder %s15, 1
    %p38 = por %p36, %p37
    %p40 = scmp.ne.s32.totalorder %s23, %s39
    %p41 = scmp.eq.s32.totalorder %s15, 0
    %p42 = por %p40, %p41
    %s44 = sadd.s32 %s43, 1
    %p47 = scmp.eq.s32.totalorder %s9, 1
    %p48 = scmp.ne.s32.totalorder %s43, %s45
    %p49 = scmp.eq.s32.totalorder %s9, 0
    %p50 = por %p48, %p49
    %p51 = scmp.ne.s32.totalorder %s43, %s45
    %p52 = scmp.eq.s32.totalorder %s14, 1
    %p53 = por %p51, %p52
    %p54 = scmp.ne.s32.totalorder %s45, %s46
    %p55 = scmp.eq.s32.totalorder %s14, 0
    %p56 = por %p54, %p55
    %p57 = scmp.ne.s32.totalorder %s45, %s46
    %p58 = scmp.eq.s32.totalorder %s15, 1
    %p59 = por %p57, %p58
    %p61 = scmp.ne.s32.totalorder %s46, %s60
    %p62 = scmp.eq.s32.totalorder %s15, 0
    %p63 = por %p61, %p62
    %s65 = sadd.s32 %s64, 1
    %p68 = scmp.eq.s32.totalorder %s9, 1
    %p69 = scmp.ne.s32.totalorder %s64, %s66
    %p70 = scmp.eq.s32.totalorder %s9, 0
    %p71 = por %p69, %p70
    %p72 = scmp.ne.s32.totalorder %s64, %s66
    %p73 = scmp.eq.s32.totalorder %s14, 1
    %p74 = por %p72, %p73
    %p75 = scmp.ne.s32.totalorder %s66, %s67
    %p76 = scmp.eq.s32.totalorder %s14, 0
    %p77 = por %p75, %p76
    %p78 = scmp.ne.s32.totalorder %s66, %s67
    %p79 = scmp.eq.s32.totalorder %s15, 1
    %p80 = por %p78, %p79
    %p82 = scmp.ne.s32.totalorder %s67, %s81
    %p83 = scmp.eq.s32.totalorder %s15, 0
    %p84 = por %p82, %p83
    %s85 = ssub.s32 %s9, %s16
    %p86 = scmp.eq.s32.totalorder %s85, 0
    %s88 = sadd.s32 %s87, 1
    %s89 = scalar_select %p86, %s87, %s88
    %p92 = pneg %p86
    %p93 = scmp.eq.s32.totalorder %s9, 1
    %p94 = por %p92, %p93
    %p95 = scmp.ne.s32.totalorder %s87, %s90
    %p96 = scmp.eq.s32.totalorder %s9, 0
    %p97 = por %p95, %p96
    %p98 = scmp.ne.s32.totalorder %s87, %s90
    %p99 = scmp.eq.s32.totalorder %s14, 1
    %p100 = por %p98, %p99
    %p101 = scmp.ne.s32.totalorder %s90, %s91
    %p102 = scmp.eq.s32.totalorder %s14, 0
    %p103 = por %p101, %p102
    %p104 = scmp.ne.s32.totalorder %s90, %s91
    %p105 = scmp.eq.s32.totalorder %s15, 1
    %p106 = por %p104, %p105
    %p108 = scmp.ne.s32.totalorder %s91, %s107
    %p109 = scmp.eq.s32.totalorder %s15, 0
    %p110 = por %p108, %p109
    %p111 = scmp.le.s32.totalorder 1, %s9
    %p112 = scmp.lt.s32.totalorder %s9, 3
    %p113 = pnand %p111, %p112
    %p114 = pneg %p113
    // Predicated region
    $region9: #{model_forward.6} parent=5 // pred_check
      _
    $region10: #{model_forward.6} parent=5 // pred_check_branch
      %116 = sbr.rel (%p113) target = $region12
    $region11: #{model_forward.6} parent=5 // pred_region
      %s117 = ssub.s32 %s9, 1
      // Predicated region
      $region13: #{model_forward.6} parent=11 // pred_check
        %p118 = pneg %p56
      $region14: #{model_forward.6} parent=11 // pred_check_branch
        %120 = sbr.rel (%p118) target = $region16
      $region15: #{model_forward.6} parent=11 // pred_region
        _
      $region16: #{model_forward.6} parent=11 // pred_fallthru
        _
      // Predicated region
      $region17: #{model_forward.6} parent=11 // pred_check
        %p121 = pneg %p77
      $region18: #{model_forward.6} parent=11 // pred_check_branch
        %123 = sbr.rel (%p121) target = $region20
      $region19: #{model_forward.6} parent=11 // pred_region
        _
      $region20: #{model_forward.6} parent=11 // pred_fallthru
        _
    $region12: #{model_forward.6} parent=5 // pred_fallthru
      _
    %p124 = scmp.lt.s32.totalorder %s9, 2
    // Predicated region
    $region21: #{model_forward.6} parent=5 // pred_check
      %p125 = pneg %p124
    $region22: #{model_forward.6} parent=5 // pred_check_branch
      %127 = sbr.rel (%p125) target = $region24
    $region23: #{model_forward.6} parent=5 // pred_region
      // Predicated region
      $region25: #{model_forward.6} parent=23 // pred_check
        %p128 = pneg %p29
      $region26: #{model_forward.6} parent=23 // pred_check_branch
        %130 = sbr.rel (%p128) target = $region28
      $region27: #{model_forward.6} parent=23 // pred_region
        %p131 = scmp.lt.s32.totalorder %s9, 1
        %s132 = scalar_select %p131, %s9, 1
        %s133 = smul.addr %s132, 8
        %s134 = smul.addr %s133, 4
        %s135 = scalar_lea.vmem %s0, %s134
      $region28: #{model_forward.6} parent=23 // pred_fallthru
        _
    $region24: #{model_forward.6} parent=5 // pred_fallthru
      _
    %p136 = scmp.le.s32.totalorder 1, %s9
    %p137 = scmp.lt.s32.totalorder %s9, 3
    %p138 = pnand %p136, %p137
    %p139 = pneg %p138
    // Predicated region
    $region29: #{model_forward.6} parent=5 // pred_check
      _
    $region30: #{model_forward.6} parent=5 // pred_check_branch
      %141 = sbr.rel (%p138) target = $region32
    $region31: #{model_forward.6} parent=5 // pred_region
      %s142 = ssub.s32 %s9, 1
      %p143 = scmp.lt.s32.totalorder %s14, 1
      %s144 = scalar_select %p143, %s14, 1
      %s145 = smul.addr %s144, 8
      %s146 = smul.addr %s145, 4
      %s147 = scalar_lea.vmem %s0, %s146
      %p148 = pneg %p35
      %p149 = pneg %p32
      %p150 = pneg %p56
      %p151 = pneg %p53
      %p152 = pneg %p77
      %p153 = pneg %p74
      %p154 = pneg %p103
      %p155 = pneg %p100
      %p156 = scmp.lt.s32.totalorder %s14, 1
      %s157 = scalar_select %p156, %s14, 1
      %s158 = smul.addr %s157, 2
      %s159 = smul.addr %s158, 4
      %s160 = scalar_lea.vmem %s3, %s159
      %p161 = scmp.lt.s32.totalorder %s14, 1
      %s162 = scalar_select %p161, %s14, 1
      %s163 = smul.addr %s162, 8
      %s164 = smul.addr %s163, 4
      %s165 = scalar_lea.vmem %s0, %s164
      %p166 = scmp.lt.s32.totalorder %s14, 1
      %s167 = scalar_select %p166, %s14, 1
      %s168 = smul.addr %s167, 2
      %s169 = smul.addr %s168, 4
      %s170 = scalar_lea.vmem %s3, %s169
      %v171 = vld [vmem:[%s165] sm:$0xf]
      %v172 = vld [vmem:[%s165 + $0x8] sm:$0xf]
      %v173 = vld [vmem:[%s1] sm:$0xf]
      %v174 = vld [vmem:[%s1 + $0x4] sm:$0xf]
      %v175 = vld [vmem:[%s1 + $0x8] sm:$0xf]
      %v176 = vld [vmem:[%s1 + $0xc] sm:$0xf]
      %v177 = vld [vmem:[%s1 + $0x10] sm:$0xf]
      %v178 = vld [vmem:[%s1 + $0x14] sm:$0xf]
      %v179 = vld [vmem:[%s1 + $0x18] sm:$0xf]
      %v180 = vld [vmem:[%s1 + $0x1c] sm:$0xf]
      %v181 = vld [vmem:[%s1 + $0x20] sm:$0xf]
      %v182 = vld [vmem:[%s1 + $0x24] sm:$0xf]
      %v183 = vld [vmem:[%s1 + $0x28] sm:$0xf]
      %v184 = vld [vmem:[%s1 + $0x2c] sm:$0xf]
      %v185 = vld [vmem:[%s1 + $0x30] sm:$0xf]
      %v186 = vld [vmem:[%s1 + $0x34] sm:$0xf]
      %v187 = vld [vmem:[%s1 + $0x38] sm:$0xf]
      %v188 = vld [vmem:[%s1 + $0x3c] sm:$0xf]
      %v189 = vld [vmem:[%s165 + $0x4] sm:$0x1]
      %v190 = vld [vmem:[%s165 + $0xc] sm:$0x1]
      %vm191 = vsmask.f32 3328
      %vm192 = vsmask.f32 7440
      %vm193 = vmor %vm191, %vm192
      %v195 = vshrl.u32 %v171, 16
      %v197 = vrot.slane %v195, 4
      %v198 = vshll.u32 %v171, 16
      %v200 = vrot.slane %v198, 5
      %v201 = vor.u32 %v197, %v200
      %v202 = vrot.slane %v201, 4
      %v204 = vshll.u32 %v189, 16
      %v206 = vrot.slane %v204, 5
      %v207 = vsel %vm193, %v202, %v206
      %v209 = vshrl.u32 %v172, 16
      %v211 = vrot.slane %v209, 4
      %v212 = vshll.u32 %v172, 16
      %v214 = vrot.slane %v212, 5
      %v215 = vor.u32 %v211, %v214
      %v216 = vrot.slane %v215, 4
      %v218 = vshll.u32 %v190, 16
      %v220 = vrot.slane %v218, 5
      %v221 = vsel %vm193, %v216, %v220
      %s222 = scalar_lea.vmem %s1, 64
      %v223 = vld [vmem:[%s222] sm:$0xf]
      %v224 = vld [vmem:[%s222 + $0x4] sm:$0xf]
      %v225 = vld [vmem:[%s222 + $0x8] sm:$0xf]
      %v226 = vld [vmem:[%s222 + $0xc] sm:$0xf]
      %v227 = vld [vmem:[%s222 + $0x10] sm:$0xf]
      %v228 = vld [vmem:[%s222 + $0x14] sm:$0xf]
      %v229 = vld [vmem:[%s222 + $0x18] sm:$0xf]
      %v230 = vld [vmem:[%s222 + $0x1c] sm:$0xf]
      %v231 = vld [vmem:[%s222 + $0x20] sm:$0xf]
      %v232 = vld [vmem:[%s222 + $0x24] sm:$0xf]
      %v233 = vld [vmem:[%s222 + $0x28] sm:$0xf]
      %v234 = vld [vmem:[%s222 + $0x2c] sm:$0xf]
      %v235 = vld [vmem:[%s222 + $0x30] sm:$0xf]
      %v236 = vld [vmem:[%s222 + $0x34] sm:$0xf]
      %v237 = vld [vmem:[%s222 + $0x38] sm:$0xf]
      %v238 = vld [vmem:[%s222 + $0x3c] sm:$0xf]
      %v239 = vunpack.c.l.b16 %v207
      %v240 = vunpack.c.l.b16 %v221
      %v241 = vpack.c.b16 %v240, %v239
      %v259 = vunpack.c.l.b16 %v223
      %v260 = vunpack.c.l.b16 %v224
      %v261 = vunpack.c.l.b16 %v225
      %v262 = vunpack.c.l.b16 %v226
      %v263 = vunpack.c.l.b16 %v227
      %v264 = vunpack.c.l.b16 %v228
      %v265 = vunpack.c.l.b16 %v229
      %v266 = vunpack.c.l.b16 %v230
      %v267 = vunpack.c.l.b16 %v231
      %v268 = vunpack.c.l.b16 %v232
      %v269 = vunpack.c.l.b16 %v233
      %v270 = vunpack.c.l.b16 %v234
      %v271 = vunpack.c.l.b16 %v235
      %v272 = vunpack.c.l.b16 %v236
      %v273 = vunpack.c.l.b16 %v237
      %v274 = vunpack.c.l.b16 %v238
      %v275 = vpack.c.b16 %v260, %v259
      %v276 = vpack.c.b16 %v262, %v261
      %v277 = vpack.c.b16 %v264, %v263
      %v278 = vpack.c.b16 %v266, %v265
      %v279 = vpack.c.b16 %v268, %v267
      %v280 = vpack.c.b16 %v270, %v269
      %v281 = vpack.c.b16 %v272, %v271
      %v282 = vpack.c.b16 %v274, %v273
      %291 = vmatpush.bf16.msra.mxu0 %v282
      %292 = vmatpush.bf16.msra.mxu0 %v281
      %293 = vmatpush.bf16.msra.mxu0 %v280
      %294 = vmatpush.bf16.msra.mxu0 %v279
      %295 = vmatpush.bf16.msra.mxu0 %v278
      %296 = vmatpush.bf16.msra.mxu0 %v277
      %297 = vmatpush.bf16.msra.mxu0 %v276
      %298 = vmatpush.bf16.msra.mxu0 %v275
      %299 = vmatmul.bf16.gmra.mxu0 %v241
      %v300 = vpop.f32.mrf.mxu0
      %v301 = vadd.f32 0.0, %v300
      %v302 = vpop.f32.mrf.mxu0
      %v303 = vadd.f32 0.0, %v302
      %304 = vdwg.mxu0
      %v307 = vunpack.c.l.b16 %v171
      %v308 = vunpack.c.l.b16 %v172
      %v309 = vpack.c.b16 %v308, %v307
      %v327 = vunpack.c.l.b16 %v173
      %v328 = vunpack.c.l.b16 %v174
      %v329 = vunpack.c.l.b16 %v175
      %v330 = vunpack.c.l.b16 %v176
      %v331 = vunpack.c.l.b16 %v177
      %v332 = vunpack.c.l.b16 %v178
      %v333 = vunpack.c.l.b16 %v179
      %v334 = vunpack.c.l.b16 %v180
      %v335 = vunpack.c.l.b16 %v181
      %v336 = vunpack.c.l.b16 %v182
      %v337 = vunpack.c.l.b16 %v183
      %v338 = vunpack.c.l.b16 %v184
      %v339 = vunpack.c.l.b16 %v185
      %v340 = vunpack.c.l.b16 %v186
      %v341 = vunpack.c.l.b16 %v187
      %v342 = vunpack.c.l.b16 %v188
      %v343 = vpack.c.b16 %v328, %v327
      %v344 = vpack.c.b16 %v330, %v329
      %v345 = vpack.c.b16 %v332, %v331
      %v346 = vpack.c.b16 %v334, %v333
      %v347 = vpack.c.b16 %v336, %v335
      %v348 = vpack.c.b16 %v338, %v337
      %v349 = vpack.c.b16 %v340, %v339
      %v350 = vpack.c.b16 %v342, %v341
      %359 = vmatpush.bf16.msra.mxu0 %v350
      %360 = vmatpush.bf16.msra.mxu0 %v349
      %361 = vmatpush.bf16.msra.mxu0 %v348
      %362 = vmatpush.bf16.msra.mxu0 %v347
      %363 = vmatpush.bf16.msra.mxu0 %v346
      %364 = vmatpush.bf16.msra.mxu0 %v345
      %365 = vmatpush.bf16.msra.mxu0 %v344
      %366 = vmatpush.bf16.msra.mxu0 %v343
      %367 = vmatmul.bf16.gmra.mxu0 %v309
      %v368 = vpop.f32.mrf.mxu0
      %v369 = vadd.f32 %v301, %v368
      %v370 = vpop.f32.mrf.mxu0
      %v371 = vadd.f32 %v303, %v370
      %372 = vdwg.mxu0
      %v373 = vld [vmem:[%s165] sm:$0xe]
      %v374 = vld [vmem:[%s165 + $0x8] sm:$0xe]
      %vm379 = vcmask 1042432
      %vm380 = vcmask 1046532
      %vm381 = vmor %vm379, %vm380
      %v382 = vrot.slane %v373, 5
      %v383 = vrot.slane %v382, 4
      %v384 = vrot.slane %v189, 5
      %v385 = vsel %vm381, %v383, %v384
      %v386 = vrot.slane %v374, 5
      %v387 = vrot.slane %v386, 4
      %v388 = vrot.slane %v190, 5
      %v389 = vsel %vm381, %v387, %v388
      %s390 = scalar_lea.vmem %s1, 128
      %v391 = vld [vmem:[%s390] sm:$0xf]
      %v392 = vld [vmem:[%s390 + $0x4] sm:$0xf]
      %v393 = vld [vmem:[%s390 + $0x8] sm:$0xf]
      %v394 = vld [vmem:[%s390 + $0xc] sm:$0xf]
      %v395 = vld [vmem:[%s390 + $0x10] sm:$0xf]
      %v396 = vld [vmem:[%s390 + $0x14] sm:$0xf]
      %v397 = vld [vmem:[%s390 + $0x18] sm:$0xf]
      %v398 = vld [vmem:[%s390 + $0x1c] sm:$0xf]
      %v399 = vld [vmem:[%s390 + $0x20] sm:$0xf]
      %v400 = vld [vmem:[%s390 + $0x24] sm:$0xf]
      %v401 = vld [vmem:[%s390 + $0x28] sm:$0xf]
      %v402 = vld [vmem:[%s390 + $0x2c] sm:$0xf]
      %v403 = vld [vmem:[%s390 + $0x30] sm:$0xf]
      %v404 = vld [vmem:[%s390 + $0x34] sm:$0xf]
      %v405 = vld [vmem:[%s390 + $0x38] sm:$0xf]
      %v406 = vld [vmem:[%s390 + $0x3c] sm:$0xf]
      %v407 = vunpack.c.l.b16 %v385
      %v408 = vunpack.c.l.b16 %v389
      %v409 = vpack.c.b16 %v408, %v407
      %v427 = vunpack.c.l.b16 %v391
      %v428 = vunpack.c.l.b16 %v392
      %v429 = vunpack.c.l.b16 %v393
      %v430 = vunpack.c.l.b16 %v394
      %v431 = vunpack.c.l.b16 %v395
      %v432 = vunpack.c.l.b16 %v396
      %v433 = vunpack.c.l.b16 %v397
      %v434 = vunpack.c.l.b16 %v398
      %v435 = vunpack.c.l.b16 %v399
      %v436 = vunpack.c.l.b16 %v400
      %v437 = vunpack.c.l.b16 %v401
      %v438 = vunpack.c.l.b16 %v402
      %v439 = vunpack.c.l.b16 %v403
      %v440 = vunpack.c.l.b16 %v404
      %v441 = vunpack.c.l.b16 %v405
      %v442 = vunpack.c.l.b16 %v406
      %v443 = vpack.c.b16 %v428, %v427
      %v444 = vpack.c.b16 %v430, %v429
      %v445 = vpack.c.b16 %v432, %v431
      %v446 = vpack.c.b16 %v434, %v433
      %v447 = vpack.c.b16 %v436, %v435
      %v448 = vpack.c.b16 %v438, %v437
      %v449 = vpack.c.b16 %v440, %v439
      %v450 = vpack.c.b16 %v442, %v441
      %459 = vmatpush.bf16.msra.mxu0 %v450
      %460 = vmatpush.bf16.msra.mxu0 %v449
      %461 = vmatpush.bf16.msra.mxu0 %v448
      %462 = vmatpush.bf16.msra.mxu0 %v447
      %463 = vmatpush.bf16.msra.mxu0 %v446
      %464 = vmatpush.bf16.msra.mxu0 %v445
      %465 = vmatpush.bf16.msra.mxu0 %v444
      %466 = vmatpush.bf16.msra.mxu0 %v443
      %467 = vmatmul.bf16.gmra.mxu0 %v409
      %v468 = vpop.f32.mrf.mxu0
      %v469 = vadd.f32 0.0, %v468
      %v470 = vpop.f32.mrf.mxu0
      %v471 = vadd.f32 0.0, %v470
      %472 = vdwg.mxu0
      %v473 = vadd.f32 %v369, %v469
      %v474 = vadd.f32 %v371, %v471
      %s475 = scalar_lea.vmem %s165, 8
      %v476 = vld [vmem:[%s475] sm:$0xf]
      %v477 = vld [vmem:[%s475 + $0x8] sm:$0xf]
      %s478 = scalar_lea.vmem %s1, 192
      %v479 = vld [vmem:[%s478] sm:$0xf]
      %v480 = vld [vmem:[%s478 + $0x4] sm:$0xf]
      %v481 = vld [vmem:[%s478 + $0x8] sm:$0xf]
      %v482 = vld [vmem:[%s478 + $0xc] sm:$0xf]
      %v483 = vld [vmem:[%s478 + $0x10] sm:$0xf]
      %v484 = vld [vmem:[%s478 + $0x14] sm:$0xf]
      %v485 = vld [vmem:[%s478 + $0x18] sm:$0xf]
      %v486 = vld [vmem:[%s478 + $0x1c] sm:$0xf]
      %v487 = vld [vmem:[%s478 + $0x20] sm:$0xf]
      %v488 = vld [vmem:[%s478 + $0x24] sm:$0xf]
      %v489 = vld [vmem:[%s478 + $0x28] sm:$0xf]
      %v490 = vld [vmem:[%s478 + $0x2c] sm:$0xf]
      %v491 = vld [vmem:[%s478 + $0x30] sm:$0xf]
      %v492 = vld [vmem:[%s478 + $0x34] sm:$0xf]
      %v493 = vld [vmem:[%s478 + $0x38] sm:$0xf]
      %v494 = vld [vmem:[%s478 + $0x3c] sm:$0xf]
      %v497 = vunpack.c.l.b16 %v476
      %v498 = vunpack.c.l.b16 %v477
      %v499 = vpack.c.b16 %v498, %v497
      %v517 = vunpack.c.l.b16 %v479
      %v518 = vunpack.c.l.b16 %v480
      %v519 = vunpack.c.l.b16 %v481
      %v520 = vunpack.c.l.b16 %v482
      %v521 = vunpack.c.l.b16 %v483
      %v522 = vunpack.c.l.b16 %v484
      %v523 = vunpack.c.l.b16 %v485
      %v524 = vunpack.c.l.b16 %v486
      %v525 = vunpack.c.l.b16 %v487
      %v526 = vunpack.c.l.b16 %v488
      %v527 = vunpack.c.l.b16 %v489
      %v528 = vunpack.c.l.b16 %v490
      %v529 = vunpack.c.l.b16 %v491
      %v530 = vunpack.c.l.b16 %v492
      %v531 = vunpack.c.l.b16 %v493
      %v532 = vunpack.c.l.b16 %v494
      %v533 = vpack.c.b16 %v518, %v517
      %v534 = vpack.c.b16 %v520, %v519
      %v535 = vpack.c.b16 %v522, %v521
      %v536 = vpack.c.b16 %v524, %v523
      %v537 = vpack.c.b16 %v526, %v525
      %v538 = vpack.c.b16 %v528, %v527
      %v539 = vpack.c.b16 %v530, %v529
      %v540 = vpack.c.b16 %v532, %v531
      %549 = vmatpush.bf16.msra.mxu0 %v540
      %550 = vmatpush.bf16.msra.mxu0 %v539
      %551 = vmatpush.bf16.msra.mxu0 %v538
      %552 = vmatpush.bf16.msra.mxu0 %v537
      %553 = vmatpush.bf16.msra.mxu0 %v536
      %554 = vmatpush.bf16.msra.mxu0 %v535
      %555 = vmatpush.bf16.msra.mxu0 %v534
      %556 = vmatpush.bf16.msra.mxu0 %v533
      %557 = vmatmul.bf16.gmra.mxu0 %v499
      %v558 = vpop.f32.mrf.mxu0
      %v559 = vadd.f32 0.0, %v558
      %v560 = vpop.f32.mrf.mxu0
      %v561 = vadd.f32 0.0, %v560
      %562 = vdwg.mxu0
      %v563 = vadd.f32 %v473, %v559
      %v564 = vadd.f32 %v474, %v561
      %v565 = vld [vmem:[%s475] sm:$0xf]
      %v566 = vld [vmem:[%s475 + $0x4] sm:$0x1]
      %v567 = vld [vmem:[%s475 + $0x8] sm:$0xf]
      %v568 = vld [vmem:[%s475 + $0xc] sm:$0x1]
      %v570 = vshrl.u32 %v565, 16
      %v572 = vrot.slane %v570, 4
      %v573 = vshll.u32 %v565, 16
      %v575 = vrot.slane %v573, 5
      %v576 = vor.u32 %v572, %v575
      %v577 = vrot.slane %v576, 4
      %v579 = vshll.u32 %v566, 16
      %v581 = vrot.slane %v579, 5
      %v582 = vsel %vm193, %v577, %v581
      %v584 = vshrl.u32 %v567, 16
      %v586 = vrot.slane %v584, 4
      %v587 = vshll.u32 %v567, 16
      %v589 = vrot.slane %v587, 5
      %v590 = vor.u32 %v586, %v589
      %v591 = vrot.slane %v590, 4
      %v593 = vshll.u32 %v568, 16
      %v595 = vrot.slane %v593, 5
      %v596 = vsel %vm193, %v591, %v595
      %s597 = scalar_lea.vmem %s1, 256
      %v598 = vld [vmem:[%s597] sm:$0xf]
      %v599 = vld [vmem:[%s597 + $0x4] sm:$0xf]
      %v600 = vld [vmem:[%s597 + $0x8] sm:$0xf]
      %v601 = vld [vmem:[%s597 + $0xc] sm:$0xf]
      %v602 = vld [vmem:[%s597 + $0x10] sm:$0xf]
      %v603 = vld [vmem:[%s597 + $0x14] sm:$0xf]
      %v604 = vld [vmem:[%s597 + $0x18] sm:$0xf]
      %v605 = vld [vmem:[%s597 + $0x1c] sm:$0xf]
      %v606 = vld [vmem:[%s597 + $0x20] sm:$0xf]
      %v607 = vld [vmem:[%s597 + $0x24] sm:$0xf]
      %v608 = vld [vmem:[%s597 + $0x28] sm:$0xf]
      %v609 = vld [vmem:[%s597 + $0x2c] sm:$0xf]
      %v610 = vld [vmem:[%s597 + $0x30] sm:$0xf]
      %v611 = vld [vmem:[%s597 + $0x34] sm:$0xf]
      %v612 = vld [vmem:[%s597 + $0x38] sm:$0xf]
      %v613 = vld [vmem:[%s597 + $0x3c] sm:$0xf]
      %v614 = vunpack.c.l.b16 %v582
      %v615 = vunpack.c.l.b16 %v596
      %v616 = vpack.c.b16 %v615, %v614
      %v634 = vunpack.c.l.b16 %v598
      %v635 = vunpack.c.l.b16 %v599
      %v636 = vunpack.c.l.b16 %v600
      %v637 = vunpack.c.l.b16 %v601
      %v638 = vunpack.c.l.b16 %v602
      %v639 = vunpack.c.l.b16 %v603
      %v640 = vunpack.c.l.b16 %v604
      %v641 = vunpack.c.l.b16 %v605
      %v642 = vunpack.c.l.b16 %v606
      %v643 = vunpack.c.l.b16 %v607
      %v644 = vunpack.c.l.b16 %v608
      %v645 = vunpack.c.l.b16 %v609
      %v646 = vunpack.c.l.b16 %v610
      %v647 = vunpack.c.l.b16 %v611
      %v648 = vunpack.c.l.b16 %v612
      %v649 = vunpack.c.l.b16 %v613
      %v650 = vpack.c.b16 %v635, %v634
      %v651 = vpack.c.b16 %v637, %v636
      %v652 = vpack.c.b16 %v639, %v638
      %v653 = vpack.c.b16 %v641, %v640
      %v654 = vpack.c.b16 %v643, %v642
      %v655 = vpack.c.b16 %v645, %v644
      %v656 = vpack.c.b16 %v647, %v646
      %v657 = vpack.c.b16 %v649, %v648
      %666 = vmatpush.bf16.msra.mxu0 %v657
      %667 = vmatpush.bf16.msra.mxu0 %v656
      %668 = vmatpush.bf16.msra.mxu0 %v655
      %669 = vmatpush.bf16.msra.mxu0 %v654
      %670 = vmatpush.bf16.msra.mxu0 %v653
      %671 = vmatpush.bf16.msra.mxu0 %v652
      %672 = vmatpush.bf16.msra.mxu0 %v651
      %673 = vmatpush.bf16.msra.mxu0 %v650
      %674 = vmatmul.bf16.gmra.mxu0 %v616
      %v675 = vpop.f32.mrf.mxu0
      %v676 = vadd.f32 0.0, %v675
      %v677 = vpop.f32.mrf.mxu0
      %v678 = vadd.f32 0.0, %v677
      %679 = vdwg.mxu0
      %v680 = vadd.f32 %v563, %v676
      %v681 = vadd.f32 %v564, %v678
      %v682 = vld [vmem:[%s475] sm:$0xe]
      %v683 = vld [vmem:[%s475 + $0x8] sm:$0xe]
      %v688 = vrot.slane %v682, 5
      %v689 = vrot.slane %v688, 4
      %v690 = vrot.slane %v566, 5
      %v691 = vsel %vm381, %v689, %v690
      %v692 = vrot.slane %v683, 5
      %v693 = vrot.slane %v692, 4
      %v694 = vrot.slane %v568, 5
      %v695 = vsel %vm381, %v693, %v694
      %s696 = scalar_lea.vmem %s1, 320
      %v697 = vld [vmem:[%s696] sm:$0xf]
      %v698 = vld [vmem:[%s696 + $0x4] sm:$0xf]
      %v699 = vld [vmem:[%s696 + $0x8] sm:$0xf]
      %v700 = vld [vmem:[%s696 + $0xc] sm:$0xf]
      %v701 = vld [vmem:[%s696 + $0x10] sm:$0xf]
      %v702 = vld [vmem:[%s696 + $0x14] sm:$0xf]
      %v703 = vld [vmem:[%s696 + $0x18] sm:$0xf]
      %v704 = vld [vmem:[%s696 + $0x1c] sm:$0xf]
      %v705 = vld [vmem:[%s696 + $0x20] sm:$0xf]
      %v706 = vld [vmem:[%s696 + $0x24] sm:$0xf]
      %v707 = vld [vmem:[%s696 + $0x28] sm:$0xf]
      %v708 = vld [vmem:[%s696 + $0x2c] sm:$0xf]
      %v709 = vld [vmem:[%s696 + $0x30] sm:$0xf]
      %v710 = vld [vmem:[%s696 + $0x34] sm:$0xf]
      %v711 = vld [vmem:[%s696 + $0x38] sm:$0xf]
      %v712 = vld [vmem:[%s696 + $0x3c] sm:$0xf]
      %v713 = vunpack.c.l.b16 %v691
      %v714 = vunpack.c.l.b16 %v695
      %v715 = vpack.c.b16 %v714, %v713
      %v733 = vunpack.c.l.b16 %v697
      %v734 = vunpack.c.l.b16 %v698
      %v735 = vunpack.c.l.b16 %v699
      %v736 = vunpack.c.l.b16 %v700
      %v737 = vunpack.c.l.b16 %v701
      %v738 = vunpack.c.l.b16 %v702
      %v739 = vunpack.c.l.b16 %v703
      %v740 = vunpack.c.l.b16 %v704
      %v741 = vunpack.c.l.b16 %v705
      %v742 = vunpack.c.l.b16 %v706
      %v743 = vunpack.c.l.b16 %v707
      %v744 = vunpack.c.l.b16 %v708
      %v745 = vunpack.c.l.b16 %v709
      %v746 = vunpack.c.l.b16 %v710
      %v747 = vunpack.c.l.b16 %v711
      %v748 = vunpack.c.l.b16 %v712
      %v749 = vpack.c.b16 %v734, %v733
      %v750 = vpack.c.b16 %v736, %v735
      %v751 = vpack.c.b16 %v738, %v737
      %v752 = vpack.c.b16 %v740, %v739
      %v753 = vpack.c.b16 %v742, %v741
      %v754 = vpack.c.b16 %v744, %v743
      %v755 = vpack.c.b16 %v746, %v745
      %v756 = vpack.c.b16 %v748, %v747
      %765 = vmatpush.bf16.msra.mxu0 %v756
      %766 = vmatpush.bf16.msra.mxu0 %v755
      %767 = vmatpush.bf16.msra.mxu0 %v754
      %768 = vmatpush.bf16.msra.mxu0 %v753
      %769 = vmatpush.bf16.msra.mxu0 %v752
      %770 = vmatpush.bf16.msra.mxu0 %v751
      %771 = vmatpush.bf16.msra.mxu0 %v750
      %772 = vmatpush.bf16.msra.mxu0 %v749
      %773 = vmatmul.bf16.gmra.mxu0 %v715
      %v774 = vpop.f32.mrf.mxu0
      %v775 = vadd.f32 0.0, %v774
      %v776 = vpop.f32.mrf.mxu0
      %v777 = vadd.f32 0.0, %v776
      %778 = vdwg.mxu0
      %v779 = vadd.f32 %v680, %v775
      %v780 = vadd.f32 %v681, %v777
      %s781 = scalar_lea.vmem %s165, 16
      %v782 = vld [vmem:[%s781] sm:$0xf]
      %v783 = vld [vmem:[%s781 + $0x8] sm:$0xf]
      %s784 = scalar_lea.vmem %s1, 384
      %v785 = vld [vmem:[%s784] sm:$0xf]
      %v786 = vld [vmem:[%s784 + $0x4] sm:$0xf]
      %v787 = vld [vmem:[%s784 + $0x8] sm:$0xf]
      %v788 = vld [vmem:[%s784 + $0xc] sm:$0xf]
      %v789 = vld [vmem:[%s784 + $0x10] sm:$0xf]
      %v790 = vld [vmem:[%s784 + $0x14] sm:$0xf]
      %v791 = vld [vmem:[%s784 + $0x18] sm:$0xf]
      %v792 = vld [vmem:[%s784 + $0x1c] sm:$0xf]
      %v793 = vld [vmem:[%s784 + $0x20] sm:$0xf]
      %v794 = vld [vmem:[%s784 + $0x24] sm:$0xf]
      %v795 = vld [vmem:[%s784 + $0x28] sm:$0xf]
      %v796 = vld [vmem:[%s784 + $0x2c] sm:$0xf]
      %v797 = vld [vmem:[%s784 + $0x30] sm:$0xf]
      %v798 = vld [vmem:[%s784 + $0x34] sm:$0xf]
      %v799 = vld [vmem:[%s784 + $0x38] sm:$0xf]
      %v800 = vld [vmem:[%s784 + $0x3c] sm:$0xf]
      %v803 = vunpack.c.l.b16 %v782
      %v804 = vunpack.c.l.b16 %v783
      %v805 = vpack.c.b16 %v804, %v803
      %v823 = vunpack.c.l.b16 %v785
      %v824 = vunpack.c.l.b16 %v786
      %v825 = vunpack.c.l.b16 %v787
      %v826 = vunpack.c.l.b16 %v788
      %v827 = vunpack.c.l.b16 %v789
      %v828 = vunpack.c.l.b16 %v790
      %v829 = vunpack.c.l.b16 %v791
      %v830 = vunpack.c.l.b16 %v792
      %v831 = vunpack.c.l.b16 %v793
      %v832 = vunpack.c.l.b16 %v794
      %v833 = vunpack.c.l.b16 %v795
      %v834 = vunpack.c.l.b16 %v796
      %v835 = vunpack.c.l.b16 %v797
      %v836 = vunpack.c.l.b16 %v798
      %v837 = vunpack.c.l.b16 %v799
      %v838 = vunpack.c.l.b16 %v800
      %v839 = vpack.c.b16 %v824, %v823
      %v840 = vpack.c.b16 %v826, %v825
      %v841 = vpack.c.b16 %v828, %v827
      %v842 = vpack.c.b16 %v830, %v829
      %v843 = vpack.c.b16 %v832, %v831
      %v844 = vpack.c.b16 %v834, %v833
      %v845 = vpack.c.b16 %v836, %v835
      %v846 = vpack.c.b16 %v838, %v837
      %855 = vmatpush.bf16.msra.mxu0 %v846
      %856 = vmatpush.bf16.msra.mxu0 %v845
      %857 = vmatpush.bf16.msra.mxu0 %v844
      %858 = vmatpush.bf16.msra.mxu0 %v843
      %859 = vmatpush.bf16.msra.mxu0 %v842
      %860 = vmatpush.bf16.msra.mxu0 %v841
      %861 = vmatpush.bf16.msra.mxu0 %v840
      %862 = vmatpush.bf16.msra.mxu0 %v839
      %863 = vmatmul.bf16.gmra.mxu0 %v805
      %v864 = vpop.f32.mrf.mxu0
      %v865 = vadd.f32 0.0, %v864
      %v866 = vpop.f32.mrf.mxu0
      %v867 = vadd.f32 0.0, %v866
      %868 = vdwg.mxu0
      %v869 = vadd.f32 %v779, %v865
      %v870 = vadd.f32 %v780, %v867
      %v871 = vld [vmem:[%s781] sm:$0xf]
      %v872 = vld [vmem:[%s781 + $0x4] sm:$0x1]
      %v873 = vld [vmem:[%s781 + $0x8] sm:$0xf]
      %v874 = vld [vmem:[%s781 + $0xc] sm:$0x1]
      %v876 = vshrl.u32 %v871, 16
      %v878 = vrot.slane %v876, 4
      %v879 = vshll.u32 %v871, 16
      %v881 = vrot.slane %v879, 5
      %v882 = vor.u32 %v878, %v881
      %v883 = vrot.slane %v882, 4
      %v885 = vshll.u32 %v872, 16
      %v887 = vrot.slane %v885, 5
      %v888 = vsel %vm193, %v883, %v887
      %v890 = vshrl.u32 %v873, 16
      %v892 = vrot.slane %v890, 4
      %v893 = vshll.u32 %v873, 16
      %v895 = vrot.slane %v893, 5
      %v896 = vor.u32 %v892, %v895
      %v897 = vrot.slane %v896, 4
      %v899 = vshll.u32 %v874, 16
      %v901 = vrot.slane %v899, 5
      %v902 = vsel %vm193, %v897, %v901
      %s903 = scalar_lea.vmem %s1, 448
      %v904 = vld [vmem:[%s903] sm:$0xf]
      %v905 = vld [vmem:[%s903 + $0x4] sm:$0xf]
      %v906 = vld [vmem:[%s903 + $0x8] sm:$0xf]
      %v907 = vld [vmem:[%s903 + $0xc] sm:$0xf]
      %v908 = vld [vmem:[%s903 + $0x10] sm:$0xf]
      %v909 = vld [vmem:[%s903 + $0x14] sm:$0xf]
      %v910 = vld [vmem:[%s903 + $0x18] sm:$0xf]
      %v911 = vld [vmem:[%s903 + $0x1c] sm:$0xf]
      %v912 = vld [vmem:[%s903 + $0x20] sm:$0xf]
      %v913 = vld [vmem:[%s903 + $0x24] sm:$0xf]
      %v914 = vld [vmem:[%s903 + $0x28] sm:$0xf]
      %v915 = vld [vmem:[%s903 + $0x2c] sm:$0xf]
      %v916 = vld [vmem:[%s903 + $0x30] sm:$0xf]
      %v917 = vld [vmem:[%s903 + $0x34] sm:$0xf]
      %v918 = vld [vmem:[%s903 + $0x38] sm:$0xf]
      %v919 = vld [vmem:[%s903 + $0x3c] sm:$0xf]
      %v920 = vunpack.c.l.b16 %v888
      %v921 = vunpack.c.l.b16 %v902
      %v922 = vpack.c.b16 %v921, %v920
      %v940 = vunpack.c.l.b16 %v904
      %v941 = vunpack.c.l.b16 %v905
      %v942 = vunpack.c.l.b16 %v906
      %v943 = vunpack.c.l.b16 %v907
      %v944 = vunpack.c.l.b16 %v908
      %v945 = vunpack.c.l.b16 %v909
      %v946 = vunpack.c.l.b16 %v910
      %v947 = vunpack.c.l.b16 %v911
      %v948 = vunpack.c.l.b16 %v912
      %v949 = vunpack.c.l.b16 %v913
      %v950 = vunpack.c.l.b16 %v914
      %v951 = vunpack.c.l.b16 %v915
      %v952 = vunpack.c.l.b16 %v916
      %v953 = vunpack.c.l.b16 %v917
      %v954 = vunpack.c.l.b16 %v918
      %v955 = vunpack.c.l.b16 %v919
      %v956 = vpack.c.b16 %v941, %v940
      %v957 = vpack.c.b16 %v943, %v942
      %v958 = vpack.c.b16 %v945, %v944
      %v959 = vpack.c.b16 %v947, %v946
      %v960 = vpack.c.b16 %v949, %v948
      %v961 = vpack.c.b16 %v951, %v950
      %v962 = vpack.c.b16 %v953, %v952
      %v963 = vpack.c.b16 %v955, %v954
      %972 = vmatpush.bf16.msra.mxu0 %v963
      %973 = vmatpush.bf16.msra.mxu0 %v962
      %974 = vmatpush.bf16.msra.mxu0 %v961
      %975 = vmatpush.bf16.msra.mxu0 %v960
      %976 = vmatpush.bf16.msra.mxu0 %v959
      %977 = vmatpush.bf16.msra.mxu0 %v958
      %978 = vmatpush.bf16.msra.mxu0 %v957
      %979 = vmatpush.bf16.msra.mxu0 %v956
      %980 = vmatmul.bf16.gmra.mxu0 %v922
      %v981 = vpop.f32.mrf.mxu0
      %v982 = vadd.f32 0.0, %v981
      %v983 = vpop.f32.mrf.mxu0
      %v984 = vadd.f32 0.0, %v983
      %985 = vdwg.mxu0
      %v986 = vadd.f32 %v869, %v982
      %v987 = vadd.f32 %v870, %v984
      %v988 = vld [vmem:[%s781] sm:$0xe]
      %v989 = vld [vmem:[%s781 + $0x8] sm:$0xe]
      %v994 = vrot.slane %v988, 5
      %v995 = vrot.slane %v994, 4
      %v996 = vrot.slane %v872, 5
      %v997 = vsel %vm381, %v995, %v996
      %v998 = vrot.slane %v989, 5
      %v999 = vrot.slane %v998, 4
      %v1000 = vrot.slane %v874, 5
      %v1001 = vsel %vm381, %v999, %v1000
      %s1002 = scalar_lea.vmem %s1, 512
      %v1003 = vld [vmem:[%s1002] sm:$0xf]
      %v1004 = vld [vmem:[%s1002 + $0x4] sm:$0xf]
      %v1005 = vld [vmem:[%s1002 + $0x8] sm:$0xf]
      %v1006 = vld [vmem:[%s1002 + $0xc] sm:$0xf]
      %v1007 = vld [vmem:[%s1002 + $0x10] sm:$0xf]
      %v1008 = vld [vmem:[%s1002 + $0x14] sm:$0xf]
      %v1009 = vld [vmem:[%s1002 + $0x18] sm:$0xf]
      %v1010 = vld [vmem:[%s1002 + $0x1c] sm:$0xf]
      %v1011 = vld [vmem:[%s1002 + $0x20] sm:$0xf]
      %v1012 = vld [vmem:[%s1002 + $0x24] sm:$0xf]
      %v1013 = vld [vmem:[%s1002 + $0x28] sm:$0xf]
      %v1014 = vld [vmem:[%s1002 + $0x2c] sm:$0xf]
      %v1015 = vld [vmem:[%s1002 + $0x30] sm:$0xf]
      %v1016 = vld [vmem:[%s1002 + $0x34] sm:$0xf]
      %v1017 = vld [vmem:[%s1002 + $0x38] sm:$0xf]
      %v1018 = vld [vmem:[%s1002 + $0x3c] sm:$0xf]
      %v1019 = vunpack.c.l.b16 %v997
      %v1020 = vunpack.c.l.b16 %v1001
      %v1021 = vpack.c.b16 %v1020, %v1019
      %v1039 = vunpack.c.l.b16 %v1003
      %v1040 = vunpack.c.l.b16 %v1004
      %v1041 = vunpack.c.l.b16 %v1005
      %v1042 = vunpack.c.l.b16 %v1006
      %v1043 = vunpack.c.l.b16 %v1007
      %v1044 = vunpack.c.l.b16 %v1008
      %v1045 = vunpack.c.l.b16 %v1009
      %v1046 = vunpack.c.l.b16 %v1010
      %v1047 = vunpack.c.l.b16 %v1011
      %v1048 = vunpack.c.l.b16 %v1012
      %v1049 = vunpack.c.l.b16 %v1013
      %v1050 = vunpack.c.l.b16 %v1014
      %v1051 = vunpack.c.l.b16 %v1015
      %v1052 = vunpack.c.l.b16 %v1016
      %v1053 = vunpack.c.l.b16 %v1017
      %v1054 = vunpack.c.l.b16 %v1018
      %v1055 = vpack.c.b16 %v1040, %v1039
      %v1056 = vpack.c.b16 %v1042, %v1041
      %v1057 = vpack.c.b16 %v1044, %v1043
      %v1058 = vpack.c.b16 %v1046, %v1045
      %v1059 = vpack.c.b16 %v1048, %v1047
      %v1060 = vpack.c.b16 %v1050, %v1049
      %v1061 = vpack.c.b16 %v1052, %v1051
      %v1062 = vpack.c.b16 %v1054, %v1053
      %1071 = vmatpush.bf16.msra.mxu0 %v1062
      %1072 = vmatpush.bf16.msra.mxu0 %v1061
      %1073 = vmatpush.bf16.msra.mxu0 %v1060
      %1074 = vmatpush.bf16.msra.mxu0 %v1059
      %1075 = vmatpush.bf16.msra.mxu0 %v1058
      %1076 = vmatpush.bf16.msra.mxu0 %v1057
      %1077 = vmatpush.bf16.msra.mxu0 %v1056
      %1078 = vmatpush.bf16.msra.mxu0 %v1055
      %1079 = vmatmul.bf16.gmra.mxu0 %v1021
      %v1080 = vpop.f32.mrf.mxu0
      %v1081 = vadd.f32 0.0, %v1080
      %v1082 = vpop.f32.mrf.mxu0
      %v1083 = vadd.f32 0.0, %v1082
      %1084 = vdwg.mxu0
      %v1085 = vadd.f32 %v986, %v1081
      %v1086 = vadd.f32 %v987, %v1083
      %v1087 = vld [vmem:[%s2] sm:$0x1]
      %v1089 = vperm.slane %v1087, 0
      %v1091 = vadd.f32 %v1085, %v1089
      %v1092 = vadd.f32 %v1086, %v1089
      %v1093 = vmax.f32 %v1091, 0.0
      %v1094 = vmax.f32 %v1092, 0.0
      %v1095 = vpack.c.bf16 %v1093, %v1093
      %v1096 = vpack.c.bf16 %v1094, %v1094
      %1097 = vst [vmem:[%s170] sm:$0xf] %v1095
      %1098 = vst [vmem:[%s170 + $0x4] sm:$0xf] %v1096
      %p1099 = scmp.lt.s32.totalorder %s14, 1
      %s1100 = scalar_select %p1099, %s14, 1
      %s1101 = smul.addr %s1100, 2
      %s1102 = smul.addr %s1101, 4
      %s1103 = scalar_lea.vmem %s3, %s1102
      // Predicated region
      $region33: #{model_forward.6} parent=31 // pred_check
        %p1104 = pneg %p100
      $region34: #{model_forward.6} parent=31 // pred_check_branch
        %1106 = sbr.rel (%p1104) target = $region36
      $region35: #{model_forward.6} parent=31 // pred_region
        _
      $region36: #{model_forward.6} parent=31 // pred_fallthru
        _
    $region32: #{model_forward.6} parent=5 // pred_fallthru
      _
    %p1107 = scmp.le.s32.totalorder 2, %s9
    // Predicated region
    $region37: #{model_forward.6} parent=5 // pred_check
      %p1108 = pneg %p1107
    $region38: #{model_forward.6} parent=5 // pred_check_branch
      %1110 = sbr.rel (%p1108) target = $region40
    $region39: #{model_forward.6} parent=5 // pred_region
      %s1111 = ssub.s32 %s9, 2
      // Predicated region
      $region41: #{model_forward.6} parent=39 // pred_check
        %p1112 = pneg %p106
      $region42: #{model_forward.6} parent=39 // pred_check_branch
        %1114 = sbr.rel (%p1112) target = $region44
      $region43: #{model_forward.6} parent=39 // pred_region
        %p1115 = scmp.lt.s32.totalorder %s15, 1
        %s1116 = scalar_select %p1115, %s15, 1
        %s1117 = smul.addr %s1116, 2
        %s1118 = smul.addr %s1117, 4
        %s1119 = scalar_lea.vmem %s3, %s1118
      $region44: #{model_forward.6} parent=39 // pred_fallthru
        _
    $region40: #{model_forward.6} parent=5 // pred_fallthru
      _
  $region6: #{model_forward.6} parent=0 // loop_footer
    %s13 = sadd.s32 1, %s9
  $region7: #{model_forward.6} parent=0 // loop_footer_branch
    %8 = sbr.rel target = $region3
  $region8: #{model_forward.6} parent=0 // loop_exit
    _

// kernel: model_forward.7
$region0: #{model_forward.7}
  #allocation0 [shape = 'u32[]', space=smem, size = 0x4, offset = 0x4, fixed_abs, tag = 'smem constant byte address 0x4 - core index']
  #allocation1 [shape = 'u32[72,128]{1,0:T(1,128)}', space=vmem, size = 0x9000, scoped, tag = 'internal scratch']
  %s0 = inlined_call_operand.vmem [shape: f32[8,2,256], index: 0, kind: input, shape index: {}]
  %s1 = inlined_call_operand.vmem [shape: f32[64,256], index: 1, kind: input, shape index: {}]
  %s2 = inlined_call_operand.vmem [shape: f32[8,2,64], index: 2, kind: output, shape index: {}]
  %s3 = sld [smem:[#allocation0]]
  $region25: #{model_forward.7} parent=0
    _
  %s5 = ssub.s32 1, %s3
  %s6 = scalar_select 0, %s5, %s3
  // Predicated region
  $region2: #{model_forward.7} parent=0 // pred_check
    _
  $region3: #{model_forward.7} parent=0 // pred_check_branch
    %8 = sbr.rel (0) target = $region5
  $region4: #{model_forward.7} parent=0 // pred_region
    _
  $region5: #{model_forward.7} parent=0 // pred_fallthru
    _
  // Predicated region
  $region6: #{model_forward.7} parent=0 // pred_check
    _
  $region7: #{model_forward.7} parent=0 // pred_check_branch
    %10 = sbr.rel (0) target = $region9
  $region8: #{model_forward.7} parent=0 // pred_region
    _
  $region9: #{model_forward.7} parent=0 // pred_fallthru
    _
  %v11 = vld [vmem:[%s1] sm:$0xff]
  %v12 = vld [vmem:[%s1 + $0x8] sm:$0xff]
  %v13 = vld [vmem:[%s1 + $0x10] sm:$0xff]
  %v14 = vld [vmem:[%s1 + $0x18] sm:$0xff]
  %v15 = vld [vmem:[%s1 + $0x20] sm:$0xff]
  %v16 = vld [vmem:[%s1 + $0x28] sm:$0xff]
  %v17 = vld [vmem:[%s1 + $0x30] sm:$0xff]
  %v18 = vld [vmem:[%s1 + $0x38] sm:$0xff]
  %v19 = vld [vmem:[%s1 + $0x40] sm:$0xff]
  %v20 = vld [vmem:[%s1 + $0x48] sm:$0xff]
  %v21 = vld [vmem:[%s1 + $0x50] sm:$0xff]
  %v22 = vld [vmem:[%s1 + $0x58] sm:$0xff]
  %v23 = vld [vmem:[%s1 + $0x60] sm:$0xff]
  %v24 = vld [vmem:[%s1 + $0x68] sm:$0xff]
  %v25 = vld [vmem:[%s1 + $0x70] sm:$0xff]
  %v26 = vld [vmem:[%s1 + $0x78] sm:$0xff]
  loop: start=0, step=1, limit=8
  $region10: #{model_forward.7} parent=0 // loop_pre_header
    _
  $region11: #{model_forward.7} parent=0 // loop_header
    %s28 = sphi 0, %s32
    %p29 = scmp.ge.s32.totalorder %s28, 8
    %v33 = vphi 0.0, %v225
    %v34 = vphi 0.0, %v238
  $region12: #{model_forward.7} parent=0 // loop_header_branch
    %31 = sbr.rel (%p29) target = $region16
  $region13: #{model_forward.7} parent=0 // loop_body
    %s35 = smul.u32 %s28, 2
    %s36 = smul.addr %s35, 2
    %s37 = scalar_lea.vmem %s0, %s36
    %v38 = vld [vmem:[%s37] sm:$0xf]
    %vm39 = vcmask 523264
    %v41 = vsel %vm39, %v33, 0
    %43 = vmatpush.msra.mxu0 0.0
    %44 = vmatpush.msra.mxu0 0.0
    %45 = vmatpush.msra.mxu0 0.0
    %46 = vmatpush.msra.mxu0 0.0
    %47 = vmatpush.msra.mxu0 0.0
    %48 = vmatpush.msra.mxu0 0.0
    %49 = vmatpush.msra.mxu0 0.0
    %50 = vmatpush.msra.mxu0 0.0
    %51 = vmatpush.msra.mxu0 %v25
    %52 = vmatpush.msra.mxu0 %v23
    %53 = vmatpush.msra.mxu0 %v21
    %54 = vmatpush.msra.mxu0 %v19
    %55 = vmatpush.msra.mxu0 %v17
    %56 = vmatpush.msra.mxu0 %v15
    %57 = vmatpush.msra.mxu0 %v13
    %58 = vmatpush.msra.mxu0 %v11
    %59 = vmatmul.f32.gmra.mxu0 %v41
    %v60 = vpop.f32.mrf.mxu0
    %v61 = vadd.f32 0.0, %v60
    %62 = vdwg.mxu0
    %63 = vmatpush.msra.mxu0 0.0
    %64 = vmatpush.msra.mxu0 0.0
    %65 = vmatpush.msra.mxu0 0.0
    %66 = vmatpush.msra.mxu0 0.0
    %67 = vmatpush.msra.mxu0 0.0
    %68 = vmatpush.msra.mxu0 0.0
    %69 = vmatpush.msra.mxu0 0.0
    %70 = vmatpush.msra.mxu0 0.0
    %71 = vmatpush.msra.mxu0 %v26
    %72 = vmatpush.msra.mxu0 %v24
    %73 = vmatpush.msra.mxu0 %v22
    %74 = vmatpush.msra.mxu0 %v20
    %75 = vmatpush.msra.mxu0 %v18
    %76 = vmatpush.msra.mxu0 %v16
    %77 = vmatpush.msra.mxu0 %v14
    %78 = vmatpush.msra.mxu0 %v12
    %79 = vmatmul.f32.gmra.mxu0 %v41
    %v80 = vpop.f32.mrf.mxu0
    %v81 = vadd.f32 0.0, %v80
    %82 = vdwg.mxu0
    %v85 = vrot.slane %v81, 6
    %vm86 = vcmask 1041408
    %v87 = vsel %vm86, %v61, %v85
    %v89 = vadd.f32 %v38, %v87
    %v90 = vxor.u32 %v89, 2147483648
    %v91 = vmul.f32 %v90, 1.442695
    %v92 = vpow.pop %v91
    %v93 = vadd.f32 %v92, 1.0
    %v94 = vrcp.pop %v93
    %v95 = vmul.f32 %v93, %v94
    %v96 = vsub.f32 1.0, %v95
    %v97 = vmul.f32 %v94, %v96
    %v98 = vadd.f32 %v94, %v97
    %vm99 = vweird.f32 %v93
    %vm100 = vweird.f32 %v94
    %vm101 = vmor %vm99, %vm100
    %v102 = vsel %vm101, %v94, %v98
    %v103 = vand.u32 2147483647, %v93
    %vm104 = vcmp.eq.f32.partialorder %v103, 8.507059e+37
    %v105 = vand.u32 %v93, 2147483648
    %v106 = vor.u32 1.1754944e-38, %v105
    %v107 = vsel %vm104, %v106, %v102
    %v108 = vmul.f32 1.0, %v107
    %v109 = vtanh.pop %v89
    %111 = vrot.lane.b32.xlu0 %v34, 32
    %v112 = vpop.permute.xlu0 %111
    %v114 = vmul.f32 %v108, %v112
    %116 = vrot.lane.b32.xlu0 %v109, 64
    %v117 = vpop.permute.xlu0 %116
    %v119 = vmul.f32 %v108, %v117
    %121 = vrot.lane.b32.xlu0 %v119, 32
    %v122 = vpop.permute.xlu0 %121
    %v124 = vadd.f32 %v114, %v122
    %v125 = vtanh.pop %v124
    %127 = vrot.lane.b32.xlu0 %v125, 64
    %v128 = vpop.permute.xlu0 %127
    %v130 = vmul.f32 %v108, %v128
    %v132 = vrot.slane %v89, 2
    %v134 = vxor.u32 %v132, 2147483648
    %v135 = vmul.f32 %v134, 1.442695
    %v136 = vpow.pop %v135
    %v137 = vadd.f32 %v136, 1.0
    %v138 = vrcp.pop %v137
    %v139 = vmul.f32 %v137, %v138
    %v140 = vsub.f32 1.0, %v139
    %v141 = vmul.f32 %v138, %v140
    %v142 = vadd.f32 %v138, %v141
    %vm143 = vweird.f32 %v137
    %vm144 = vweird.f32 %v138
    %vm145 = vmor %vm143, %vm144
    %v146 = vsel %vm145, %v138, %v142
    %v147 = vand.u32 2147483647, %v137
    %vm148 = vcmp.eq.f32.partialorder %v147, 8.507059e+37
    %v149 = vand.u32 %v137, 2147483648
    %v150 = vor.u32 1.1754944e-38, %v149
    %v151 = vsel %vm148, %v150, %v146
    %v152 = vmul.f32 1.0, %v151
    %153 = vrot.lane.b32.xlu0 %v89, 96
    %v154 = vpop.permute.xlu0 %153
    %v155 = vrot.slane %v154, 2
    %v157 = vxor.u32 %v155, 2147483648
    %v158 = vmul.f32 %v157, 1.442695
    %v159 = vpow.pop %v158
    %v160 = vadd.f32 %v159, 1.0
    %v161 = vrcp.pop %v160
    %v162 = vmul.f32 %v160, %v161
    %v163 = vsub.f32 1.0, %v162
    %v164 = vmul.f32 %v161, %v163
    %v165 = vadd.f32 %v161, %v164
    %vm166 = vweird.f32 %v160
    %vm167 = vweird.f32 %v161
    %vm168 = vmor %vm166, %vm167
    %v169 = vsel %vm168, %v161, %v165
    %v170 = vand.u32 2147483647, %v160
    %vm171 = vcmp.eq.f32.partialorder %v170, 8.507059e+37
    %v172 = vand.u32 %v160, 2147483648
    %v173 = vor.u32 1.1754944e-38, %v172
    %v174 = vsel %vm171, %v173, %v169
    %v175 = vmul.f32 1.0, %v174
    %176 = vrot.lane.b32.xlu0 %v89, 64
    %v177 = vpop.permute.xlu0 %176
    %v178 = vrot.slane %v177, 2
    %v180 = vtanh.pop %v178
    %181 = vrot.lane.b32.xlu0 %v89, 32
    %v182 = vpop.permute.xlu0 %181
    %v183 = vrot.slane %v182, 2
    %v185 = vxor.u32 %v183, 2147483648
    %v186 = vmul.f32 %v185, 1.442695
    %v187 = vpow.pop %v186
    %v188 = vadd.f32 %v187, 1.0
    %v189 = vrcp.pop %v188
    %v190 = vmul.f32 %v188, %v189
    %v191 = vsub.f32 1.0, %v190
    %v192 = vmul.f32 %v189, %v191
    %v193 = vadd.f32 %v189, %v192
    %vm194 = vweird.f32 %v188
    %vm195 = vweird.f32 %v189
    %vm196 = vmor %vm194, %vm195
    %v197 = vsel %vm196, %v189, %v193
    %v198 = vand.u32 2147483647, %v188
    %vm199 = vcmp.eq.f32.partialorder %v198, 8.507059e+37
    %v200 = vand.u32 %v188, 2147483648
    %v201 = vor.u32 1.1754944e-38, %v200
    %v202 = vsel %vm199, %v201, %v197
    %v203 = vmul.f32 1.0, %v202
    %204 = vrot.lane.b32.xlu0 %v34, 96
    %v205 = vpop.permute.xlu0 %204
    %v207 = vmul.f32 %v175, %v205
    %v208 = vmul.f32 %v152, %v180
    %v209 = vadd.f32 %v207, %v208
    %v210 = vtanh.pop %v209
    %v211 = vmul.f32 %v203, %v210
    %213 = vst [vmem:[#allocation1] ss:$4 sm:$0xff] %v130
    %v214 = vld.sshfl [vmem:[#allocation1] sm:$0xff pattern:$0x73625140]
    %215 = vrot.lane.b32.xlu0 %v214, 32
    %v216 = vpop.permute.xlu0 %215
    %219 = vst [vmem:[#allocation1] ss:$4 sm:$0xff] %v211
    %v220 = vld.sshfl [vmem:[#allocation1] sm:$0xff pattern:$0x73625140]
    %221 = vrot.lane.b32.xlu0 %v220, 32
    %v222 = vpop.permute.xlu0 %221
    %vm224 = vcmask 261120
    %v225 = vsel %vm224, %v216, %v222
    %227 = vst [vmem:[#allocation1] ss:$4 sm:$0xff] %v124
    %v228 = vld.sshfl [vmem:[#allocation1] sm:$0xff pattern:$0x73625140]
    %229 = vrot.lane.b32.xlu0 %v228, 96
    %v230 = vpop.permute.xlu0 %229
    %233 = vst [vmem:[#allocation1] ss:$4 sm:$0xff] %v209
    %v234 = vld.sshfl [vmem:[#allocation1] sm:$0xff pattern:$0x73625140]
    %235 = vrot.lane.b32.xlu0 %v234, 32
    %v236 = vpop.permute.xlu0 %235
    %v238 = vsel %vm224, %v230, %v236
    %s239 = scalar_lea.vmem %s2, %s35
    %vm240 = vcmask 517120
    %241 = vst.msk [vmem:[%s239] sm:$0x3] %vm240, %v225
  $region14: #{model_forward.7} parent=0 // loop_footer
    %s32 = sadd.s32 1, %s28
  $region15: #{model_forward.7} parent=0 // loop_footer_branch
    %27 = sbr.rel target = $region11
  $region16: #{model_forward.7} parent=0 // loop_exit
    _
  // Predicated region
  $region17: #{model_forward.7} parent=0 // pred_check
    _
  $region18: #{model_forward.7} parent=0 // pred_check_branch
    %243 = sbr.rel (0) target = $region20
  $region19: #{model_forward.7} parent=0 // pred_region
    _
  $region20: #{model_forward.7} parent=0 // pred_fallthru
    _
  // Predicated region
  $region21: #{model_forward.7} parent=0 // pred_check
    _
  $region22: #{model_forward.7} parent=0 // pred_check_branch
    %245 = sbr.rel (0) target = $region24
  $region23: #{model_forward.7} parent=0 // pred_region
    _
  $region24: #{model_forward.7} parent=0 // pred_fallthru
    _

// kernel: model_forward.9
$region0: #{model_forward.9}
  #allocation0 [shape = 'u32[]', space=smem, size = 0x4, offset = 0x4, fixed_abs, tag = 'smem constant byte address 0x4 - core index']
  #allocation1 [shape = 'u32[72,128]{1,0:T(1,128)}', space=vmem, size = 0x9000, scoped, tag = 'internal scratch']
  %s0 = inlined_call_operand.vmem [shape: f32[7,2,128], index: 0, kind: input, shape index: {}]
  %s1 = inlined_call_operand.vmem [shape: f32[2,8,32], index: 1, kind: input, shape index: {}]
  %s2 = inlined_call_operand.vmem [shape: f32[2,8,32], index: 2, kind: input, shape index: {}]
  %s3 = inlined_call_operand.vmem [shape: f32[32,32], index: 3, kind: input, shape index: {}]
  %s4 = inlined_call_operand.vmem [shape: f32[1,32], index: 4, kind: input, shape index: {}]
  %s5 = inlined_call_operand.vmem [shape: f32[1,32], index: 5, kind: input, shape index: {}]
  %s6 = inlined_call_operand.vmem [shape: f32[64,128], index: 6, kind: input, shape index: {}]
  %s7 = inlined_call_operand.vmem [shape: f32[7,2,32], index: 7, kind: output, shape index: {}]
  %s8 = sld [smem:[#allocation0]]
  $region45: #{model_forward.9} parent=0
    _
  %s10 = ssub.s32 1, %s8
  %s11 = scalar_select 0, %s10, %s8
  // Predicated region
  $region2: #{model_forward.9} parent=0 // pred_check
    _
  $region3: #{model_forward.9} parent=0 // pred_check_branch
    %13 = sbr.rel (0) target = $region5
  $region4: #{model_forward.9} parent=0 // pred_region
    _
  $region5: #{model_forward.9} parent=0 // pred_fallthru
    _
  // Predicated region
  $region6: #{model_forward.9} parent=0 // pred_check
    _
  $region7: #{model_forward.9} parent=0 // pred_check_branch
    %15 = sbr.rel (0) target = $region9
  $region8: #{model_forward.9} parent=0 // pred_region
    _
  $region9: #{model_forward.9} parent=0 // pred_fallthru
    _
  // Predicated region
  $region10: #{model_forward.9} parent=0 // pred_check
    _
  $region11: #{model_forward.9} parent=0 // pred_check_branch
    %17 = sbr.rel (0) target = $region13
  $region12: #{model_forward.9} parent=0 // pred_region
    _
  $region13: #{model_forward.9} parent=0 // pred_fallthru
    _
  // Predicated region
  $region14: #{model_forward.9} parent=0 // pred_check
    _
  $region15: #{model_forward.9} parent=0 // pred_check_branch
    %19 = sbr.rel (0) target = $region17
  $region16: #{model_forward.9} parent=0 // pred_region
    _
  $region17: #{model_forward.9} parent=0 // pred_fallthru
    _
  // Predicated region
  $region18: #{model_forward.9} parent=0 // pred_check
    _
  $region19: #{model_forward.9} parent=0 // pred_check_branch
    %21 = sbr.rel (0) target = $region21
  $region20: #{model_forward.9} parent=0 // pred_region
    _
  $region21: #{model_forward.9} parent=0 // pred_fallthru
    _
  // Predicated region
  $region22: #{model_forward.9} parent=0 // pred_check
    _
  $region23: #{model_forward.9} parent=0 // pred_check_branch
    %23 = sbr.rel (0) target = $region25
  $region24: #{model_forward.9} parent=0 // pred_region
    _
  $region25: #{model_forward.9} parent=0 // pred_fallthru
    _
  // Predicated region
  $region26: #{model_forward.9} parent=0 // pred_check
    _
  $region27: #{model_forward.9} parent=0 // pred_check_branch
    %25 = sbr.rel (0) target = $region29
  $region28: #{model_forward.9} parent=0 // pred_region
    _
  $region29: #{model_forward.9} parent=0 // pred_fallthru
    _
  %v26 = vld [vmem:[%s1] sm:$0xff]
  %v27 = vld [vmem:[%s1 + $0x8] sm:$0xff]
  %v28 = vld [vmem:[%s2] sm:$0xff]
  %v29 = vld [vmem:[%s2 + $0x8] sm:$0xff]
  %v30 = vld [vmem:[%s5] sm:$0x1]
  %v31 = vld [vmem:[%s3] sm:$0xff]
  %v32 = vld [vmem:[%s3 + $0x8] sm:$0xff]
  %v33 = vld [vmem:[%s3 + $0x10] sm:$0xff]
  %v34 = vld [vmem:[%s3 + $0x18] sm:$0xff]
  %v35 = vld [vmem:[%s4] sm:$0x1]
  %v36 = vld [vmem:[%s6] sm:$0xff]
  %v37 = vld [vmem:[%s6 + $0x8] sm:$0xff]
  %v38 = vld [vmem:[%s6 + $0x10] sm:$0xff]
  %v39 = vld [vmem:[%s6 + $0x18] sm:$0xff]
  %v40 = vld [vmem:[%s6 + $0x20] sm:$0xff]
  %v41 = vld [vmem:[%s6 + $0x28] sm:$0xff]
  %v42 = vld [vmem:[%s6 + $0x30] sm:$0xff]
  %v43 = vld [vmem:[%s6 + $0x38] sm:$0xff]
  loop: start=0, step=1, limit=7
  $region30: #{model_forward.9} parent=0 // loop_pre_header
    _
  $region31: #{model_forward.9} parent=0 // loop_header
    %s45 = sphi 0, %s49
    %p46 = scmp.ge.s32.totalorder %s45, 7
    %v50 = vphi 0.0, %v246
    %v51 = vphi 0.0, %v240
  $region32: #{model_forward.9} parent=0 // loop_header_branch
    %48 = sbr.rel (%p46) target = $region36
  $region33: #{model_forward.9} parent=0 // loop_body
    %v53 = vperm.slane %v35, 0
    %56 = vrot.lane.b32.xlu0 %v50, 32
    %v57 = vpop.permute.xlu0 %56
    %vm58 = vcmask 261120
    %v59 = vsel %vm58, %v57, 0
    %61 = vmatpush.msra.mxu0 0.0
    %62 = vmatpush.msra.mxu0 0.0
    %63 = vmatpush.msra.mxu0 0.0
    %64 = vmatpush.msra.mxu0 0.0
    %65 = vmatpush.msra.mxu0 0.0
    %66 = vmatpush.msra.mxu0 0.0
    %67 = vmatpush.msra.mxu0 0.0
    %68 = vmatpush.msra.mxu0 0.0
    %69 = vmatpush.msra.mxu0 0.0
    %70 = vmatpush.msra.mxu0 0.0
    %71 = vmatpush.msra.mxu0 0.0
    %72 = vmatpush.msra.mxu0 0.0
    %73 = vmatpush.msra.mxu0 %v34
    %74 = vmatpush.msra.mxu0 %v33
    %75 = vmatpush.msra.mxu0 %v32
    %76 = vmatpush.msra.mxu0 %v31
    %77 = vmatmul.f32.gmra.mxu0 %v59
    %v78 = vpop.f32.mrf.mxu0
    %v79 = vadd.f32 %v53, %v78
    %80 = vdwg.mxu0
    %v82 = vrot.slane %v79, 1
    %v83 = vperm.slane %v79, 0
    %v84 = vperm.slane %v82, 0
    %v87 = vadd.f32 %v26, %v83
    %v88 = vadd.f32 %v27, %v84
    %v89 = vtanh.pop %v87
    %v90 = vtanh.pop %v88
    %v92 = vperm.slane %v30, 0
    %v94 = vmul.f32 %v89, %v92
    %v95 = vmul.f32 %v90, %v92
    %v96 = vsel %vm58, %v94, 0.0
    %97 = vadd.xlane.f32.xlu0 %v96
    %v98 = vpop.xlane.xlu0 %97
    %v99 = vsel %vm58, %v95, 0.0
    %100 = vadd.xlane.f32.xlu0 %v99
    %v101 = vpop.xlane.xlu0 %100
    %v104 = vlaneseq
    %v105 = vand.u32 %v104, 127
    %v106 = vperm.slane %v98, %v105
    %v107 = vperm.slane %v101, %v105
    %vm108 = vcmask 1041409
    %v109 = vsel %vm108, %v107, %v106
    %vm111 = vcmask 58368
    %v112 = vsel %vm111, %v109, -inf
    %113 = vmax.xlane.f32.xlu0 %v112
    %v114 = vpop.xlane.xlu0 %113
    %v116 = vperm.slane %v114, 0
    %v117 = vperm.slane %v114, 1
    %v120 = vsub.f32 %v98, %v116
    %v121 = vsub.f32 %v101, %v117
    %v122 = vmul.f32 %v120, 1.442695
    %v123 = vpow.pop %v122
    %v124 = vmul.f32 %v121, 1.442695
    %v125 = vpow.pop %v124
    %128 = vset.pattern.permute.xlu0 0
    %129 = vperm.xlu0 %128, %v123
    %v130 = vpop.permute.xlu0 %129
    %131 = vset.pattern.permute.xlu0 0
    %132 = vperm.xlu0 %131, %v125
    %v133 = vpop.permute.xlu0 %132
    %v134 = vperm.slane %v130, %v105
    %v135 = vperm.slane %v133, %v105
    %v136 = vsel %vm108, %v135, %v134
    %v138 = vsel %vm111, %v136, 0.0
    %139 = vadd.xlane.f32.xlu0 %v138
    %v140 = vpop.xlane.xlu0 %139
    %v141 = vrcp.pop %v140
    %v143 = vperm.slane %v141, 0
    %v144 = vperm.slane %v141, 1
    %v147 = vmul.f32 %v123, %v143
    %v148 = vmul.f32 %v125, %v144
    %150 = vset.pattern.permute.xlu0 0
    %151 = vperm.xlu0 %150, %v147
    %v152 = vpop.permute.xlu0 %151
    %155 = vset.pattern.permute.xlu0 0
    %156 = vperm.xlu0 %155, %v148
    %v157 = vpop.permute.xlu0 %156
    %v159 = vmul.f32 %v152, %v28
    %v160 = vmul.f32 %v157, %v29
    %v161 = vsel %vm58, %v159, 0.0
    %v162 = vrot.slane %v161, 4
    %v163 = vadd.f32 %v161, %v162
    %v164 = vrot.slane %v163, 2
    %v165 = vadd.f32 %v163, %v164
    %v166 = vrot.slane %v165, 1
    %v167 = vadd.f32 %v165, %v166
    %v168 = vsel %vm58, %v160, 0.0
    %v169 = vrot.slane %v168, 4
    %v170 = vadd.f32 %v168, %v169
    %v171 = vrot.slane %v170, 2
    %v172 = vadd.f32 %v170, %v171
    %v173 = vrot.slane %v172, 1
    %v174 = vadd.f32 %v172, %v173
    %v177 = vsel %vm108, %v174, %v167
    %179 = vrot.lane.b32.xlu0 %v50, 64
    %v180 = vpop.permute.xlu0 %179
    %v182 = vsel %vm58, %v177, %v180
    %s183 = smul.u32 %s45, 2
    %s184 = scalar_lea.vmem %s0, %s183
    %v185 = vld [vmem:[%s184] sm:$0x3]
    %vm186 = vcmask 523264
    %v188 = vsel %vm186, %v182, 0
    %190 = vmatpush.msra.mxu0 0.0
    %191 = vmatpush.msra.mxu0 0.0
    %192 = vmatpush.msra.mxu0 0.0
    %193 = vmatpush.msra.mxu0 0.0
    %194 = vmatpush.msra.mxu0 0.0
    %195 = vmatpush.msra.mxu0 0.0
    %196 = vmatpush.msra.mxu0 0.0
    %197 = vmatpush.msra.mxu0 0.0
    %198 = vmatpush.msra.mxu0 %v43
    %199 = vmatpush.msra.mxu0 %v42
    %200 = vmatpush.msra.mxu0 %v41
    %201 = vmatpush.msra.mxu0 %v40
    %202 = vmatpush.msra.mxu0 %v39
    %203 = vmatpush.msra.mxu0 %v38
    %204 = vmatpush.msra.mxu0 %v37
    %205 = vmatpush.msra.mxu0 %v36
    %206 = vmatmul.f32.gmra.mxu0 %v188
    %v207 = vpop.f32.mrf.mxu0
    %v208 = vadd.f32 %v185, %v207
    %209 = vdwg.mxu0
    %v210 = vxor.u32 %v208, 2147483648
    %v211 = vmul.f32 %v210, 1.442695
    %v212 = vpow.pop %v211
    %v213 = vadd.f32 %v212, 1.0
    %v214 = vrcp.pop %v213
    %v215 = vmul.f32 %v213, %v214
    %v216 = vsub.f32 1.0, %v215
    %v217 = vmul.f32 %v214, %v216
    %v218 = vadd.f32 %v214, %v217
    %vm219 = vweird.f32 %v213
    %vm220 = vweird.f32 %v214
    %vm221 = vmor %vm219, %vm220
    %v222 = vsel %vm221, %v214, %v218
    %v223 = vand.u32 2147483647, %v213
    %vm224 = vcmp.eq.f32.partialorder %v223, 8.507059e+37
    %v225 = vand.u32 %v213, 2147483648
    %v226 = vor.u32 1.1754944e-38, %v225
    %v227 = vsel %vm224, %v226, %v222
    %v228 = vmul.f32 1.0, %v227
    %v229 = vtanh.pop %v208
    %v230 = vmul.f32 %v228, %v51
    %232 = vrot.lane.b32.xlu0 %v229, 64
    %v233 = vpop.permute.xlu0 %232
    %v235 = vmul.f32 %v228, %v233
    %237 = vrot.lane.b32.xlu0 %v235, 32
    %v238 = vpop.permute.xlu0 %237
    %v240 = vadd.f32 %v230, %v238
    %v241 = vtanh.pop %v240
    %243 = vrot.lane.b32.xlu0 %v241, 64
    %v244 = vpop.permute.xlu0 %243
    %v246 = vmul.f32 %v228, %v244
    %248 = vrot.lane.b32.xlu0 %v246, 32
    %v249 = vpop.permute.xlu0 %248
    %s251 = scalar_lea.vmem %s7, %s183
    %vm252 = vcmask 254976
    %253 = vst.msk [vmem:[%s251] sm:$0x3] %vm252, %v249
  $region34: #{model_forward.9} parent=0 // loop_footer
    %s49 = sadd.s32 1, %s45
  $region35: #{model_forward.9} parent=0 // loop_footer_branch
    %44 = sbr.rel target = $region31
  $region36: #{model_forward.9} parent=0 // loop_exit
    _
  // Predicated region
  $region37: #{model_forward.9} parent=0 // pred_check
    _
  $region38: #{model_forward.9} parent=0 // pred_check_branch
    %255 = sbr.rel (0) target = $region40
  $region39: #{model_forward.9} parent=0 // pred_region
    _
  $region40: #{model_forward.9} parent=0 // pred_fallthru
    _
  // Predicated region
  $region41: #{model_forward.9} parent=0 // pred_check
    _
  $region42: #{model_forward.9} parent=0 // pred_check_branch
    %257 = sbr.rel (0) target = $region44
  $region43: #{model_forward.9} parent=0 // pred_region
    _
  $region44: #{model_forward.9} parent=0 // pred_fallthru
    _

</llo_original>
